<compile_context>
chip_gen: v5e
topology: v5e:2x2
jax: 0.10.0
libtpu: 0.0.40
codegen_flags: <defaults>
</compile_context>

<pallas_src>
import functools

import jax
import jax.numpy as jnp
from jax.experimental import pallas as pl


# ------------------------------ fused kernels ------------------------------ #

def _decoder_layer_kernel(x_ref, mem_ref,
                          sa_wqkv, sa_bqkv, sa_wo, sa_bo,
                          ca_wq, ca_bq, ca_wkv, ca_bkv, ca_wo, ca_bo,
                          w1, b1, w2, b2,
                          n1g, n1b, n2g, n2b, n3g, n3b,
                          o_ref, *, nhead, eps):
    """One full post-norm decoder layer; batch-first (B, L, E) in / out."""
    B, L, E = x_ref.shape
    Lm = mem_ref.shape[1]
    Dh = E // nhead
    scale = 1.0 / float(Dh) ** 0.5

    x2d = x_ref[...].astype(jnp.float32).reshape(B * L, E)
    mem2d = mem_ref[...].astype(jnp.float32).reshape(B * Lm, E)

    def add_norm(x, res, g_ref, b_ref):
        y = x + res
        mean = jnp.mean(y, axis=-1, keepdims=True)
        var = jnp.mean(jnp.square(y - mean), axis=-1, keepdims=True)
        return (y - mean) * jax.lax.rsqrt(var + eps) * g_ref[...] + b_ref[...]

    def mh_attention(q2d, k2d, v2d, Lq, Lk, wo_ref, bo_ref):
        """Multi-head SDPA + output projection, fused.

        Heads are a static (unrolled) python loop; each head's contribution to
        the output projection is accumulated directly:
            concat_h(o_h) @ W_o  ==  sum_h  o_h @ W_o[h*Dh:(h+1)*Dh, :]
        which avoids any lane-dim concatenation / head transposes.
        """
        q3 = q2d.reshape(B, Lq, E)
        k3 = k2d.reshape(B, Lk, E)
        v3 = v2d.reshape(B, Lk, E)
        out = jnp.zeros((B * Lq, E), jnp.float32)
        for h in range(nhead):
            lo, hi = h * Dh, (h + 1) * Dh
            s = jnp.einsum('bqd,bkd->bqk', q3[:, :, lo:hi], k3[:, :, lo:hi],
                           preferred_element_type=jnp.float32) * scale
            s = s - jnp.max(s, axis=-1, keepdims=True)
            p = jnp.exp(s)
            p = p * pl.reciprocal(jnp.sum(p, axis=-1, keepdims=True),
                                  approx=True)
            o_h = jnp.einsum('bqk,bkd->bqd', p, v3[:, :, lo:hi],
                             preferred_element_type=jnp.float32)
            out = out + jnp.dot(o_h.reshape(B * Lq, Dh), wo_ref[lo:hi, :],
                                preferred_element_type=jnp.float32)
        return out + bo_ref[...]

    # 1) self-attention (fused QKV projection) + add & norm
    qkv = jnp.dot(x2d, sa_wqkv[...],
                  preferred_element_type=jnp.float32) + sa_bqkv[...]
    sa_out = mh_attention(qkv[:, :E], qkv[:, E:2 * E], qkv[:, 2 * E:],
                          L, L, sa_wo, sa_bo)
    x2d = add_norm(x2d, sa_out, n1g, n1b)

    # 2) cross-attention to memory (fused KV projection) + add & norm
    q = jnp.dot(x2d, ca_wq[...],
                preferred_element_type=jnp.float32) + ca_bq[...]
    kv = jnp.dot(mem2d, ca_wkv[...],
                 preferred_element_type=jnp.float32) + ca_bkv[...]
    ca_out = mh_attention(q, kv[:, :E], kv[:, E:], L, Lm, ca_wo, ca_bo)
    x2d = add_norm(x2d, ca_out, n2g, n2b)

    # 3) feed-forward (ReLU) + add & norm
    h1 = jnp.maximum(
        jnp.dot(x2d, w1[...], preferred_element_type=jnp.float32) + b1[...],
        0.0)
    ff = jnp.dot(h1, w2[...], preferred_element_type=jnp.float32) + b2[...]
    x2d = add_norm(x2d, ff, n3g, n3b)

    o_ref[...] = x2d.reshape(B, L, E).astype(o_ref.dtype)


def _layernorm_kernel(x_ref, g_ref, b_ref, o_ref, *, eps):
    """Plain LayerNorm over the last dim (no residual, no zero-buffer trick)."""
    B, L, E = x_ref.shape
    x = x_ref[...].astype(jnp.float32).reshape(B * L, E)
    mean = jnp.mean(x, axis=-1, keepdims=True)
    var = jnp.mean(jnp.square(x - mean), axis=-1, keepdims=True)
    y = (x - mean) * jax.lax.rsqrt(var + eps) * g_ref[...] + b_ref[...]
    o_ref[...] = y.reshape(B, L, E).astype(o_ref.dtype)


# ----------------------------- forward wrapper ------------------------------ #

_LAYER_PARAM_ORDER = ('sa_wqkv', 'sa_bqkv', 'sa_wo', 'sa_bo',
                      'ca_wq', 'ca_bq', 'ca_wkv', 'ca_bkv', 'ca_wo', 'ca_bo',
                      'w1', 'b1', 'w2', 'b2',
                      'n1g', 'n1b', 'n2g', 'n2b', 'n3g', 'n3b')


def decoder_layer(x, mem, p, nhead, eps=1e-5):
    B, L, E = x.shape
    return pl.pallas_call(
        functools.partial(_decoder_layer_kernel, nhead=nhead, eps=eps),
        out_shape=jax.ShapeDtypeStruct((B, L, E), x.dtype),
    )(x, mem, *[p[k] for k in _LAYER_PARAM_ORDER])


def final_layernorm(x, g, b, eps=1e-5):
    return pl.pallas_call(
        functools.partial(_layernorm_kernel, eps=eps),
        out_shape=jax.ShapeDtypeStruct(x.shape, x.dtype),
    )(x, g, b)


@functools.partial(jax.jit, static_argnums=(4,))
def transformer_decoder_forward(tgt, memory, layer_params, final_norm, nhead):
    """tgt: (L, B, E), memory: (Lm, B, E)  ->  (L, B, E)."""
    x = jnp.transpose(tgt, (1, 0, 2))        # one-time seq-first -> batch-first
    mem = jnp.transpose(memory, (1, 0, 2))
    for p in layer_params:                    # one fused pallas_call per layer
        x = decoder_layer(x, mem, p, nhead)
    if final_norm is not None:
        x = final_layernorm(x, final_norm['g'], final_norm['b'])
    return jnp.transpose(x, (1, 0, 2))


# ----------------------------- parameter setup ------------------------------ #

def init_mha_params(key, d_model):
    k1, k2 = jax.random.split(key)
    return {
        'in_w': jax.random.normal(k1, (3 * d_model, d_model), jnp.float32) * 0.05,
        'in_b': jnp.zeros((3 * d_model,), jnp.float32),
        'out_w': jax.random.normal(k2, (d_model, d_model), jnp.float32) * 0.05,
        'out_b': jnp.zeros((d_model,), jnp.float32),
    }


def init_layer_params(key, d_model, dim_feedforward):
    ks = jax.random.split(key, 4)
    return {
        'self_attn': init_mha_params(ks[0], d_model),
        'cross_attn': init_mha_params(ks[1], d_model),
        'lin1_w': jax.random.normal(ks[2], (dim_feedforward, d_model), jnp.float32) * 0.05,
        'lin1_b': jnp.zeros((dim_feedforward,), jnp.float32),
        'lin2_w': jax.random.normal(ks[3], (d_model, dim_feedforward), jnp.float32) * 0.05,
        'lin2_b': jnp.zeros((d_model,), jnp.float32),
        'norm1_g': jnp.ones((d_model,), jnp.float32),
        'norm1_b': jnp.zeros((d_model,), jnp.float32),
        'norm2_g': jnp.ones((d_model,), jnp.float32),
        'norm2_b': jnp.zeros((d_model,), jnp.float32),
        'norm3_g': jnp.ones((d_model,), jnp.float32),
        'norm3_b': jnp.zeros((d_model,), jnp.float32),
    }


def prep_layer_params(raw):
    """One-time prep: pre-transpose weights, pre-reshape biases / norm params.

    This hoists all `.T` / `.reshape` ops out of the forward path so no XLA
    transpose kernels run per layer per call.
    """
    E = raw['norm1_g'].shape[0]
    sa, ca = raw['self_attn'], raw['cross_attn']
    row = lambda v: v.reshape(1, -1)
    return {
        'sa_wqkv': sa['in_w'].T,                   # (E, 3E) fused QKV projection
        'sa_bqkv': row(sa['in_b']),
        'sa_wo': sa['out_w'].T, 'sa_bo': row(sa['out_b']),
        'ca_wq': ca['in_w'][:E].T, 'ca_bq': row(ca['in_b'][:E]),
        'ca_wkv': ca['in_w'][E:].T, 'ca_bkv': row(ca['in_b'][E:]),   # (E, 2E) fused KV
        'ca_wo': ca['out_w'].T, 'ca_bo': row(ca['out_b']),
        'w1': raw['lin1_w'].T, 'b1': row(raw['lin1_b']),
        'w2': raw['lin2_w'].T, 'b2': row(raw['lin2_b']),
        'n1g': row(raw['norm1_g']), 'n1b': row(raw['norm1_b']),
        'n2g': row(raw['norm2_g']), 'n2b': row(raw['norm2_b']),
        'n3g': row(raw['norm3_g']), 'n3b': row(raw['norm3_b']),
    }


# ----------------------------------- main ----------------------------------- #

if __name__ == "__main__":
    d_model = 32
    nhead = 4
    dim_feedforward = 64
    num_layers = 2
    tgt_len, mem_len, batch = 8, 16, 2

    root = jax.random.PRNGKey(0)
    k_tgt, k_mem, k_params = jax.random.split(root, 3)

    tgt = jax.random.normal(k_tgt, (tgt_len, batch, d_model), jnp.float32)
    memory = jax.random.normal(k_mem, (mem_len, batch, d_model), jnp.float32)

    layer_keys = jax.random.split(k_params, num_layers)
    layer_params = [prep_layer_params(init_layer_params(k, d_model, dim_feedforward))
                    for k in layer_keys]
    final_norm = {'g': jnp.ones((1, d_model), jnp.float32),
                  'b': jnp.zeros((1, d_model), jnp.float32)}

    out = transformer_decoder_forward(tgt, memory, layer_params, final_norm, nhead)
    out = jax.block_until_ready(out)

    assert out.shape == (tgt_len, batch, d_model)
    assert jnp.all(jnp.isfinite(out))
    print("KERNEL_OK")
</pallas_src>

<mosaic_0001>
module attributes {stable_mosaic.version = 11 : i64} {
  func.func @_decoder_layer_kernel(%arg0: memref<2x8x32xf32, #tpu.memory_space<vmem>>, %arg1: memref<2x16x32xf32, #tpu.memory_space<vmem>>, %arg2: memref<32x96xf32, #tpu.memory_space<vmem>>, %arg3: memref<1x96xf32, #tpu.memory_space<vmem>>, %arg4: memref<32x32xf32, #tpu.memory_space<vmem>>, %arg5: memref<1x32xf32, #tpu.memory_space<vmem>>, %arg6: memref<32x32xf32, #tpu.memory_space<vmem>>, %arg7: memref<1x32xf32, #tpu.memory_space<vmem>>, %arg8: memref<32x64xf32, #tpu.memory_space<vmem>>, %arg9: memref<1x64xf32, #tpu.memory_space<vmem>>, %arg10: memref<32x32xf32, #tpu.memory_space<vmem>>, %arg11: memref<1x32xf32, #tpu.memory_space<vmem>>, %arg12: memref<32x64xf32, #tpu.memory_space<vmem>>, %arg13: memref<1x64xf32, #tpu.memory_space<vmem>>, %arg14: memref<64x32xf32, #tpu.memory_space<vmem>>, %arg15: memref<1x32xf32, #tpu.memory_space<vmem>>, %arg16: memref<1x32xf32, #tpu.memory_space<vmem>>, %arg17: memref<1x32xf32, #tpu.memory_space<vmem>>, %arg18: memref<1x32xf32, #tpu.memory_space<vmem>>, %arg19: memref<1x32xf32, #tpu.memory_space<vmem>>, %arg20: memref<1x32xf32, #tpu.memory_space<vmem>>, %arg21: memref<1x32xf32, #tpu.memory_space<vmem>>, %arg22: memref<2x8x32xf32, #tpu.memory_space<vmem>>) attributes {dimension_semantics = [], scalar_prefetch = 0 : i64, scratch_operands = 0 : i64, tpu.core_type = #tpu.core_type<tc>} {
    %c0 = arith.constant 0 : index
    %c0_0 = arith.constant 0 : index
    %c0_1 = arith.constant 0 : index
    %0 = vector.load %arg0[%c0, %c0_0, %c0_1] : memref<2x8x32xf32, #tpu.memory_space<vmem>>, vector<2x8x32xf32>
    %1 = vector.shape_cast %0 : vector<2x8x32xf32> to vector<16x32xf32>
    %c0_2 = arith.constant 0 : index
    %c0_3 = arith.constant 0 : index
    %c0_4 = arith.constant 0 : index
    %2 = vector.load %arg1[%c0_2, %c0_3, %c0_4] : memref<2x16x32xf32, #tpu.memory_space<vmem>>, vector<2x16x32xf32>
    %3 = vector.shape_cast %2 : vector<2x16x32xf32> to vector<32x32xf32>
    %c0_5 = arith.constant 0 : index
    %c0_6 = arith.constant 0 : index
    %4 = vector.load %arg2[%c0_5, %c0_6] : memref<32x96xf32, #tpu.memory_space<vmem>>, vector<32x96xf32>
    %cst = arith.constant dense<0.000000e+00> : vector<16x96xf32>
    %5 = tpu.matmul %1, %4, %cst {dimension_numbers = #tpu.dot_dimension_numbers<[1], [0], [0], [1], [0, 0, 1, 1], [], []>} : vector<16x32xf32>, vector<32x96xf32>, vector<16x96xf32> -> vector<16x96xf32>
    %c0_7 = arith.constant 0 : index
    %c0_8 = arith.constant 0 : index
    %6 = vector.load %arg3[%c0_7, %c0_8] : memref<1x96xf32, #tpu.memory_space<vmem>>, vector<1x96xf32>
    %7 = vector.broadcast %6 : vector<1x96xf32> to vector<16x96xf32>
    %8 = arith.addf %5, %7 : vector<16x96xf32>
    %9 = vector.extract_strided_slice %8 {offsets = [0, 0], sizes = [16, 32], strides = [1, 1]} : vector<16x96xf32> to vector<16x32xf32>
    %10 = vector.extract_strided_slice %8 {offsets = [0, 32], sizes = [16, 32], strides = [1, 1]} : vector<16x96xf32> to vector<16x32xf32>
    %11 = vector.extract_strided_slice %8 {offsets = [0, 64], sizes = [16, 32], strides = [1, 1]} : vector<16x96xf32> to vector<16x32xf32>
    %12 = vector.shape_cast %9 : vector<16x32xf32> to vector<2x8x32xf32>
    %13 = vector.shape_cast %10 : vector<16x32xf32> to vector<2x8x32xf32>
    %14 = vector.shape_cast %11 : vector<16x32xf32> to vector<2x8x32xf32>
    %cst_9 = arith.constant 0.000000e+00 : f32
    %15 = vector.broadcast %cst_9 : f32 to vector<16x32xf32>
    %16 = vector.extract_strided_slice %12 {offsets = [0, 0, 0], sizes = [2, 8, 8], strides = [1, 1, 1]} : vector<2x8x32xf32> to vector<2x8x8xf32>
    %17 = vector.extract_strided_slice %13 {offsets = [0, 0, 0], sizes = [2, 8, 8], strides = [1, 1, 1]} : vector<2x8x32xf32> to vector<2x8x8xf32>
    "tpu.trace_start"() <{level = 10 : i32, message = "bqd,bkd->bqk"}> : () -> ()
    %cst_10 = arith.constant dense<0.000000e+00> : vector<2x8x8xf32>
    %18 = tpu.matmul %16, %17, %cst_10 {dimension_numbers = #tpu.dot_dimension_numbers<[2], [2], [1], [1], [0, 0, 0, 1, 1, 1], [0], [0]>} : vector<2x8x8xf32>, vector<2x8x8xf32>, vector<2x8x8xf32> -> vector<2x8x8xf32>
    "tpu.trace_stop"() : () -> ()
    %cst_11 = arith.constant 0.353553385 : f32
    %19 = vector.broadcast %cst_11 : f32 to vector<2x8x8xf32>
    %20 = arith.mulf %18, %19 : vector<2x8x8xf32>
    %cst_12 = arith.constant dense<0xFF800000> : vector<2x8xf32>
    %21 = vector.multi_reduction <maximumf>, %20, %cst_12 [2] : vector<2x8x8xf32> to vector<2x8xf32>
    %22 = vector.shape_cast %21 : vector<2x8xf32> to vector<2x8x1xf32>
    %23 = vector.broadcast %22 : vector<2x8x1xf32> to vector<2x8x8xf32>
    %24 = arith.subf %20, %23 : vector<2x8x8xf32>
    %25 = math.exp %24 : vector<2x8x8xf32>
    %cst_13 = arith.constant dense<0.000000e+00> : vector<2x8xf32>
    %26 = vector.multi_reduction <add>, %25, %cst_13 [2] : vector<2x8x8xf32> to vector<2x8xf32>
    %27 = vector.shape_cast %26 : vector<2x8xf32> to vector<2x8x1xf32>
    %28 = tpu.reciprocal %27 {approx = true} : vector<2x8x1xf32> -> vector<2x8x1xf32>
    %29 = vector.broadcast %28 : vector<2x8x1xf32> to vector<2x8x8xf32>
    %30 = arith.mulf %25, %29 : vector<2x8x8xf32>
    %31 = vector.extract_strided_slice %14 {offsets = [0, 0, 0], sizes = [2, 8, 8], strides = [1, 1, 1]} : vector<2x8x32xf32> to vector<2x8x8xf32>
    "tpu.trace_start"() <{level = 10 : i32, message = "bqk,bkd->bqd"}> : () -> ()
    %cst_14 = arith.constant dense<0.000000e+00> : vector<2x8x8xf32>
    %32 = tpu.matmul %30, %31, %cst_14 {dimension_numbers = #tpu.dot_dimension_numbers<[2], [1], [1], [2], [0, 0, 0, 1, 1, 2], [0], [0]>} : vector<2x8x8xf32>, vector<2x8x8xf32>, vector<2x8x8xf32> -> vector<2x8x8xf32>
    "tpu.trace_stop"() : () -> ()
    %33 = vector.shape_cast %32 : vector<2x8x8xf32> to vector<16x8xf32>
    %c0_15 = arith.constant 0 : index
    %c0_16 = arith.constant 0 : index
    %34 = vector.load %arg4[%c0_15, %c0_16] : memref<32x32xf32, #tpu.memory_space<vmem>>, vector<8x32xf32>
    %cst_17 = arith.constant dense<0.000000e+00> : vector<16x32xf32>
    %35 = tpu.matmul %33, %34, %cst_17 {dimension_numbers = #tpu.dot_dimension_numbers<[1], [0], [0], [1], [0, 0, 1, 1], [], []>} : vector<16x8xf32>, vector<8x32xf32>, vector<16x32xf32> -> vector<16x32xf32>
    %36 = arith.addf %15, %35 : vector<16x32xf32>
    %37 = vector.extract_strided_slice %12 {offsets = [0, 0, 8], sizes = [2, 8, 8], strides = [1, 1, 1]} : vector<2x8x32xf32> to vector<2x8x8xf32>
    %38 = vector.extract_strided_slice %13 {offsets = [0, 0, 8], sizes = [2, 8, 8], strides = [1, 1, 1]} : vector<2x8x32xf32> to vector<2x8x8xf32>
    "tpu.trace_start"() <{level = 10 : i32, message = "bqd,bkd->bqk"}> : () -> ()
    %cst_18 = arith.constant dense<0.000000e+00> : vector<2x8x8xf32>
    %39 = tpu.matmul %37, %38, %cst_18 {dimension_numbers = #tpu.dot_dimension_numbers<[2], [2], [1], [1], [0, 0, 0, 1, 1, 1], [0], [0]>} : vector<2x8x8xf32>, vector<2x8x8xf32>, vector<2x8x8xf32> -> vector<2x8x8xf32>
    "tpu.trace_stop"() : () -> ()
    %cst_19 = arith.constant 0.353553385 : f32
    %40 = vector.broadcast %cst_19 : f32 to vector<2x8x8xf32>
    %41 = arith.mulf %39, %40 : vector<2x8x8xf32>
    %cst_20 = arith.constant dense<0xFF800000> : vector<2x8xf32>
    %42 = vector.multi_reduction <maximumf>, %41, %cst_20 [2] : vector<2x8x8xf32> to vector<2x8xf32>
    %43 = vector.shape_cast %42 : vector<2x8xf32> to vector<2x8x1xf32>
    %44 = vector.broadcast %43 : vector<2x8x1xf32> to vector<2x8x8xf32>
    %45 = arith.subf %41, %44 : vector<2x8x8xf32>
    %46 = math.exp %45 : vector<2x8x8xf32>
    %cst_21 = arith.constant dense<0.000000e+00> : vector<2x8xf32>
    %47 = vector.multi_reduction <add>, %46, %cst_21 [2] : vector<2x8x8xf32> to vector<2x8xf32>
    %48 = vector.shape_cast %47 : vector<2x8xf32> to vector<2x8x1xf32>
    %49 = tpu.reciprocal %48 {approx = true} : vector<2x8x1xf32> -> vector<2x8x1xf32>
    %50 = vector.broadcast %49 : vector<2x8x1xf32> to vector<2x8x8xf32>
    %51 = arith.mulf %46, %50 : vector<2x8x8xf32>
    %52 = vector.extract_strided_slice %14 {offsets = [0, 0, 8], sizes = [2, 8, 8], strides = [1, 1, 1]} : vector<2x8x32xf32> to vector<2x8x8xf32>
    "tpu.trace_start"() <{level = 10 : i32, message = "bqk,bkd->bqd"}> : () -> ()
    %cst_22 = arith.constant dense<0.000000e+00> : vector<2x8x8xf32>
    %53 = tpu.matmul %51, %52, %cst_22 {dimension_numbers = #tpu.dot_dimension_numbers<[2], [1], [1], [2], [0, 0, 0, 1, 1, 2], [0], [0]>} : vector<2x8x8xf32>, vector<2x8x8xf32>, vector<2x8x8xf32> -> vector<2x8x8xf32>
    "tpu.trace_stop"() : () -> ()
    %54 = vector.shape_cast %53 : vector<2x8x8xf32> to vector<16x8xf32>
    %c8 = arith.constant 8 : index
    %c0_23 = arith.constant 0 : index
    %55 = vector.load %arg4[%c8, %c0_23] : memref<32x32xf32, #tpu.memory_space<vmem>>, vector<8x32xf32>
    %cst_24 = arith.constant dense<0.000000e+00> : vector<16x32xf32>
    %56 = tpu.matmul %54, %55, %cst_24 {dimension_numbers = #tpu.dot_dimension_numbers<[1], [0], [0], [1], [0, 0, 1, 1], [], []>} : vector<16x8xf32>, vector<8x32xf32>, vector<16x32xf32> -> vector<16x32xf32>
    %57 = arith.addf %36, %56 : vector<16x32xf32>
    %58 = vector.extract_strided_slice %12 {offsets = [0, 0, 16], sizes = [2, 8, 8], strides = [1, 1, 1]} : vector<2x8x32xf32> to vector<2x8x8xf32>
    %59 = vector.extract_strided_slice %13 {offsets = [0, 0, 16], sizes = [2, 8, 8], strides = [1, 1, 1]} : vector<2x8x32xf32> to vector<2x8x8xf32>
    "tpu.trace_start"() <{level = 10 : i32, message = "bqd,bkd->bqk"}> : () -> ()
    %cst_25 = arith.constant dense<0.000000e+00> : vector<2x8x8xf32>
    %60 = tpu.matmul %58, %59, %cst_25 {dimension_numbers = #tpu.dot_dimension_numbers<[2], [2], [1], [1], [0, 0, 0, 1, 1, 1], [0], [0]>} : vector<2x8x8xf32>, vector<2x8x8xf32>, vector<2x8x8xf32> -> vector<2x8x8xf32>
    "tpu.trace_stop"() : () -> ()
    %cst_26 = arith.constant 0.353553385 : f32
    %61 = vector.broadcast %cst_26 : f32 to vector<2x8x8xf32>
    %62 = arith.mulf %60, %61 : vector<2x8x8xf32>
    %cst_27 = arith.constant dense<0xFF800000> : vector<2x8xf32>
    %63 = vector.multi_reduction <maximumf>, %62, %cst_27 [2] : vector<2x8x8xf32> to vector<2x8xf32>
    %64 = vector.shape_cast %63 : vector<2x8xf32> to vector<2x8x1xf32>
    %65 = vector.broadcast %64 : vector<2x8x1xf32> to vector<2x8x8xf32>
    %66 = arith.subf %62, %65 : vector<2x8x8xf32>
    %67 = math.exp %66 : vector<2x8x8xf32>
    %cst_28 = arith.constant dense<0.000000e+00> : vector<2x8xf32>
    %68 = vector.multi_reduction <add>, %67, %cst_28 [2] : vector<2x8x8xf32> to vector<2x8xf32>
    %69 = vector.shape_cast %68 : vector<2x8xf32> to vector<2x8x1xf32>
    %70 = tpu.reciprocal %69 {approx = true} : vector<2x8x1xf32> -> vector<2x8x1xf32>
    %71 = vector.broadcast %70 : vector<2x8x1xf32> to vector<2x8x8xf32>
    %72 = arith.mulf %67, %71 : vector<2x8x8xf32>
    %73 = vector.extract_strided_slice %14 {offsets = [0, 0, 16], sizes = [2, 8, 8], strides = [1, 1, 1]} : vector<2x8x32xf32> to vector<2x8x8xf32>
    "tpu.trace_start"() <{level = 10 : i32, message = "bqk,bkd->bqd"}> : () -> ()
    %cst_29 = arith.constant dense<0.000000e+00> : vector<2x8x8xf32>
    %74 = tpu.matmul %72, %73, %cst_29 {dimension_numbers = #tpu.dot_dimension_numbers<[2], [1], [1], [2], [0, 0, 0, 1, 1, 2], [0], [0]>} : vector<2x8x8xf32>, vector<2x8x8xf32>, vector<2x8x8xf32> -> vector<2x8x8xf32>
    "tpu.trace_stop"() : () -> ()
    %75 = vector.shape_cast %74 : vector<2x8x8xf32> to vector<16x8xf32>
    %c16 = arith.constant 16 : index
    %c0_30 = arith.constant 0 : index
    %76 = vector.load %arg4[%c16, %c0_30] : memref<32x32xf32, #tpu.memory_space<vmem>>, vector<8x32xf32>
    %cst_31 = arith.constant dense<0.000000e+00> : vector<16x32xf32>
    %77 = tpu.matmul %75, %76, %cst_31 {dimension_numbers = #tpu.dot_dimension_numbers<[1], [0], [0], [1], [0, 0, 1, 1], [], []>} : vector<16x8xf32>, vector<8x32xf32>, vector<16x32xf32> -> vector<16x32xf32>
    %78 = arith.addf %57, %77 : vector<16x32xf32>
    %79 = vector.extract_strided_slice %12 {offsets = [0, 0, 24], sizes = [2, 8, 8], strides = [1, 1, 1]} : vector<2x8x32xf32> to vector<2x8x8xf32>
    %80 = vector.extract_strided_slice %13 {offsets = [0, 0, 24], sizes = [2, 8, 8], strides = [1, 1, 1]} : vector<2x8x32xf32> to vector<2x8x8xf32>
    "tpu.trace_start"() <{level = 10 : i32, message = "bqd,bkd->bqk"}> : () -> ()
    %cst_32 = arith.constant dense<0.000000e+00> : vector<2x8x8xf32>
    %81 = tpu.matmul %79, %80, %cst_32 {dimension_numbers = #tpu.dot_dimension_numbers<[2], [2], [1], [1], [0, 0, 0, 1, 1, 1], [0], [0]>} : vector<2x8x8xf32>, vector<2x8x8xf32>, vector<2x8x8xf32> -> vector<2x8x8xf32>
    "tpu.trace_stop"() : () -> ()
    %cst_33 = arith.constant 0.353553385 : f32
    %82 = vector.broadcast %cst_33 : f32 to vector<2x8x8xf32>
    %83 = arith.mulf %81, %82 : vector<2x8x8xf32>
    %cst_34 = arith.constant dense<0xFF800000> : vector<2x8xf32>
    %84 = vector.multi_reduction <maximumf>, %83, %cst_34 [2] : vector<2x8x8xf32> to vector<2x8xf32>
    %85 = vector.shape_cast %84 : vector<2x8xf32> to vector<2x8x1xf32>
    %86 = vector.broadcast %85 : vector<2x8x1xf32> to vector<2x8x8xf32>
    %87 = arith.subf %83, %86 : vector<2x8x8xf32>
    %88 = math.exp %87 : vector<2x8x8xf32>
    %cst_35 = arith.constant dense<0.000000e+00> : vector<2x8xf32>
    %89 = vector.multi_reduction <add>, %88, %cst_35 [2] : vector<2x8x8xf32> to vector<2x8xf32>
    %90 = vector.shape_cast %89 : vector<2x8xf32> to vector<2x8x1xf32>
    %91 = tpu.reciprocal %90 {approx = true} : vector<2x8x1xf32> -> vector<2x8x1xf32>
    %92 = vector.broadcast %91 : vector<2x8x1xf32> to vector<2x8x8xf32>
    %93 = arith.mulf %88, %92 : vector<2x8x8xf32>
    %94 = vector.extract_strided_slice %14 {offsets = [0, 0, 24], sizes = [2, 8, 8], strides = [1, 1, 1]} : vector<2x8x32xf32> to vector<2x8x8xf32>
    "tpu.trace_start"() <{level = 10 : i32, message = "bqk,bkd->bqd"}> : () -> ()
    %cst_36 = arith.constant dense<0.000000e+00> : vector<2x8x8xf32>
    %95 = tpu.matmul %93, %94, %cst_36 {dimension_numbers = #tpu.dot_dimension_numbers<[2], [1], [1], [2], [0, 0, 0, 1, 1, 2], [0], [0]>} : vector<2x8x8xf32>, vector<2x8x8xf32>, vector<2x8x8xf32> -> vector<2x8x8xf32>
    "tpu.trace_stop"() : () -> ()
    %96 = vector.shape_cast %95 : vector<2x8x8xf32> to vector<16x8xf32>
    %c24 = arith.constant 24 : index
    %c0_37 = arith.constant 0 : index
    %97 = vector.load %arg4[%c24, %c0_37] : memref<32x32xf32, #tpu.memory_space<vmem>>, vector<8x32xf32>
    %cst_38 = arith.constant dense<0.000000e+00> : vector<16x32xf32>
    %98 = tpu.matmul %96, %97, %cst_38 {dimension_numbers = #tpu.dot_dimension_numbers<[1], [0], [0], [1], [0, 0, 1, 1], [], []>} : vector<16x8xf32>, vector<8x32xf32>, vector<16x32xf32> -> vector<16x32xf32>
    %99 = arith.addf %78, %98 : vector<16x32xf32>
    %c0_39 = arith.constant 0 : index
    %c0_40 = arith.constant 0 : index
    %100 = vector.load %arg5[%c0_39, %c0_40] : memref<1x32xf32, #tpu.memory_space<vmem>>, vector<1x32xf32>
    %101 = vector.broadcast %100 : vector<1x32xf32> to vector<16x32xf32>
    %102 = arith.addf %99, %101 : vector<16x32xf32>
    %103 = arith.addf %1, %102 : vector<16x32xf32>
    %cst_41 = arith.constant dense<0.000000e+00> : vector<16xf32>
    %104 = vector.multi_reduction <add>, %103, %cst_41 [1] : vector<16x32xf32> to vector<16xf32>
    %105 = vector.shape_cast %104 : vector<16xf32> to vector<16x1xf32>
    %cst_42 = arith.constant 3.200000e+01 : f32
    %106 = vector.broadcast %cst_42 : f32 to vector<16x1xf32>
    %107 = arith.divf %105, %106 : vector<16x1xf32>
    %108 = vector.broadcast %107 : vector<16x1xf32> to vector<16x32xf32>
    %109 = arith.subf %103, %108 : vector<16x32xf32>
    %110 = arith.mulf %109, %109 : vector<16x32xf32>
    %cst_43 = arith.constant dense<0.000000e+00> : vector<16xf32>
    %111 = vector.multi_reduction <add>, %110, %cst_43 [1] : vector<16x32xf32> to vector<16xf32>
    %112 = vector.shape_cast %111 : vector<16xf32> to vector<16x1xf32>
    %cst_44 = arith.constant 3.200000e+01 : f32
    %113 = vector.broadcast %cst_44 : f32 to vector<16x1xf32>
    %114 = arith.divf %112, %113 : vector<16x1xf32>
    %115 = vector.broadcast %107 : vector<16x1xf32> to vector<16x32xf32>
    %116 = arith.subf %103, %115 : vector<16x32xf32>
    %cst_45 = arith.constant 9.99999974E-6 : f32
    %117 = vector.broadcast %cst_45 : f32 to vector<16x1xf32>
    %118 = arith.addf %114, %117 : vector<16x1xf32>
    %119 = math.rsqrt %118 : vector<16x1xf32>
    %120 = vector.broadcast %119 : vector<16x1xf32> to vector<16x32xf32>
    %121 = arith.mulf %116, %120 : vector<16x32xf32>
    %c0_46 = arith.constant 0 : index
    %c0_47 = arith.constant 0 : index
    %122 = vector.load %arg16[%c0_46, %c0_47] : memref<1x32xf32, #tpu.memory_space<vmem>>, vector<1x32xf32>
    %123 = vector.broadcast %122 : vector<1x32xf32> to vector<16x32xf32>
    %124 = arith.mulf %121, %123 : vector<16x32xf32>
    %c0_48 = arith.constant 0 : index
    %c0_49 = arith.constant 0 : index
    %125 = vector.load %arg17[%c0_48, %c0_49] : memref<1x32xf32, #tpu.memory_space<vmem>>, vector<1x32xf32>
    %126 = vector.broadcast %125 : vector<1x32xf32> to vector<16x32xf32>
    %127 = arith.addf %124, %126 : vector<16x32xf32>
    %c0_50 = arith.constant 0 : index
    %c0_51 = arith.constant 0 : index
    %128 = vector.load %arg6[%c0_50, %c0_51] : memref<32x32xf32, #tpu.memory_space<vmem>>, vector<32x32xf32>
    %cst_52 = arith.constant dense<0.000000e+00> : vector<16x32xf32>
    %129 = tpu.matmul %127, %128, %cst_52 {dimension_numbers = #tpu.dot_dimension_numbers<[1], [0], [0], [1], [0, 0, 1, 1], [], []>} : vector<16x32xf32>, vector<32x32xf32>, vector<16x32xf32> -> vector<16x32xf32>
    %c0_53 = arith.constant 0 : index
    %c0_54 = arith.constant 0 : index
    %130 = vector.load %arg7[%c0_53, %c0_54] : memref<1x32xf32, #tpu.memory_space<vmem>>, vector<1x32xf32>
    %131 = vector.broadcast %130 : vector<1x32xf32> to vector<16x32xf32>
    %132 = arith.addf %129, %131 : vector<16x32xf32>
    %c0_55 = arith.constant 0 : index
    %c0_56 = arith.constant 0 : index
    %133 = vector.load %arg8[%c0_55, %c0_56] : memref<32x64xf32, #tpu.memory_space<vmem>>, vector<32x64xf32>
    %cst_57 = arith.constant dense<0.000000e+00> : vector<32x64xf32>
    %134 = tpu.matmul %3, %133, %cst_57 {dimension_numbers = #tpu.dot_dimension_numbers<[1], [0], [0], [1], [0, 0, 1, 1], [], []>} : vector<32x32xf32>, vector<32x64xf32>, vector<32x64xf32> -> vector<32x64xf32>
    %c0_58 = arith.constant 0 : index
    %c0_59 = arith.constant 0 : index
    %135 = vector.load %arg9[%c0_58, %c0_59] : memref<1x64xf32, #tpu.memory_space<vmem>>, vector<1x64xf32>
    %136 = vector.broadcast %135 : vector<1x64xf32> to vector<32x64xf32>
    %137 = arith.addf %134, %136 : vector<32x64xf32>
    %138 = vector.extract_strided_slice %137 {offsets = [0, 0], sizes = [32, 32], strides = [1, 1]} : vector<32x64xf32> to vector<32x32xf32>
    %139 = vector.extract_strided_slice %137 {offsets = [0, 32], sizes = [32, 32], strides = [1, 1]} : vector<32x64xf32> to vector<32x32xf32>
    %140 = vector.shape_cast %132 : vector<16x32xf32> to vector<2x8x32xf32>
    %141 = vector.shape_cast %138 : vector<32x32xf32> to vector<2x16x32xf32>
    %142 = vector.shape_cast %139 : vector<32x32xf32> to vector<2x16x32xf32>
    %cst_60 = arith.constant 0.000000e+00 : f32
    %143 = vector.broadcast %cst_60 : f32 to vector<16x32xf32>
    %144 = vector.extract_strided_slice %140 {offsets = [0, 0, 0], sizes = [2, 8, 8], strides = [1, 1, 1]} : vector<2x8x32xf32> to vector<2x8x8xf32>
    %145 = vector.extract_strided_slice %141 {offsets = [0, 0, 0], sizes = [2, 16, 8], strides = [1, 1, 1]} : vector<2x16x32xf32> to vector<2x16x8xf32>
    "tpu.trace_start"() <{level = 10 : i32, message = "bqd,bkd->bqk"}> : () -> ()
    %cst_61 = arith.constant dense<0.000000e+00> : vector<2x8x16xf32>
    %146 = tpu.matmul %144, %145, %cst_61 {dimension_numbers = #tpu.dot_dimension_numbers<[2], [2], [1], [1], [0, 0, 0, 1, 1, 1], [0], [0]>} : vector<2x8x8xf32>, vector<2x16x8xf32>, vector<2x8x16xf32> -> vector<2x8x16xf32>
    "tpu.trace_stop"() : () -> ()
    %cst_62 = arith.constant 0.353553385 : f32
    %147 = vector.broadcast %cst_62 : f32 to vector<2x8x16xf32>
    %148 = arith.mulf %146, %147 : vector<2x8x16xf32>
    %cst_63 = arith.constant dense<0xFF800000> : vector<2x8xf32>
    %149 = vector.multi_reduction <maximumf>, %148, %cst_63 [2] : vector<2x8x16xf32> to vector<2x8xf32>
    %150 = vector.shape_cast %149 : vector<2x8xf32> to vector<2x8x1xf32>
    %151 = vector.broadcast %150 : vector<2x8x1xf32> to vector<2x8x16xf32>
    %152 = arith.subf %148, %151 : vector<2x8x16xf32>
    %153 = math.exp %152 : vector<2x8x16xf32>
    %cst_64 = arith.constant dense<0.000000e+00> : vector<2x8xf32>
    %154 = vector.multi_reduction <add>, %153, %cst_64 [2] : vector<2x8x16xf32> to vector<2x8xf32>
    %155 = vector.shape_cast %154 : vector<2x8xf32> to vector<2x8x1xf32>
    %156 = tpu.reciprocal %155 {approx = true} : vector<2x8x1xf32> -> vector<2x8x1xf32>
    %157 = vector.broadcast %156 : vector<2x8x1xf32> to vector<2x8x16xf32>
    %158 = arith.mulf %153, %157 : vector<2x8x16xf32>
    %159 = vector.extract_strided_slice %142 {offsets = [0, 0, 0], sizes = [2, 16, 8], strides = [1, 1, 1]} : vector<2x16x32xf32> to vector<2x16x8xf32>
    "tpu.trace_start"() <{level = 10 : i32, message = "bqk,bkd->bqd"}> : () -> ()
    %cst_65 = arith.constant dense<0.000000e+00> : vector<2x8x8xf32>
    %160 = tpu.matmul %158, %159, %cst_65 {dimension_numbers = #tpu.dot_dimension_numbers<[2], [1], [1], [2], [0, 0, 0, 1, 1, 2], [0], [0]>} : vector<2x8x16xf32>, vector<2x16x8xf32>, vector<2x8x8xf32> -> vector<2x8x8xf32>
    "tpu.trace_stop"() : () -> ()
    %161 = vector.shape_cast %160 : vector<2x8x8xf32> to vector<16x8xf32>
    %c0_66 = arith.constant 0 : index
    %c0_67 = arith.constant 0 : index
    %162 = vector.load %arg10[%c0_66, %c0_67] : memref<32x32xf32, #tpu.memory_space<vmem>>, vector<8x32xf32>
    %cst_68 = arith.constant dense<0.000000e+00> : vector<16x32xf32>
    %163 = tpu.matmul %161, %162, %cst_68 {dimension_numbers = #tpu.dot_dimension_numbers<[1], [0], [0], [1], [0, 0, 1, 1], [], []>} : vector<16x8xf32>, vector<8x32xf32>, vector<16x32xf32> -> vector<16x32xf32>
    %164 = arith.addf %143, %163 : vector<16x32xf32>
    %165 = vector.extract_strided_slice %140 {offsets = [0, 0, 8], sizes = [2, 8, 8], strides = [1, 1, 1]} : vector<2x8x32xf32> to vector<2x8x8xf32>
    %166 = vector.extract_strided_slice %141 {offsets = [0, 0, 8], sizes = [2, 16, 8], strides = [1, 1, 1]} : vector<2x16x32xf32> to vector<2x16x8xf32>
    "tpu.trace_start"() <{level = 10 : i32, message = "bqd,bkd->bqk"}> : () -> ()
    %cst_69 = arith.constant dense<0.000000e+00> : vector<2x8x16xf32>
    %167 = tpu.matmul %165, %166, %cst_69 {dimension_numbers = #tpu.dot_dimension_numbers<[2], [2], [1], [1], [0, 0, 0, 1, 1, 1], [0], [0]>} : vector<2x8x8xf32>, vector<2x16x8xf32>, vector<2x8x16xf32> -> vector<2x8x16xf32>
    "tpu.trace_stop"() : () -> ()
    %cst_70 = arith.constant 0.353553385 : f32
    %168 = vector.broadcast %cst_70 : f32 to vector<2x8x16xf32>
    %169 = arith.mulf %167, %168 : vector<2x8x16xf32>
    %cst_71 = arith.constant dense<0xFF800000> : vector<2x8xf32>
    %170 = vector.multi_reduction <maximumf>, %169, %cst_71 [2] : vector<2x8x16xf32> to vector<2x8xf32>
    %171 = vector.shape_cast %170 : vector<2x8xf32> to vector<2x8x1xf32>
    %172 = vector.broadcast %171 : vector<2x8x1xf32> to vector<2x8x16xf32>
    %173 = arith.subf %169, %172 : vector<2x8x16xf32>
    %174 = math.exp %173 : vector<2x8x16xf32>
    %cst_72 = arith.constant dense<0.000000e+00> : vector<2x8xf32>
    %175 = vector.multi_reduction <add>, %174, %cst_72 [2] : vector<2x8x16xf32> to vector<2x8xf32>
    %176 = vector.shape_cast %175 : vector<2x8xf32> to vector<2x8x1xf32>
    %177 = tpu.reciprocal %176 {approx = true} : vector<2x8x1xf32> -> vector<2x8x1xf32>
    %178 = vector.broadcast %177 : vector<2x8x1xf32> to vector<2x8x16xf32>
    %179 = arith.mulf %174, %178 : vector<2x8x16xf32>
    %180 = vector.extract_strided_slice %142 {offsets = [0, 0, 8], sizes = [2, 16, 8], strides = [1, 1, 1]} : vector<2x16x32xf32> to vector<2x16x8xf32>
    "tpu.trace_start"() <{level = 10 : i32, message = "bqk,bkd->bqd"}> : () -> ()
    %cst_73 = arith.constant dense<0.000000e+00> : vector<2x8x8xf32>
    %181 = tpu.matmul %179, %180, %cst_73 {dimension_numbers = #tpu.dot_dimension_numbers<[2], [1], [1], [2], [0, 0, 0, 1, 1, 2], [0], [0]>} : vector<2x8x16xf32>, vector<2x16x8xf32>, vector<2x8x8xf32> -> vector<2x8x8xf32>
    "tpu.trace_stop"() : () -> ()
    %182 = vector.shape_cast %181 : vector<2x8x8xf32> to vector<16x8xf32>
    %c8_74 = arith.constant 8 : index
    %c0_75 = arith.constant 0 : index
    %183 = vector.load %arg10[%c8_74, %c0_75] : memref<32x32xf32, #tpu.memory_space<vmem>>, vector<8x32xf32>
    %cst_76 = arith.constant dense<0.000000e+00> : vector<16x32xf32>
    %184 = tpu.matmul %182, %183, %cst_76 {dimension_numbers = #tpu.dot_dimension_numbers<[1], [0], [0], [1], [0, 0, 1, 1], [], []>} : vector<16x8xf32>, vector<8x32xf32>, vector<16x32xf32> -> vector<16x32xf32>
    %185 = arith.addf %164, %184 : vector<16x32xf32>
    %186 = vector.extract_strided_slice %140 {offsets = [0, 0, 16], sizes = [2, 8, 8], strides = [1, 1, 1]} : vector<2x8x32xf32> to vector<2x8x8xf32>
    %187 = vector.extract_strided_slice %141 {offsets = [0, 0, 16], sizes = [2, 16, 8], strides = [1, 1, 1]} : vector<2x16x32xf32> to vector<2x16x8xf32>
    "tpu.trace_start"() <{level = 10 : i32, message = "bqd,bkd->bqk"}> : () -> ()
    %cst_77 = arith.constant dense<0.000000e+00> : vector<2x8x16xf32>
    %188 = tpu.matmul %186, %187, %cst_77 {dimension_numbers = #tpu.dot_dimension_numbers<[2], [2], [1], [1], [0, 0, 0, 1, 1, 1], [0], [0]>} : vector<2x8x8xf32>, vector<2x16x8xf32>, vector<2x8x16xf32> -> vector<2x8x16xf32>
    "tpu.trace_stop"() : () -> ()
    %cst_78 = arith.constant 0.353553385 : f32
    %189 = vector.broadcast %cst_78 : f32 to vector<2x8x16xf32>
    %190 = arith.mulf %188, %189 : vector<2x8x16xf32>
    %cst_79 = arith.constant dense<0xFF800000> : vector<2x8xf32>
    %191 = vector.multi_reduction <maximumf>, %190, %cst_79 [2] : vector<2x8x16xf32> to vector<2x8xf32>
    %192 = vector.shape_cast %191 : vector<2x8xf32> to vector<2x8x1xf32>
    %193 = vector.broadcast %192 : vector<2x8x1xf32> to vector<2x8x16xf32>
    %194 = arith.subf %190, %193 : vector<2x8x16xf32>
    %195 = math.exp %194 : vector<2x8x16xf32>
    %cst_80 = arith.constant dense<0.000000e+00> : vector<2x8xf32>
    %196 = vector.multi_reduction <add>, %195, %cst_80 [2] : vector<2x8x16xf32> to vector<2x8xf32>
    %197 = vector.shape_cast %196 : vector<2x8xf32> to vector<2x8x1xf32>
    %198 = tpu.reciprocal %197 {approx = true} : vector<2x8x1xf32> -> vector<2x8x1xf32>
    %199 = vector.broadcast %198 : vector<2x8x1xf32> to vector<2x8x16xf32>
    %200 = arith.mulf %195, %199 : vector<2x8x16xf32>
    %201 = vector.extract_strided_slice %142 {offsets = [0, 0, 16], sizes = [2, 16, 8], strides = [1, 1, 1]} : vector<2x16x32xf32> to vector<2x16x8xf32>
    "tpu.trace_start"() <{level = 10 : i32, message = "bqk,bkd->bqd"}> : () -> ()
    %cst_81 = arith.constant dense<0.000000e+00> : vector<2x8x8xf32>
    %202 = tpu.matmul %200, %201, %cst_81 {dimension_numbers = #tpu.dot_dimension_numbers<[2], [1], [1], [2], [0, 0, 0, 1, 1, 2], [0], [0]>} : vector<2x8x16xf32>, vector<2x16x8xf32>, vector<2x8x8xf32> -> vector<2x8x8xf32>
    "tpu.trace_stop"() : () -> ()
    %203 = vector.shape_cast %202 : vector<2x8x8xf32> to vector<16x8xf32>
    %c16_82 = arith.constant 16 : index
    %c0_83 = arith.constant 0 : index
    %204 = vector.load %arg10[%c16_82, %c0_83] : memref<32x32xf32, #tpu.memory_space<vmem>>, vector<8x32xf32>
    %cst_84 = arith.constant dense<0.000000e+00> : vector<16x32xf32>
    %205 = tpu.matmul %203, %204, %cst_84 {dimension_numbers = #tpu.dot_dimension_numbers<[1], [0], [0], [1], [0, 0, 1, 1], [], []>} : vector<16x8xf32>, vector<8x32xf32>, vector<16x32xf32> -> vector<16x32xf32>
    %206 = arith.addf %185, %205 : vector<16x32xf32>
    %207 = vector.extract_strided_slice %140 {offsets = [0, 0, 24], sizes = [2, 8, 8], strides = [1, 1, 1]} : vector<2x8x32xf32> to vector<2x8x8xf32>
    %208 = vector.extract_strided_slice %141 {offsets = [0, 0, 24], sizes = [2, 16, 8], strides = [1, 1, 1]} : vector<2x16x32xf32> to vector<2x16x8xf32>
    "tpu.trace_start"() <{level = 10 : i32, message = "bqd,bkd->bqk"}> : () -> ()
    %cst_85 = arith.constant dense<0.000000e+00> : vector<2x8x16xf32>
    %209 = tpu.matmul %207, %208, %cst_85 {dimension_numbers = #tpu.dot_dimension_numbers<[2], [2], [1], [1], [0, 0, 0, 1, 1, 1], [0], [0]>} : vector<2x8x8xf32>, vector<2x16x8xf32>, vector<2x8x16xf32> -> vector<2x8x16xf32>
    "tpu.trace_stop"() : () -> ()
    %cst_86 = arith.constant 0.353553385 : f32
    %210 = vector.broadcast %cst_86 : f32 to vector<2x8x16xf32>
    %211 = arith.mulf %209, %210 : vector<2x8x16xf32>
    %cst_87 = arith.constant dense<0xFF800000> : vector<2x8xf32>
    %212 = vector.multi_reduction <maximumf>, %211, %cst_87 [2] : vector<2x8x16xf32> to vector<2x8xf32>
    %213 = vector.shape_cast %212 : vector<2x8xf32> to vector<2x8x1xf32>
    %214 = vector.broadcast %213 : vector<2x8x1xf32> to vector<2x8x16xf32>
    %215 = arith.subf %211, %214 : vector<2x8x16xf32>
    %216 = math.exp %215 : vector<2x8x16xf32>
    %cst_88 = arith.constant dense<0.000000e+00> : vector<2x8xf32>
    %217 = vector.multi_reduction <add>, %216, %cst_88 [2] : vector<2x8x16xf32> to vector<2x8xf32>
    %218 = vector.shape_cast %217 : vector<2x8xf32> to vector<2x8x1xf32>
    %219 = tpu.reciprocal %218 {approx = true} : vector<2x8x1xf32> -> vector<2x8x1xf32>
    %220 = vector.broadcast %219 : vector<2x8x1xf32> to vector<2x8x16xf32>
    %221 = arith.mulf %216, %220 : vector<2x8x16xf32>
    %222 = vector.extract_strided_slice %142 {offsets = [0, 0, 24], sizes = [2, 16, 8], strides = [1, 1, 1]} : vector<2x16x32xf32> to vector<2x16x8xf32>
    "tpu.trace_start"() <{level = 10 : i32, message = "bqk,bkd->bqd"}> : () -> ()
    %cst_89 = arith.constant dense<0.000000e+00> : vector<2x8x8xf32>
    %223 = tpu.matmul %221, %222, %cst_89 {dimension_numbers = #tpu.dot_dimension_numbers<[2], [1], [1], [2], [0, 0, 0, 1, 1, 2], [0], [0]>} : vector<2x8x16xf32>, vector<2x16x8xf32>, vector<2x8x8xf32> -> vector<2x8x8xf32>
    "tpu.trace_stop"() : () -> ()
    %224 = vector.shape_cast %223 : vector<2x8x8xf32> to vector<16x8xf32>
    %c24_90 = arith.constant 24 : index
    %c0_91 = arith.constant 0 : index
    %225 = vector.load %arg10[%c24_90, %c0_91] : memref<32x32xf32, #tpu.memory_space<vmem>>, vector<8x32xf32>
    %cst_92 = arith.constant dense<0.000000e+00> : vector<16x32xf32>
    %226 = tpu.matmul %224, %225, %cst_92 {dimension_numbers = #tpu.dot_dimension_numbers<[1], [0], [0], [1], [0, 0, 1, 1], [], []>} : vector<16x8xf32>, vector<8x32xf32>, vector<16x32xf32> -> vector<16x32xf32>
    %227 = arith.addf %206, %226 : vector<16x32xf32>
    %c0_93 = arith.constant 0 : index
    %c0_94 = arith.constant 0 : index
    %228 = vector.load %arg11[%c0_93, %c0_94] : memref<1x32xf32, #tpu.memory_space<vmem>>, vector<1x32xf32>
    %229 = vector.broadcast %228 : vector<1x32xf32> to vector<16x32xf32>
    %230 = arith.addf %227, %229 : vector<16x32xf32>
    %231 = arith.addf %127, %230 : vector<16x32xf32>
    %cst_95 = arith.constant dense<0.000000e+00> : vector<16xf32>
    %232 = vector.multi_reduction <add>, %231, %cst_95 [1] : vector<16x32xf32> to vector<16xf32>
    %233 = vector.shape_cast %232 : vector<16xf32> to vector<16x1xf32>
    %cst_96 = arith.constant 3.200000e+01 : f32
    %234 = vector.broadcast %cst_96 : f32 to vector<16x1xf32>
    %235 = arith.divf %233, %234 : vector<16x1xf32>
    %236 = vector.broadcast %235 : vector<16x1xf32> to vector<16x32xf32>
    %237 = arith.subf %231, %236 : vector<16x32xf32>
    %238 = arith.mulf %237, %237 : vector<16x32xf32>
    %cst_97 = arith.constant dense<0.000000e+00> : vector<16xf32>
    %239 = vector.multi_reduction <add>, %238, %cst_97 [1] : vector<16x32xf32> to vector<16xf32>
    %240 = vector.shape_cast %239 : vector<16xf32> to vector<16x1xf32>
    %cst_98 = arith.constant 3.200000e+01 : f32
    %241 = vector.broadcast %cst_98 : f32 to vector<16x1xf32>
    %242 = arith.divf %240, %241 : vector<16x1xf32>
    %243 = vector.broadcast %235 : vector<16x1xf32> to vector<16x32xf32>
    %244 = arith.subf %231, %243 : vector<16x32xf32>
    %cst_99 = arith.constant 9.99999974E-6 : f32
    %245 = vector.broadcast %cst_99 : f32 to vector<16x1xf32>
    %246 = arith.addf %242, %245 : vector<16x1xf32>
    %247 = math.rsqrt %246 : vector<16x1xf32>
    %248 = vector.broadcast %247 : vector<16x1xf32> to vector<16x32xf32>
    %249 = arith.mulf %244, %248 : vector<16x32xf32>
    %c0_100 = arith.constant 0 : index
    %c0_101 = arith.constant 0 : index
    %250 = vector.load %arg18[%c0_100, %c0_101] : memref<1x32xf32, #tpu.memory_space<vmem>>, vector<1x32xf32>
    %251 = vector.broadcast %250 : vector<1x32xf32> to vector<16x32xf32>
    %252 = arith.mulf %249, %251 : vector<16x32xf32>
    %c0_102 = arith.constant 0 : index
    %c0_103 = arith.constant 0 : index
    %253 = vector.load %arg19[%c0_102, %c0_103] : memref<1x32xf32, #tpu.memory_space<vmem>>, vector<1x32xf32>
    %254 = vector.broadcast %253 : vector<1x32xf32> to vector<16x32xf32>
    %255 = arith.addf %252, %254 : vector<16x32xf32>
    %c0_104 = arith.constant 0 : index
    %c0_105 = arith.constant 0 : index
    %256 = vector.load %arg12[%c0_104, %c0_105] : memref<32x64xf32, #tpu.memory_space<vmem>>, vector<32x64xf32>
    %cst_106 = arith.constant dense<0.000000e+00> : vector<16x64xf32>
    %257 = tpu.matmul %255, %256, %cst_106 {dimension_numbers = #tpu.dot_dimension_numbers<[1], [0], [0], [1], [0, 0, 1, 1], [], []>} : vector<16x32xf32>, vector<32x64xf32>, vector<16x64xf32> -> vector<16x64xf32>
    %c0_107 = arith.constant 0 : index
    %c0_108 = arith.constant 0 : index
    %258 = vector.load %arg13[%c0_107, %c0_108] : memref<1x64xf32, #tpu.memory_space<vmem>>, vector<1x64xf32>
    %259 = vector.broadcast %258 : vector<1x64xf32> to vector<16x64xf32>
    %260 = arith.addf %257, %259 : vector<16x64xf32>
    %cst_109 = arith.constant 0.000000e+00 : f32
    %261 = vector.broadcast %cst_109 : f32 to vector<16x64xf32>
    %262 = arith.maximumf %260, %261 : vector<16x64xf32>
    %c0_110 = arith.constant 0 : index
    %c0_111 = arith.constant 0 : index
    %263 = vector.load %arg14[%c0_110, %c0_111] : memref<64x32xf32, #tpu.memory_space<vmem>>, vector<64x32xf32>
    %cst_112 = arith.constant dense<0.000000e+00> : vector<16x32xf32>
    %264 = tpu.matmul %262, %263, %cst_112 {dimension_numbers = #tpu.dot_dimension_numbers<[1], [0], [0], [1], [0, 0, 1, 1], [], []>} : vector<16x64xf32>, vector<64x32xf32>, vector<16x32xf32> -> vector<16x32xf32>
    %c0_113 = arith.constant 0 : index
    %c0_114 = arith.constant 0 : index
    %265 = vector.load %arg15[%c0_113, %c0_114] : memref<1x32xf32, #tpu.memory_space<vmem>>, vector<1x32xf32>
    %266 = vector.broadcast %265 : vector<1x32xf32> to vector<16x32xf32>
    %267 = arith.addf %264, %266 : vector<16x32xf32>
    %268 = arith.addf %255, %267 : vector<16x32xf32>
    %cst_115 = arith.constant dense<0.000000e+00> : vector<16xf32>
    %269 = vector.multi_reduction <add>, %268, %cst_115 [1] : vector<16x32xf32> to vector<16xf32>
    %270 = vector.shape_cast %269 : vector<16xf32> to vector<16x1xf32>
    %cst_116 = arith.constant 3.200000e+01 : f32
    %271 = vector.broadcast %cst_116 : f32 to vector<16x1xf32>
    %272 = arith.divf %270, %271 : vector<16x1xf32>
    %273 = vector.broadcast %272 : vector<16x1xf32> to vector<16x32xf32>
    %274 = arith.subf %268, %273 : vector<16x32xf32>
    %275 = arith.mulf %274, %274 : vector<16x32xf32>
    %cst_117 = arith.constant dense<0.000000e+00> : vector<16xf32>
    %276 = vector.multi_reduction <add>, %275, %cst_117 [1] : vector<16x32xf32> to vector<16xf32>
    %277 = vector.shape_cast %276 : vector<16xf32> to vector<16x1xf32>
    %cst_118 = arith.constant 3.200000e+01 : f32
    %278 = vector.broadcast %cst_118 : f32 to vector<16x1xf32>
    %279 = arith.divf %277, %278 : vector<16x1xf32>
    %280 = vector.broadcast %272 : vector<16x1xf32> to vector<16x32xf32>
    %281 = arith.subf %268, %280 : vector<16x32xf32>
    %cst_119 = arith.constant 9.99999974E-6 : f32
    %282 = vector.broadcast %cst_119 : f32 to vector<16x1xf32>
    %283 = arith.addf %279, %282 : vector<16x1xf32>
    %284 = math.rsqrt %283 : vector<16x1xf32>
    %285 = vector.broadcast %284 : vector<16x1xf32> to vector<16x32xf32>
    %286 = arith.mulf %281, %285 : vector<16x32xf32>
    %c0_120 = arith.constant 0 : index
    %c0_121 = arith.constant 0 : index
    %287 = vector.load %arg20[%c0_120, %c0_121] : memref<1x32xf32, #tpu.memory_space<vmem>>, vector<1x32xf32>
    %288 = vector.broadcast %287 : vector<1x32xf32> to vector<16x32xf32>
    %289 = arith.mulf %286, %288 : vector<16x32xf32>
    %c0_122 = arith.constant 0 : index
    %c0_123 = arith.constant 0 : index
    %290 = vector.load %arg21[%c0_122, %c0_123] : memref<1x32xf32, #tpu.memory_space<vmem>>, vector<1x32xf32>
    %291 = vector.broadcast %290 : vector<1x32xf32> to vector<16x32xf32>
    %292 = arith.addf %289, %291 : vector<16x32xf32>
    %293 = vector.shape_cast %292 : vector<16x32xf32> to vector<2x8x32xf32>
    %c0_124 = arith.constant 0 : index
    %c0_125 = arith.constant 0 : index
    %c0_126 = arith.constant 0 : index
    %294 = vector.load %arg22[%c0_124, %c0_125, %c0_126] : memref<2x8x32xf32, #tpu.memory_space<vmem>>, vector<2x8x32xf32>
    tpu.vector_store %arg22[%c0_124, %c0_125, %c0_126], %293 {strides = array<i32>} : memref<2x8x32xf32, #tpu.memory_space<vmem>>, vector<2x8x32xf32>,
    return
  }
}

module attributes {stable_mosaic.version = 11 : i64} {
  func.func @_layernorm_kernel(%arg0: memref<2x8x32xf32, #tpu.memory_space<vmem>>, %arg1: memref<1x32xf32, #tpu.memory_space<vmem>>, %arg2: memref<1x32xf32, #tpu.memory_space<vmem>>, %arg3: memref<2x8x32xf32, #tpu.memory_space<vmem>>) attributes {dimension_semantics = [], scalar_prefetch = 0 : i64, scratch_operands = 0 : i64, tpu.core_type = #tpu.core_type<tc>} {
    %c0 = arith.constant 0 : index
    %c0_0 = arith.constant 0 : index
    %c0_1 = arith.constant 0 : index
    %0 = vector.load %arg0[%c0, %c0_0, %c0_1] : memref<2x8x32xf32, #tpu.memory_space<vmem>>, vector<2x8x32xf32>
    %1 = vector.shape_cast %0 : vector<2x8x32xf32> to vector<16x32xf32>
    %cst = arith.constant dense<0.000000e+00> : vector<16xf32>
    %2 = vector.multi_reduction <add>, %1, %cst [1] : vector<16x32xf32> to vector<16xf32>
    %3 = vector.shape_cast %2 : vector<16xf32> to vector<16x1xf32>
    %cst_2 = arith.constant 3.200000e+01 : f32
    %4 = vector.broadcast %cst_2 : f32 to vector<16x1xf32>
    %5 = arith.divf %3, %4 : vector<16x1xf32>
    %6 = vector.broadcast %5 : vector<16x1xf32> to vector<16x32xf32>
    %7 = arith.subf %1, %6 : vector<16x32xf32>
    %8 = arith.mulf %7, %7 : vector<16x32xf32>
    %cst_3 = arith.constant dense<0.000000e+00> : vector<16xf32>
    %9 = vector.multi_reduction <add>, %8, %cst_3 [1] : vector<16x32xf32> to vector<16xf32>
    %10 = vector.shape_cast %9 : vector<16xf32> to vector<16x1xf32>
    %cst_4 = arith.constant 3.200000e+01 : f32
    %11 = vector.broadcast %cst_4 : f32 to vector<16x1xf32>
    %12 = arith.divf %10, %11 : vector<16x1xf32>
    %13 = vector.broadcast %5 : vector<16x1xf32> to vector<16x32xf32>
    %14 = arith.subf %1, %13 : vector<16x32xf32>
    %cst_5 = arith.constant 9.99999974E-6 : f32
    %15 = vector.broadcast %cst_5 : f32 to vector<16x1xf32>
    %16 = arith.addf %12, %15 : vector<16x1xf32>
    %17 = math.rsqrt %16 : vector<16x1xf32>
    %18 = vector.broadcast %17 : vector<16x1xf32> to vector<16x32xf32>
    %19 = arith.mulf %14, %18 : vector<16x32xf32>
    %c0_6 = arith.constant 0 : index
    %c0_7 = arith.constant 0 : index
    %20 = vector.load %arg1[%c0_6, %c0_7] : memref<1x32xf32, #tpu.memory_space<vmem>>, vector<1x32xf32>
    %21 = vector.broadcast %20 : vector<1x32xf32> to vector<16x32xf32>
    %22 = arith.mulf %19, %21 : vector<16x32xf32>
    %c0_8 = arith.constant 0 : index
    %c0_9 = arith.constant 0 : index
    %23 = vector.load %arg2[%c0_8, %c0_9] : memref<1x32xf32, #tpu.memory_space<vmem>>, vector<1x32xf32>
    %24 = vector.broadcast %23 : vector<1x32xf32> to vector<16x32xf32>
    %25 = arith.addf %22, %24 : vector<16x32xf32>
    %26 = vector.shape_cast %25 : vector<16x32xf32> to vector<2x8x32xf32>
    %c0_10 = arith.constant 0 : index
    %c0_11 = arith.constant 0 : index
    %c0_12 = arith.constant 0 : index
    %27 = vector.load %arg3[%c0_10, %c0_11, %c0_12] : memref<2x8x32xf32, #tpu.memory_space<vmem>>, vector<2x8x32xf32>
    tpu.vector_store %arg3[%c0_10, %c0_11, %c0_12], %26 {strides = array<i32>} : memref<2x8x32xf32, #tpu.memory_space<vmem>>, vector<2x8x32xf32>,
    return
  }
}

module attributes {stable_mosaic.version = 11 : i64} {
  func.func @_decoder_layer_kernel(%arg0: memref<2x8x32xf32, #tpu.memory_space<vmem>>, %arg1: memref<2x16x32xf32, #tpu.memory_space<vmem>>, %arg2: memref<32x96xf32, #tpu.memory_space<vmem>>, %arg3: memref<1x96xf32, #tpu.memory_space<vmem>>, %arg4: memref<32x32xf32, #tpu.memory_space<vmem>>, %arg5: memref<1x32xf32, #tpu.memory_space<vmem>>, %arg6: memref<32x32xf32, #tpu.memory_space<vmem>>, %arg7: memref<1x32xf32, #tpu.memory_space<vmem>>, %arg8: memref<32x64xf32, #tpu.memory_space<vmem>>, %arg9: memref<1x64xf32, #tpu.memory_space<vmem>>, %arg10: memref<32x32xf32, #tpu.memory_space<vmem>>, %arg11: memref<1x32xf32, #tpu.memory_space<vmem>>, %arg12: memref<32x64xf32, #tpu.memory_space<vmem>>, %arg13: memref<1x64xf32, #tpu.memory_space<vmem>>, %arg14: memref<64x32xf32, #tpu.memory_space<vmem>>, %arg15: memref<1x32xf32, #tpu.memory_space<vmem>>, %arg16: memref<1x32xf32, #tpu.memory_space<vmem>>, %arg17: memref<1x32xf32, #tpu.memory_space<vmem>>, %arg18: memref<1x32xf32, #tpu.memory_space<vmem>>, %arg19: memref<1x32xf32, #tpu.memory_space<vmem>>, %arg20: memref<1x32xf32, #tpu.memory_space<vmem>>, %arg21: memref<1x32xf32, #tpu.memory_space<vmem>>, %arg22: memref<2x8x32xf32, #tpu.memory_space<vmem>>) attributes {dimension_semantics = [], scalar_prefetch = 0 : i64, scratch_operands = 0 : i64, tpu.core_type = #tpu.core_type<tc>} {
    %c0 = arith.constant 0 : index
    %c0_0 = arith.constant 0 : index
    %c0_1 = arith.constant 0 : index
    %0 = vector.load %arg0[%c0, %c0_0, %c0_1] : memref<2x8x32xf32, #tpu.memory_space<vmem>>, vector<2x8x32xf32>
    %1 = vector.shape_cast %0 : vector<2x8x32xf32> to vector<16x32xf32>
    %c0_2 = arith.constant 0 : index
    %c0_3 = arith.constant 0 : index
    %c0_4 = arith.constant 0 : index
    %2 = vector.load %arg1[%c0_2, %c0_3, %c0_4] : memref<2x16x32xf32, #tpu.memory_space<vmem>>, vector<2x16x32xf32>
    %3 = vector.shape_cast %2 : vector<2x16x32xf32> to vector<32x32xf32>
    %c0_5 = arith.constant 0 : index
    %c0_6 = arith.constant 0 : index
    %4 = vector.load %arg2[%c0_5, %c0_6] : memref<32x96xf32, #tpu.memory_space<vmem>>, vector<32x96xf32>
    %cst = arith.constant dense<0.000000e+00> : vector<16x96xf32>
    %5 = tpu.matmul %1, %4, %cst {dimension_numbers = #tpu.dot_dimension_numbers<[1], [0], [0], [1], [0, 0, 1, 1], [], []>} : vector<16x32xf32>, vector<32x96xf32>, vector<16x96xf32> -> vector<16x96xf32>
    %c0_7 = arith.constant 0 : index
    %c0_8 = arith.constant 0 : index
    %6 = vector.load %arg3[%c0_7, %c0_8] : memref<1x96xf32, #tpu.memory_space<vmem>>, vector<1x96xf32>
    %7 = vector.broadcast %6 : vector<1x96xf32> to vector<16x96xf32>
    %8 = arith.addf %5, %7 : vector<16x96xf32>
    %9 = vector.extract_strided_slice %8 {offsets = [0, 0], sizes = [16, 32], strides = [1, 1]} : vector<16x96xf32> to vector<16x32xf32>
    %10 = vector.extract_strided_slice %8 {offsets = [0, 32], sizes = [16, 32], strides = [1, 1]} : vector<16x96xf32> to vector<16x32xf32>
    %11 = vector.extract_strided_slice %8 {offsets = [0, 64], sizes = [16, 32], strides = [1, 1]} : vector<16x96xf32> to vector<16x32xf32>
    %12 = vector.shape_cast %9 : vector<16x32xf32> to vector<2x8x32xf32>
    %13 = vector.shape_cast %10 : vector<16x32xf32> to vector<2x8x32xf32>
    %14 = vector.shape_cast %11 : vector<16x32xf32> to vector<2x8x32xf32>
    %cst_9 = arith.constant 0.000000e+00 : f32
    %15 = vector.broadcast %cst_9 : f32 to vector<16x32xf32>
    %16 = vector.extract_strided_slice %12 {offsets = [0, 0, 0], sizes = [2, 8, 8], strides = [1, 1, 1]} : vector<2x8x32xf32> to vector<2x8x8xf32>
    %17 = vector.extract_strided_slice %13 {offsets = [0, 0, 0], sizes = [2, 8, 8], strides = [1, 1, 1]} : vector<2x8x32xf32> to vector<2x8x8xf32>
    "tpu.trace_start"() <{level = 10 : i32, message = "bqd,bkd->bqk"}> : () -> ()
    %cst_10 = arith.constant dense<0.000000e+00> : vector<2x8x8xf32>
    %18 = tpu.matmul %16, %17, %cst_10 {dimension_numbers = #tpu.dot_dimension_numbers<[2], [2], [1], [1], [0, 0, 0, 1, 1, 1], [0], [0]>} : vector<2x8x8xf32>, vector<2x8x8xf32>, vector<2x8x8xf32> -> vector<2x8x8xf32>
    "tpu.trace_stop"() : () -> ()
    %cst_11 = arith.constant 0.353553385 : f32
    %19 = vector.broadcast %cst_11 : f32 to vector<2x8x8xf32>
    %20 = arith.mulf %18, %19 : vector<2x8x8xf32>
    %cst_12 = arith.constant dense<0xFF800000> : vector<2x8xf32>
    %21 = vector.multi_reduction <maximumf>, %20, %cst_12 [2] : vector<2x8x8xf32> to vector<2x8xf32>
    %22 = vector.shape_cast %21 : vector<2x8xf32> to vector<2x8x1xf32>
    %23 = vector.broadcast %22 : vector<2x8x1xf32> to vector<2x8x8xf32>
    %24 = arith.subf %20, %23 : vector<2x8x8xf32>
    %25 = math.exp %24 : vector<2x8x8xf32>
    %cst_13 = arith.constant dense<0.000000e+00> : vector<2x8xf32>
    %26 = vector.multi_reduction <add>, %25, %cst_13 [2] : vector<2x8x8xf32> to vector<2x8xf32>
    %27 = vector.shape_cast %26 : vector<2x8xf32> to vector<2x8x1xf32>
    %28 = tpu.reciprocal %27 {approx = true} : vector<2x8x1xf32> -> vector<2x8x1xf32>
    %29 = vector.broadcast %28 : vector<2x8x1xf32> to vector<2x8x8xf32>
    %30 = arith.mulf %25, %29 : vector<2x8x8xf32>
    %31 = vector.extract_strided_slice %14 {offsets = [0, 0, 0], sizes = [2, 8, 8], strides = [1, 1, 1]} : vector<2x8x32xf32> to vector<2x8x8xf32>
    "tpu.trace_start"() <{level = 10 : i32, message = "bqk,bkd->bqd"}> : () -> ()
    %cst_14 = arith.constant dense<0.000000e+00> : vector<2x8x8xf32>
    %32 = tpu.matmul %30, %31, %cst_14 {dimension_numbers = #tpu.dot_dimension_numbers<[2], [1], [1], [2], [0, 0, 0, 1, 1, 2], [0], [0]>} : vector<2x8x8xf32>, vector<2x8x8xf32>, vector<2x8x8xf32> -> vector<2x8x8xf32>
    "tpu.trace_stop"() : () -> ()
    %33 = vector.shape_cast %32 : vector<2x8x8xf32> to vector<16x8xf32>
    %c0_15 = arith.constant 0 : index
    %c0_16 = arith.constant 0 : index
    %34 = vector.load %arg4[%c0_15, %c0_16] : memref<32x32xf32, #tpu.memory_space<vmem>>, vector<8x32xf32>
    %cst_17 = arith.constant dense<0.000000e+00> : vector<16x32xf32>
    %35 = tpu.matmul %33, %34, %cst_17 {dimension_numbers = #tpu.dot_dimension_numbers<[1], [0], [0], [1], [0, 0, 1, 1], [], []>} : vector<16x8xf32>, vector<8x32xf32>, vector<16x32xf32> -> vector<16x32xf32>
    %36 = arith.addf %15, %35 : vector<16x32xf32>
    %37 = vector.extract_strided_slice %12 {offsets = [0, 0, 8], sizes = [2, 8, 8], strides = [1, 1, 1]} : vector<2x8x32xf32> to vector<2x8x8xf32>
    %38 = vector.extract_strided_slice %13 {offsets = [0, 0, 8], sizes = [2, 8, 8], strides = [1, 1, 1]} : vector<2x8x32xf32> to vector<2x8x8xf32>
    "tpu.trace_start"() <{level = 10 : i32, message = "bqd,bkd->bqk"}> : () -> ()
    %cst_18 = arith.constant dense<0.000000e+00> : vector<2x8x8xf32>
    %39 = tpu.matmul %37, %38, %cst_18 {dimension_numbers = #tpu.dot_dimension_numbers<[2], [2], [1], [1], [0, 0, 0, 1, 1, 1], [0], [0]>} : vector<2x8x8xf32>, vector<2x8x8xf32>, vector<2x8x8xf32> -> vector<2x8x8xf32>
    "tpu.trace_stop"() : () -> ()
    %cst_19 = arith.constant 0.353553385 : f32
    %40 = vector.broadcast %cst_19 : f32 to vector<2x8x8xf32>
    %41 = arith.mulf %39, %40 : vector<2x8x8xf32>
    %cst_20 = arith.constant dense<0xFF800000> : vector<2x8xf32>
    %42 = vector.multi_reduction <maximumf>, %41, %cst_20 [2] : vector<2x8x8xf32> to vector<2x8xf32>
    %43 = vector.shape_cast %42 : vector<2x8xf32> to vector<2x8x1xf32>
    %44 = vector.broadcast %43 : vector<2x8x1xf32> to vector<2x8x8xf32>
    %45 = arith.subf %41, %44 : vector<2x8x8xf32>
    %46 = math.exp %45 : vector<2x8x8xf32>
    %cst_21 = arith.constant dense<0.000000e+00> : vector<2x8xf32>
    %47 = vector.multi_reduction <add>, %46, %cst_21 [2] : vector<2x8x8xf32> to vector<2x8xf32>
    %48 = vector.shape_cast %47 : vector<2x8xf32> to vector<2x8x1xf32>
    %49 = tpu.reciprocal %48 {approx = true} : vector<2x8x1xf32> -> vector<2x8x1xf32>
    %50 = vector.broadcast %49 : vector<2x8x1xf32> to vector<2x8x8xf32>
    %51 = arith.mulf %46, %50 : vector<2x8x8xf32>
    %52 = vector.extract_strided_slice %14 {offsets = [0, 0, 8], sizes = [2, 8, 8], strides = [1, 1, 1]} : vector<2x8x32xf32> to vector<2x8x8xf32>
    "tpu.trace_start"() <{level = 10 : i32, message = "bqk,bkd->bqd"}> : () -> ()
    %cst_22 = arith.constant dense<0.000000e+00> : vector<2x8x8xf32>
    %53 = tpu.matmul %51, %52, %cst_22 {dimension_numbers = #tpu.dot_dimension_numbers<[2], [1], [1], [2], [0, 0, 0, 1, 1, 2], [0], [0]>} : vector<2x8x8xf32>, vector<2x8x8xf32>, vector<2x8x8xf32> -> vector<2x8x8xf32>
    "tpu.trace_stop"() : () -> ()
    %54 = vector.shape_cast %53 : vector<2x8x8xf32> to vector<16x8xf32>
    %c8 = arith.constant 8 : index
    %c0_23 = arith.constant 0 : index
    %55 = vector.load %arg4[%c8, %c0_23] : memref<32x32xf32, #tpu.memory_space<vmem>>, vector<8x32xf32>
    %cst_24 = arith.constant dense<0.000000e+00> : vector<16x32xf32>
    %56 = tpu.matmul %54, %55, %cst_24 {dimension_numbers = #tpu.dot_dimension_numbers<[1], [0], [0], [1], [0, 0, 1, 1], [], []>} : vector<16x8xf32>, vector<8x32xf32>, vector<16x32xf32> -> vector<16x32xf32>
    %57 = arith.addf %36, %56 : vector<16x32xf32>
    %58 = vector.extract_strided_slice %12 {offsets = [0, 0, 16], sizes = [2, 8, 8], strides = [1, 1, 1]} : vector<2x8x32xf32> to vector<2x8x8xf32>
    %59 = vector.extract_strided_slice %13 {offsets = [0, 0, 16], sizes = [2, 8, 8], strides = [1, 1, 1]} : vector<2x8x32xf32> to vector<2x8x8xf32>
    "tpu.trace_start"() <{level = 10 : i32, message = "bqd,bkd->bqk"}> : () -> ()
    %cst_25 = arith.constant dense<0.000000e+00> : vector<2x8x8xf32>
    %60 = tpu.matmul %58, %59, %cst_25 {dimension_numbers = #tpu.dot_dimension_numbers<[2], [2], [1], [1], [0, 0, 0, 1, 1, 1], [0], [0]>} : vector<2x8x8xf32>, vector<2x8x8xf32>, vector<2x8x8xf32> -> vector<2x8x8xf32>
    "tpu.trace_stop"() : () -> ()
    %cst_26 = arith.constant 0.353553385 : f32
    %61 = vector.broadcast %cst_26 : f32 to vector<2x8x8xf32>
    %62 = arith.mulf %60, %61 : vector<2x8x8xf32>
    %cst_27 = arith.constant dense<0xFF800000> : vector<2x8xf32>
    %63 = vector.multi_reduction <maximumf>, %62, %cst_27 [2] : vector<2x8x8xf32> to vector<2x8xf32>
    %64 = vector.shape_cast %63 : vector<2x8xf32> to vector<2x8x1xf32>
    %65 = vector.broadcast %64 : vector<2x8x1xf32> to vector<2x8x8xf32>
    %66 = arith.subf %62, %65 : vector<2x8x8xf32>
    %67 = math.exp %66 : vector<2x8x8xf32>
    %cst_28 = arith.constant dense<0.000000e+00> : vector<2x8xf32>
    %68 = vector.multi_reduction <add>, %67, %cst_28 [2] : vector<2x8x8xf32> to vector<2x8xf32>
    %69 = vector.shape_cast %68 : vector<2x8xf32> to vector<2x8x1xf32>
    %70 = tpu.reciprocal %69 {approx = true} : vector<2x8x1xf32> -> vector<2x8x1xf32>
    %71 = vector.broadcast %70 : vector<2x8x1xf32> to vector<2x8x8xf32>
    %72 = arith.mulf %67, %71 : vector<2x8x8xf32>
    %73 = vector.extract_strided_slice %14 {offsets = [0, 0, 16], sizes = [2, 8, 8], strides = [1, 1, 1]} : vector<2x8x32xf32> to vector<2x8x8xf32>
    "tpu.trace_start"() <{level = 10 : i32, message = "bqk,bkd->bqd"}> : () -> ()
    %cst_29 = arith.constant dense<0.000000e+00> : vector<2x8x8xf32>
    %74 = tpu.matmul %72, %73, %cst_29 {dimension_numbers = #tpu.dot_dimension_numbers<[2], [1], [1], [2], [0, 0, 0, 1, 1, 2], [0], [0]>} : vector<2x8x8xf32>, vector<2x8x8xf32>, vector<2x8x8xf32> -> vector<2x8x8xf32>
    "tpu.trace_stop"() : () -> ()
    %75 = vector.shape_cast %74 : vector<2x8x8xf32> to vector<16x8xf32>
    %c16 = arith.constant 16 : index
    %c0_30 = arith.constant 0 : index
    %76 = vector.load %arg4[%c16, %c0_30] : memref<32x32xf32, #tpu.memory_space<vmem>>, vector<8x32xf32>
    %cst_31 = arith.constant dense<0.000000e+00> : vector<16x32xf32>
    %77 = tpu.matmul %75, %76, %cst_31 {dimension_numbers = #tpu.dot_dimension_numbers<[1], [0], [0], [1], [0, 0, 1, 1], [], []>} : vector<16x8xf32>, vector<8x32xf32>, vector<16x32xf32> -> vector<16x32xf32>
    %78 = arith.addf %57, %77 : vector<16x32xf32>
    %79 = vector.extract_strided_slice %12 {offsets = [0, 0, 24], sizes = [2, 8, 8], strides = [1, 1, 1]} : vector<2x8x32xf32> to vector<2x8x8xf32>
    %80 = vector.extract_strided_slice %13 {offsets = [0, 0, 24], sizes = [2, 8, 8], strides = [1, 1, 1]} : vector<2x8x32xf32> to vector<2x8x8xf32>
    "tpu.trace_start"() <{level = 10 : i32, message = "bqd,bkd->bqk"}> : () -> ()
    %cst_32 = arith.constant dense<0.000000e+00> : vector<2x8x8xf32>
    %81 = tpu.matmul %79, %80, %cst_32 {dimension_numbers = #tpu.dot_dimension_numbers<[2], [2], [1], [1], [0, 0, 0, 1, 1, 1], [0], [0]>} : vector<2x8x8xf32>, vector<2x8x8xf32>, vector<2x8x8xf32> -> vector<2x8x8xf32>
    "tpu.trace_stop"() : () -> ()
    %cst_33 = arith.constant 0.353553385 : f32
    %82 = vector.broadcast %cst_33 : f32 to vector<2x8x8xf32>
    %83 = arith.mulf %81, %82 : vector<2x8x8xf32>
    %cst_34 = arith.constant dense<0xFF800000> : vector<2x8xf32>
    %84 = vector.multi_reduction <maximumf>, %83, %cst_34 [2] : vector<2x8x8xf32> to vector<2x8xf32>
    %85 = vector.shape_cast %84 : vector<2x8xf32> to vector<2x8x1xf32>
    %86 = vector.broadcast %85 : vector<2x8x1xf32> to vector<2x8x8xf32>
    %87 = arith.subf %83, %86 : vector<2x8x8xf32>
    %88 = math.exp %87 : vector<2x8x8xf32>
    %cst_35 = arith.constant dense<0.000000e+00> : vector<2x8xf32>
    %89 = vector.multi_reduction <add>, %88, %cst_35 [2] : vector<2x8x8xf32> to vector<2x8xf32>
    %90 = vector.shape_cast %89 : vector<2x8xf32> to vector<2x8x1xf32>
    %91 = tpu.reciprocal %90 {approx = true} : vector<2x8x1xf32> -> vector<2x8x1xf32>
    %92 = vector.broadcast %91 : vector<2x8x1xf32> to vector<2x8x8xf32>
    %93 = arith.mulf %88, %92 : vector<2x8x8xf32>
    %94 = vector.extract_strided_slice %14 {offsets = [0, 0, 24], sizes = [2, 8, 8], strides = [1, 1, 1]} : vector<2x8x32xf32> to vector<2x8x8xf32>
    "tpu.trace_start"() <{level = 10 : i32, message = "bqk,bkd->bqd"}> : () -> ()
    %cst_36 = arith.constant dense<0.000000e+00> : vector<2x8x8xf32>
    %95 = tpu.matmul %93, %94, %cst_36 {dimension_numbers = #tpu.dot_dimension_numbers<[2], [1], [1], [2], [0, 0, 0, 1, 1, 2], [0], [0]>} : vector<2x8x8xf32>, vector<2x8x8xf32>, vector<2x8x8xf32> -> vector<2x8x8xf32>
    "tpu.trace_stop"() : () -> ()
    %96 = vector.shape_cast %95 : vector<2x8x8xf32> to vector<16x8xf32>
    %c24 = arith.constant 24 : index
    %c0_37 = arith.constant 0 : index
    %97 = vector.load %arg4[%c24, %c0_37] : memref<32x32xf32, #tpu.memory_space<vmem>>, vector<8x32xf32>
    %cst_38 = arith.constant dense<0.000000e+00> : vector<16x32xf32>
    %98 = tpu.matmul %96, %97, %cst_38 {dimension_numbers = #tpu.dot_dimension_numbers<[1], [0], [0], [1], [0, 0, 1, 1], [], []>} : vector<16x8xf32>, vector<8x32xf32>, vector<16x32xf32> -> vector<16x32xf32>
    %99 = arith.addf %78, %98 : vector<16x32xf32>
    %c0_39 = arith.constant 0 : index
    %c0_40 = arith.constant 0 : index
    %100 = vector.load %arg5[%c0_39, %c0_40] : memref<1x32xf32, #tpu.memory_space<vmem>>, vector<1x32xf32>
    %101 = vector.broadcast %100 : vector<1x32xf32> to vector<16x32xf32>
    %102 = arith.addf %99, %101 : vector<16x32xf32>
    %103 = arith.addf %1, %102 : vector<16x32xf32>
    %cst_41 = arith.constant dense<0.000000e+00> : vector<16xf32>
    %104 = vector.multi_reduction <add>, %103, %cst_41 [1] : vector<16x32xf32> to vector<16xf32>
    %105 = vector.shape_cast %104 : vector<16xf32> to vector<16x1xf32>
    %cst_42 = arith.constant 3.200000e+01 : f32
    %106 = vector.broadcast %cst_42 : f32 to vector<16x1xf32>
    %107 = arith.divf %105, %106 : vector<16x1xf32>
    %108 = vector.broadcast %107 : vector<16x1xf32> to vector<16x32xf32>
    %109 = arith.subf %103, %108 : vector<16x32xf32>
    %110 = arith.mulf %109, %109 : vector<16x32xf32>
    %cst_43 = arith.constant dense<0.000000e+00> : vector<16xf32>
    %111 = vector.multi_reduction <add>, %110, %cst_43 [1] : vector<16x32xf32> to vector<16xf32>
    %112 = vector.shape_cast %111 : vector<16xf32> to vector<16x1xf32>
    %cst_44 = arith.constant 3.200000e+01 : f32
    %113 = vector.broadcast %cst_44 : f32 to vector<16x1xf32>
    %114 = arith.divf %112, %113 : vector<16x1xf32>
    %115 = vector.broadcast %107 : vector<16x1xf32> to vector<16x32xf32>
    %116 = arith.subf %103, %115 : vector<16x32xf32>
    %cst_45 = arith.constant 9.99999974E-6 : f32
    %117 = vector.broadcast %cst_45 : f32 to vector<16x1xf32>
    %118 = arith.addf %114, %117 : vector<16x1xf32>
    %119 = math.rsqrt %118 : vector<16x1xf32>
    %120 = vector.broadcast %119 : vector<16x1xf32> to vector<16x32xf32>
    %121 = arith.mulf %116, %120 : vector<16x32xf32>
    %c0_46 = arith.constant 0 : index
    %c0_47 = arith.constant 0 : index
    %122 = vector.load %arg16[%c0_46, %c0_47] : memref<1x32xf32, #tpu.memory_space<vmem>>, vector<1x32xf32>
    %123 = vector.broadcast %122 : vector<1x32xf32> to vector<16x32xf32>
    %124 = arith.mulf %121, %123 : vector<16x32xf32>
    %c0_48 = arith.constant 0 : index
    %c0_49 = arith.constant 0 : index
    %125 = vector.load %arg17[%c0_48, %c0_49] : memref<1x32xf32, #tpu.memory_space<vmem>>, vector<1x32xf32>
    %126 = vector.broadcast %125 : vector<1x32xf32> to vector<16x32xf32>
    %127 = arith.addf %124, %126 : vector<16x32xf32>
    %c0_50 = arith.constant 0 : index
    %c0_51 = arith.constant 0 : index
    %128 = vector.load %arg6[%c0_50, %c0_51] : memref<32x32xf32, #tpu.memory_space<vmem>>, vector<32x32xf32>
    %cst_52 = arith.constant dense<0.000000e+00> : vector<16x32xf32>
    %129 = tpu.matmul %127, %128, %cst_52 {dimension_numbers = #tpu.dot_dimension_numbers<[1], [0], [0], [1], [0, 0, 1, 1], [], []>} : vector<16x32xf32>, vector<32x32xf32>, vector<16x32xf32> -> vector<16x32xf32>
    %c0_53 = arith.constant 0 : index
    %c0_54 = arith.constant 0 : index
    %130 = vector.load %arg7[%c0_53, %c0_54] : memref<1x32xf32, #tpu.memory_space<vmem>>, vector<1x32xf32>
    %131 = vector.broadcast %130 : vector<1x32xf32> to vector<16x32xf32>
    %132 = arith.addf %129, %131 : vector<16x32xf32>
    %c0_55 = arith.constant 0 : index
    %c0_56 = arith.constant 0 : index
    %133 = vector.load %arg8[%c0_55, %c0_56] : memref<32x64xf32, #tpu.memory_space<vmem>>, vector<32x64xf32>
    %cst_57 = arith.constant dense<0.000000e+00> : vector<32x64xf32>
    %134 = tpu.matmul %3, %133, %cst_57 {dimension_numbers = #tpu.dot_dimension_numbers<[1], [0], [0], [1], [0, 0, 1, 1], [], []>} : vector<32x32xf32>, vector<32x64xf32>, vector<32x64xf32> -> vector<32x64xf32>
    %c0_58 = arith.constant 0 : index
    %c0_59 = arith.constant 0 : index
    %135 = vector.load %arg9[%c0_58, %c0_59] : memref<1x64xf32, #tpu.memory_space<vmem>>, vector<1x64xf32>
    %136 = vector.broadcast %135 : vector<1x64xf32> to vector<32x64xf32>
    %137 = arith.addf %134, %136 : vector<32x64xf32>
    %138 = vector.extract_strided_slice %137 {offsets = [0, 0], sizes = [32, 32], strides = [1, 1]} : vector<32x64xf32> to vector<32x32xf32>
    %139 = vector.extract_strided_slice %137 {offsets = [0, 32], sizes = [32, 32], strides = [1, 1]} : vector<32x64xf32> to vector<32x32xf32>
    %140 = vector.shape_cast %132 : vector<16x32xf32> to vector<2x8x32xf32>
    %141 = vector.shape_cast %138 : vector<32x32xf32> to vector<2x16x32xf32>
    %142 = vector.shape_cast %139 : vector<32x32xf32> to vector<2x16x32xf32>
    %cst_60 = arith.constant 0.000000e+00 : f32
    %143 = vector.broadcast %cst_60 : f32 to vector<16x32xf32>
    %144 = vector.extract_strided_slice %140 {offsets = [0, 0, 0], sizes = [2, 8, 8], strides = [1, 1, 1]} : vector<2x8x32xf32> to vector<2x8x8xf32>
    %145 = vector.extract_strided_slice %141 {offsets = [0, 0, 0], sizes = [2, 16, 8], strides = [1, 1, 1]} : vector<2x16x32xf32> to vector<2x16x8xf32>
    "tpu.trace_start"() <{level = 10 : i32, message = "bqd,bkd->bqk"}> : () -> ()
    %cst_61 = arith.constant dense<0.000000e+00> : vector<2x8x16xf32>
    %146 = tpu.matmul %144, %145, %cst_61 {dimension_numbers = #tpu.dot_dimension_numbers<[2], [2], [1], [1], [0, 0, 0, 1, 1, 1], [0], [0]>} : vector<2x8x8xf32>, vector<2x16x8xf32>, vector<2x8x16xf32> -> vector<2x8x16xf32>
    "tpu.trace_stop"() : () -> ()
    %cst_62 = arith.constant 0.353553385 : f32
    %147 = vector.broadcast %cst_62 : f32 to vector<2x8x16xf32>
    %148 = arith.mulf %146, %147 : vector<2x8x16xf32>
    %cst_63 = arith.constant dense<0xFF800000> : vector<2x8xf32>
    %149 = vector.multi_reduction <maximumf>, %148, %cst_63 [2] : vector<2x8x16xf32> to vector<2x8xf32>
    %150 = vector.shape_cast %149 : vector<2x8xf32> to vector<2x8x1xf32>
    %151 = vector.broadcast %150 : vector<2x8x1xf32> to vector<2x8x16xf32>
    %152 = arith.subf %148, %151 : vector<2x8x16xf32>
    %153 = math.exp %152 : vector<2x8x16xf32>
    %cst_64 = arith.constant dense<0.000000e+00> : vector<2x8xf32>
    %154 = vector.multi_reduction <add>, %153, %cst_64 [2] : vector<2x8x16xf32> to vector<2x8xf32>
    %155 = vector.shape_cast %154 : vector<2x8xf32> to vector<2x8x1xf32>
    %156 = tpu.reciprocal %155 {approx = true} : vector<2x8x1xf32> -> vector<2x8x1xf32>
    %157 = vector.broadcast %156 : vector<2x8x1xf32> to vector<2x8x16xf32>
    %158 = arith.mulf %153, %157 : vector<2x8x16xf32>
    %159 = vector.extract_strided_slice %142 {offsets = [0, 0, 0], sizes = [2, 16, 8], strides = [1, 1, 1]} : vector<2x16x32xf32> to vector<2x16x8xf32>
    "tpu.trace_start"() <{level = 10 : i32, message = "bqk,bkd->bqd"}> : () -> ()
    %cst_65 = arith.constant dense<0.000000e+00> : vector<2x8x8xf32>
    %160 = tpu.matmul %158, %159, %cst_65 {dimension_numbers = #tpu.dot_dimension_numbers<[2], [1], [1], [2], [0, 0, 0, 1, 1, 2], [0], [0]>} : vector<2x8x16xf32>, vector<2x16x8xf32>, vector<2x8x8xf32> -> vector<2x8x8xf32>
    "tpu.trace_stop"() : () -> ()
    %161 = vector.shape_cast %160 : vector<2x8x8xf32> to vector<16x8xf32>
    %c0_66 = arith.constant 0 : index
    %c0_67 = arith.constant 0 : index
    %162 = vector.load %arg10[%c0_66, %c0_67] : memref<32x32xf32, #tpu.memory_space<vmem>>, vector<8x32xf32>
    %cst_68 = arith.constant dense<0.000000e+00> : vector<16x32xf32>
    %163 = tpu.matmul %161, %162, %cst_68 {dimension_numbers = #tpu.dot_dimension_numbers<[1], [0], [0], [1], [0, 0, 1, 1], [], []>} : vector<16x8xf32>, vector<8x32xf32>, vector<16x32xf32> -> vector<16x32xf32>
    %164 = arith.addf %143, %163 : vector<16x32xf32>
    %165 = vector.extract_strided_slice %140 {offsets = [0, 0, 8], sizes = [2, 8, 8], strides = [1, 1, 1]} : vector<2x8x32xf32> to vector<2x8x8xf32>
    %166 = vector.extract_strided_slice %141 {offsets = [0, 0, 8], sizes = [2, 16, 8], strides = [1, 1, 1]} : vector<2x16x32xf32> to vector<2x16x8xf32>
    "tpu.trace_start"() <{level = 10 : i32, message = "bqd,bkd->bqk"}> : () -> ()
    %cst_69 = arith.constant dense<0.000000e+00> : vector<2x8x16xf32>
    %167 = tpu.matmul %165, %166, %cst_69 {dimension_numbers = #tpu.dot_dimension_numbers<[2], [2], [1], [1], [0, 0, 0, 1, 1, 1], [0], [0]>} : vector<2x8x8xf32>, vector<2x16x8xf32>, vector<2x8x16xf32> -> vector<2x8x16xf32>
    "tpu.trace_stop"() : () -> ()
    %cst_70 = arith.constant 0.353553385 : f32
    %168 = vector.broadcast %cst_70 : f32 to vector<2x8x16xf32>
    %169 = arith.mulf %167, %168 : vector<2x8x16xf32>
    %cst_71 = arith.constant dense<0xFF800000> : vector<2x8xf32>
    %170 = vector.multi_reduction <maximumf>, %169, %cst_71 [2] : vector<2x8x16xf32> to vector<2x8xf32>
    %171 = vector.shape_cast %170 : vector<2x8xf32> to vector<2x8x1xf32>
    %172 = vector.broadcast %171 : vector<2x8x1xf32> to vector<2x8x16xf32>
    %173 = arith.subf %169, %172 : vector<2x8x16xf32>
    %174 = math.exp %173 : vector<2x8x16xf32>
    %cst_72 = arith.constant dense<0.000000e+00> : vector<2x8xf32>
    %175 = vector.multi_reduction <add>, %174, %cst_72 [2] : vector<2x8x16xf32> to vector<2x8xf32>
    %176 = vector.shape_cast %175 : vector<2x8xf32> to vector<2x8x1xf32>
    %177 = tpu.reciprocal %176 {approx = true} : vector<2x8x1xf32> -> vector<2x8x1xf32>
    %178 = vector.broadcast %177 : vector<2x8x1xf32> to vector<2x8x16xf32>
    %179 = arith.mulf %174, %178 : vector<2x8x16xf32>
    %180 = vector.extract_strided_slice %142 {offsets = [0, 0, 8], sizes = [2, 16, 8], strides = [1, 1, 1]} : vector<2x16x32xf32> to vector<2x16x8xf32>
    "tpu.trace_start"() <{level = 10 : i32, message = "bqk,bkd->bqd"}> : () -> ()
    %cst_73 = arith.constant dense<0.000000e+00> : vector<2x8x8xf32>
    %181 = tpu.matmul %179, %180, %cst_73 {dimension_numbers = #tpu.dot_dimension_numbers<[2], [1], [1], [2], [0, 0, 0, 1, 1, 2], [0], [0]>} : vector<2x8x16xf32>, vector<2x16x8xf32>, vector<2x8x8xf32> -> vector<2x8x8xf32>
    "tpu.trace_stop"() : () -> ()
    %182 = vector.shape_cast %181 : vector<2x8x8xf32> to vector<16x8xf32>
    %c8_74 = arith.constant 8 : index
    %c0_75 = arith.constant 0 : index
    %183 = vector.load %arg10[%c8_74, %c0_75] : memref<32x32xf32, #tpu.memory_space<vmem>>, vector<8x32xf32>
    %cst_76 = arith.constant dense<0.000000e+00> : vector<16x32xf32>
    %184 = tpu.matmul %182, %183, %cst_76 {dimension_numbers = #tpu.dot_dimension_numbers<[1], [0], [0], [1], [0, 0, 1, 1], [], []>} : vector<16x8xf32>, vector<8x32xf32>, vector<16x32xf32> -> vector<16x32xf32>
    %185 = arith.addf %164, %184 : vector<16x32xf32>
    %186 = vector.extract_strided_slice %140 {offsets = [0, 0, 16], sizes = [2, 8, 8], strides = [1, 1, 1]} : vector<2x8x32xf32> to vector<2x8x8xf32>
    %187 = vector.extract_strided_slice %141 {offsets = [0, 0, 16], sizes = [2, 16, 8], strides = [1, 1, 1]} : vector<2x16x32xf32> to vector<2x16x8xf32>
    "tpu.trace_start"() <{level = 10 : i32, message = "bqd,bkd->bqk"}> : () -> ()
    %cst_77 = arith.constant dense<0.000000e+00> : vector<2x8x16xf32>
    %188 = tpu.matmul %186, %187, %cst_77 {dimension_numbers = #tpu.dot_dimension_numbers<[2], [2], [1], [1], [0, 0, 0, 1, 1, 1], [0], [0]>} : vector<2x8x8xf32>, vector<2x16x8xf32>, vector<2x8x16xf32> -> vector<2x8x16xf32>
    "tpu.trace_stop"() : () -> ()
    %cst_78 = arith.constant 0.353553385 : f32
    %189 = vector.broadcast %cst_78 : f32 to vector<2x8x16xf32>
    %190 = arith.mulf %188, %189 : vector<2x8x16xf32>
    %cst_79 = arith.constant dense<0xFF800000> : vector<2x8xf32>
    %191 = vector.multi_reduction <maximumf>, %190, %cst_79 [2] : vector<2x8x16xf32> to vector<2x8xf32>
    %192 = vector.shape_cast %191 : vector<2x8xf32> to vector<2x8x1xf32>
    %193 = vector.broadcast %192 : vector<2x8x1xf32> to vector<2x8x16xf32>
    %194 = arith.subf %190, %193 : vector<2x8x16xf32>
    %195 = math.exp %194 : vector<2x8x16xf32>
    %cst_80 = arith.constant dense<0.000000e+00> : vector<2x8xf32>
    %196 = vector.multi_reduction <add>, %195, %cst_80 [2] : vector<2x8x16xf32> to vector<2x8xf32>
    %197 = vector.shape_cast %196 : vector<2x8xf32> to vector<2x8x1xf32>
    %198 = tpu.reciprocal %197 {approx = true} : vector<2x8x1xf32> -> vector<2x8x1xf32>
    %199 = vector.broadcast %198 : vector<2x8x1xf32> to vector<2x8x16xf32>
    %200 = arith.mulf %195, %199 : vector<2x8x16xf32>
    %201 = vector.extract_strided_slice %142 {offsets = [0, 0, 16], sizes = [2, 16, 8], strides = [1, 1, 1]} : vector<2x16x32xf32> to vector<2x16x8xf32>
    "tpu.trace_start"() <{level = 10 : i32, message = "bqk,bkd->bqd"}> : () -> ()
    %cst_81 = arith.constant dense<0.000000e+00> : vector<2x8x8xf32>
    %202 = tpu.matmul %200, %201, %cst_81 {dimension_numbers = #tpu.dot_dimension_numbers<[2], [1], [1], [2], [0, 0, 0, 1, 1, 2], [0], [0]>} : vector<2x8x16xf32>, vector<2x16x8xf32>, vector<2x8x8xf32> -> vector<2x8x8xf32>
    "tpu.trace_stop"() : () -> ()
    %203 = vector.shape_cast %202 : vector<2x8x8xf32> to vector<16x8xf32>
    %c16_82 = arith.constant 16 : index
    %c0_83 = arith.constant 0 : index
    %204 = vector.load %arg10[%c16_82, %c0_83] : memref<32x32xf32, #tpu.memory_space<vmem>>, vector<8x32xf32>
    %cst_84 = arith.constant dense<0.000000e+00> : vector<16x32xf32>
    %205 = tpu.matmul %203, %204, %cst_84 {dimension_numbers = #tpu.dot_dimension_numbers<[1], [0], [0], [1], [0, 0, 1, 1], [], []>} : vector<16x8xf32>, vector<8x32xf32>, vector<16x32xf32> -> vector<16x32xf32>
    %206 = arith.addf %185, %205 : vector<16x32xf32>
    %207 = vector.extract_strided_slice %140 {offsets = [0, 0, 24], sizes = [2, 8, 8], strides = [1, 1, 1]} : vector<2x8x32xf32> to vector<2x8x8xf32>
    %208 = vector.extract_strided_slice %141 {offsets = [0, 0, 24], sizes = [2, 16, 8], strides = [1, 1, 1]} : vector<2x16x32xf32> to vector<2x16x8xf32>
    "tpu.trace_start"() <{level = 10 : i32, message = "bqd,bkd->bqk"}> : () -> ()
    %cst_85 = arith.constant dense<0.000000e+00> : vector<2x8x16xf32>
    %209 = tpu.matmul %207, %208, %cst_85 {dimension_numbers = #tpu.dot_dimension_numbers<[2], [2], [1], [1], [0, 0, 0, 1, 1, 1], [0], [0]>} : vector<2x8x8xf32>, vector<2x16x8xf32>, vector<2x8x16xf32> -> vector<2x8x16xf32>
    "tpu.trace_stop"() : () -> ()
    %cst_86 = arith.constant 0.353553385 : f32
    %210 = vector.broadcast %cst_86 : f32 to vector<2x8x16xf32>
    %211 = arith.mulf %209, %210 : vector<2x8x16xf32>
    %cst_87 = arith.constant dense<0xFF800000> : vector<2x8xf32>
    %212 = vector.multi_reduction <maximumf>, %211, %cst_87 [2] : vector<2x8x16xf32> to vector<2x8xf32>
    %213 = vector.shape_cast %212 : vector<2x8xf32> to vector<2x8x1xf32>
    %214 = vector.broadcast %213 : vector<2x8x1xf32> to vector<2x8x16xf32>
    %215 = arith.subf %211, %214 : vector<2x8x16xf32>
    %216 = math.exp %215 : vector<2x8x16xf32>
    %cst_88 = arith.constant dense<0.000000e+00> : vector<2x8xf32>
    %217 = vector.multi_reduction <add>, %216, %cst_88 [2] : vector<2x8x16xf32> to vector<2x8xf32>
    %218 = vector.shape_cast %217 : vector<2x8xf32> to vector<2x8x1xf32>
    %219 = tpu.reciprocal %218 {approx = true} : vector<2x8x1xf32> -> vector<2x8x1xf32>
    %220 = vector.broadcast %219 : vector<2x8x1xf32> to vector<2x8x16xf32>
    %221 = arith.mulf %216, %220 : vector<2x8x16xf32>
    %222 = vector.extract_strided_slice %142 {offsets = [0, 0, 24], sizes = [2, 16, 8], strides = [1, 1, 1]} : vector<2x16x32xf32> to vector<2x16x8xf32>
    "tpu.trace_start"() <{level = 10 : i32, message = "bqk,bkd->bqd"}> : () -> ()
    %cst_89 = arith.constant dense<0.000000e+00> : vector<2x8x8xf32>
    %223 = tpu.matmul %221, %222, %cst_89 {dimension_numbers = #tpu.dot_dimension_numbers<[2], [1], [1], [2], [0, 0, 0, 1, 1, 2], [0], [0]>} : vector<2x8x16xf32>, vector<2x16x8xf32>, vector<2x8x8xf32> -> vector<2x8x8xf32>
    "tpu.trace_stop"() : () -> ()
    %224 = vector.shape_cast %223 : vector<2x8x8xf32> to vector<16x8xf32>
    %c24_90 = arith.constant 24 : index
    %c0_91 = arith.constant 0 : index
    %225 = vector.load %arg10[%c24_90, %c0_91] : memref<32x32xf32, #tpu.memory_space<vmem>>, vector<8x32xf32>
    %cst_92 = arith.constant dense<0.000000e+00> : vector<16x32xf32>
    %226 = tpu.matmul %224, %225, %cst_92 {dimension_numbers = #tpu.dot_dimension_numbers<[1], [0], [0], [1], [0, 0, 1, 1], [], []>} : vector<16x8xf32>, vector<8x32xf32>, vector<16x32xf32> -> vector<16x32xf32>
    %227 = arith.addf %206, %226 : vector<16x32xf32>
    %c0_93 = arith.constant 0 : index
    %c0_94 = arith.constant 0 : index
    %228 = vector.load %arg11[%c0_93, %c0_94] : memref<1x32xf32, #tpu.memory_space<vmem>>, vector<1x32xf32>
    %229 = vector.broadcast %228 : vector<1x32xf32> to vector<16x32xf32>
    %230 = arith.addf %227, %229 : vector<16x32xf32>
    %231 = arith.addf %127, %230 : vector<16x32xf32>
    %cst_95 = arith.constant dense<0.000000e+00> : vector<16xf32>
    %232 = vector.multi_reduction <add>, %231, %cst_95 [1] : vector<16x32xf32> to vector<16xf32>
    %233 = vector.shape_cast %232 : vector<16xf32> to vector<16x1xf32>
    %cst_96 = arith.constant 3.200000e+01 : f32
    %234 = vector.broadcast %cst_96 : f32 to vector<16x1xf32>
    %235 = arith.divf %233, %234 : vector<16x1xf32>
    %236 = vector.broadcast %235 : vector<16x1xf32> to vector<16x32xf32>
    %237 = arith.subf %231, %236 : vector<16x32xf32>
    %238 = arith.mulf %237, %237 : vector<16x32xf32>
    %cst_97 = arith.constant dense<0.000000e+00> : vector<16xf32>
    %239 = vector.multi_reduction <add>, %238, %cst_97 [1] : vector<16x32xf32> to vector<16xf32>
    %240 = vector.shape_cast %239 : vector<16xf32> to vector<16x1xf32>
    %cst_98 = arith.constant 3.200000e+01 : f32
    %241 = vector.broadcast %cst_98 : f32 to vector<16x1xf32>
    %242 = arith.divf %240, %241 : vector<16x1xf32>
    %243 = vector.broadcast %235 : vector<16x1xf32> to vector<16x32xf32>
    %244 = arith.subf %231, %243 : vector<16x32xf32>
    %cst_99 = arith.constant 9.99999974E-6 : f32
    %245 = vector.broadcast %cst_99 : f32 to vector<16x1xf32>
    %246 = arith.addf %242, %245 : vector<16x1xf32>
    %247 = math.rsqrt %246 : vector<16x1xf32>
    %248 = vector.broadcast %247 : vector<16x1xf32> to vector<16x32xf32>
    %249 = arith.mulf %244, %248 : vector<16x32xf32>
    %c0_100 = arith.constant 0 : index
    %c0_101 = arith.constant 0 : index
    %250 = vector.load %arg18[%c0_100, %c0_101] : memref<1x32xf32, #tpu.memory_space<vmem>>, vector<1x32xf32>
    %251 = vector.broadcast %250 : vector<1x32xf32> to vector<16x32xf32>
    %252 = arith.mulf %249, %251 : vector<16x32xf32>
    %c0_102 = arith.constant 0 : index
    %c0_103 = arith.constant 0 : index
    %253 = vector.load %arg19[%c0_102, %c0_103] : memref<1x32xf32, #tpu.memory_space<vmem>>, vector<1x32xf32>
    %254 = vector.broadcast %253 : vector<1x32xf32> to vector<16x32xf32>
    %255 = arith.addf %252, %254 : vector<16x32xf32>
    %c0_104 = arith.constant 0 : index
    %c0_105 = arith.constant 0 : index
    %256 = vector.load %arg12[%c0_104, %c0_105] : memref<32x64xf32, #tpu.memory_space<vmem>>, vector<32x64xf32>
    %cst_106 = arith.constant dense<0.000000e+00> : vector<16x64xf32>
    %257 = tpu.matmul %255, %256, %cst_106 {dimension_numbers = #tpu.dot_dimension_numbers<[1], [0], [0], [1], [0, 0, 1, 1], [], []>} : vector<16x32xf32>, vector<32x64xf32>, vector<16x64xf32> -> vector<16x64xf32>
    %c0_107 = arith.constant 0 : index
    %c0_108 = arith.constant 0 : index
    %258 = vector.load %arg13[%c0_107, %c0_108] : memref<1x64xf32, #tpu.memory_space<vmem>>, vector<1x64xf32>
    %259 = vector.broadcast %258 : vector<1x64xf32> to vector<16x64xf32>
    %260 = arith.addf %257, %259 : vector<16x64xf32>
    %cst_109 = arith.constant 0.000000e+00 : f32
    %261 = vector.broadcast %cst_109 : f32 to vector<16x64xf32>
    %262 = arith.maximumf %260, %261 : vector<16x64xf32>
    %c0_110 = arith.constant 0 : index
    %c0_111 = arith.constant 0 : index
    %263 = vector.load %arg14[%c0_110, %c0_111] : memref<64x32xf32, #tpu.memory_space<vmem>>, vector<64x32xf32>
    %cst_112 = arith.constant dense<0.000000e+00> : vector<16x32xf32>
    %264 = tpu.matmul %262, %263, %cst_112 {dimension_numbers = #tpu.dot_dimension_numbers<[1], [0], [0], [1], [0, 0, 1, 1], [], []>} : vector<16x64xf32>, vector<64x32xf32>, vector<16x32xf32> -> vector<16x32xf32>
    %c0_113 = arith.constant 0 : index
    %c0_114 = arith.constant 0 : index
    %265 = vector.load %arg15[%c0_113, %c0_114] : memref<1x32xf32, #tpu.memory_space<vmem>>, vector<1x32xf32>
    %266 = vector.broadcast %265 : vector<1x32xf32> to vector<16x32xf32>
    %267 = arith.addf %264, %266 : vector<16x32xf32>
    %268 = arith.addf %255, %267 : vector<16x32xf32>
    %cst_115 = arith.constant dense<0.000000e+00> : vector<16xf32>
    %269 = vector.multi_reduction <add>, %268, %cst_115 [1] : vector<16x32xf32> to vector<16xf32>
    %270 = vector.shape_cast %269 : vector<16xf32> to vector<16x1xf32>
    %cst_116 = arith.constant 3.200000e+01 : f32
    %271 = vector.broadcast %cst_116 : f32 to vector<16x1xf32>
    %272 = arith.divf %270, %271 : vector<16x1xf32>
    %273 = vector.broadcast %272 : vector<16x1xf32> to vector<16x32xf32>
    %274 = arith.subf %268, %273 : vector<16x32xf32>
    %275 = arith.mulf %274, %274 : vector<16x32xf32>
    %cst_117 = arith.constant dense<0.000000e+00> : vector<16xf32>
    %276 = vector.multi_reduction <add>, %275, %cst_117 [1] : vector<16x32xf32> to vector<16xf32>
    %277 = vector.shape_cast %276 : vector<16xf32> to vector<16x1xf32>
    %cst_118 = arith.constant 3.200000e+01 : f32
    %278 = vector.broadcast %cst_118 : f32 to vector<16x1xf32>
    %279 = arith.divf %277, %278 : vector<16x1xf32>
    %280 = vector.broadcast %272 : vector<16x1xf32> to vector<16x32xf32>
    %281 = arith.subf %268, %280 : vector<16x32xf32>
    %cst_119 = arith.constant 9.99999974E-6 : f32
    %282 = vector.broadcast %cst_119 : f32 to vector<16x1xf32>
    %283 = arith.addf %279, %282 : vector<16x1xf32>
    %284 = math.rsqrt %283 : vector<16x1xf32>
    %285 = vector.broadcast %284 : vector<16x1xf32> to vector<16x32xf32>
    %286 = arith.mulf %281, %285 : vector<16x32xf32>
    %c0_120 = arith.constant 0 : index
    %c0_121 = arith.constant 0 : index
    %287 = vector.load %arg20[%c0_120, %c0_121] : memref<1x32xf32, #tpu.memory_space<vmem>>, vector<1x32xf32>
    %288 = vector.broadcast %287 : vector<1x32xf32> to vector<16x32xf32>
    %289 = arith.mulf %286, %288 : vector<16x32xf32>
    %c0_122 = arith.constant 0 : index
    %c0_123 = arith.constant 0 : index
    %290 = vector.load %arg21[%c0_122, %c0_123] : memref<1x32xf32, #tpu.memory_space<vmem>>, vector<1x32xf32>
    %291 = vector.broadcast %290 : vector<1x32xf32> to vector<16x32xf32>
    %292 = arith.addf %289, %291 : vector<16x32xf32>
    %293 = vector.shape_cast %292 : vector<16x32xf32> to vector<2x8x32xf32>
    %c0_124 = arith.constant 0 : index
    %c0_125 = arith.constant 0 : index
    %c0_126 = arith.constant 0 : index
    %294 = vector.load %arg22[%c0_124, %c0_125, %c0_126] : memref<2x8x32xf32, #tpu.memory_space<vmem>>, vector<2x8x32xf32>
    tpu.vector_store %arg22[%c0_124, %c0_125, %c0_126], %293 {strides = array<i32>} : memref<2x8x32xf32, #tpu.memory_space<vmem>>, vector<2x8x32xf32>,
    return
  }
}

</mosaic_0001>

<llo_original>
// kernel: transformer_decoder_forward.5
$region0: #{transformer_decoder_forward.5}
  #allocation0 [shape = 'u32[]', space=smem, size = 0x4, offset = 0x4, fixed_abs, tag = 'smem constant byte address 0x4 - core index']
  #allocation1 [shape = 'u32[72,128]{1,0:T(1,128)}', space=vmem, size = 0x9000, scoped, tag = 'internal scratch']
  %s0 = inlined_call_operand.vmem [shape: f32[2,8,32], index: 0, kind: input, shape index: {}]
  %s1 = inlined_call_operand.vmem [shape: f32[1,32], index: 1, kind: input, shape index: {}]
  %s2 = inlined_call_operand.vmem [shape: f32[1,32], index: 2, kind: input, shape index: {}]
  %s3 = inlined_call_operand.vmem [shape: f32[2,8,32], index: 3, kind: output, shape index: {}]
  %s4 = sld [smem:[#allocation0]]
  $region22: #{transformer_decoder_forward.5} parent=0
    _
  %s6 = ssub.s32 1, %s4
  %s7 = scalar_select 0, %s6, %s4
  // Predicated region
  $region2: #{transformer_decoder_forward.5} parent=0 // pred_check
    _
  $region3: #{transformer_decoder_forward.5} parent=0 // pred_check_branch
    %9 = sbr.rel (0) target = $region5
  $region4: #{transformer_decoder_forward.5} parent=0 // pred_region
    _
  $region5: #{transformer_decoder_forward.5} parent=0 // pred_fallthru
    _
  // Predicated region
  $region6: #{transformer_decoder_forward.5} parent=0 // pred_check
    _
  $region7: #{transformer_decoder_forward.5} parent=0 // pred_check_branch
    %11 = sbr.rel (0) target = $region9
  $region8: #{transformer_decoder_forward.5} parent=0 // pred_region
    _
  $region9: #{transformer_decoder_forward.5} parent=0 // pred_fallthru
    _
  // Predicated region
  $region10: #{transformer_decoder_forward.5} parent=0 // pred_check
    _
  $region11: #{transformer_decoder_forward.5} parent=0 // pred_check_branch
    %13 = sbr.rel (0) target = $region13
  $region12: #{transformer_decoder_forward.5} parent=0 // pred_region
    _
  $region13: #{transformer_decoder_forward.5} parent=0 // pred_fallthru
    _
  %v14 = vld [vmem:[%s0] sm:$0xff]
  %v15 = vld [vmem:[%s0 + $0x8] sm:$0xff]
  %vm16 = vcmask 261120
  %v17 = vsel %vm16, %v14, 0.0
  %18 = vadd.xlane.f32.xlu0 %v17
  %v19 = vpop.xlane.xlu0 %18
  %v20 = vsel %vm16, %v15, 0.0
  %21 = vadd.xlane.f32.xlu0 %v20
  %v22 = vpop.xlane.xlu0 %21
  %v23 = vrcp.pop 32.0
  %v24 = vmul.f32 32.0, %v23
  %v25 = vsub.f32 1.0, %v24
  %v26 = vmul.f32 %v23, %v25
  %v27 = vadd.f32 %v23, %v26
  %vm28 = vweird.f32 %v23
  %v29 = vsel %vm28, %v23, %v27
  %v30 = vmul.f32 %v19, %v29
  %v31 = vmul.f32 %v22, %v29
  %v32 = vsub.f32 %v14, %v30
  %v33 = vsub.f32 %v15, %v31
  %v34 = vmul.f32 %v32, %v32
  %v35 = vmul.f32 %v33, %v33
  %v36 = vsel %vm16, %v34, 0.0
  %37 = vadd.xlane.f32.xlu0 %v36
  %v38 = vpop.xlane.xlu0 %37
  %v39 = vsel %vm16, %v35, 0.0
  %40 = vadd.xlane.f32.xlu0 %v39
  %v41 = vpop.xlane.xlu0 %40
  %v42 = vmul.f32 %v38, %v29
  %v43 = vmul.f32 %v41, %v29
  %v44 = vadd.f32 %v42, 1e-05
  %v45 = vadd.f32 %v43, 1e-05
  %v46 = vrsqrt.pop %v44
  %v47 = vmul.f32 %v46, %v44
  %v48 = vmul.f32 %v47, %v46
  %v49 = vmul.f32 0.5, %v48
  %v50 = vsub.f32 1.5, %v49
  %v51 = vmul.f32 %v46, %v50
  %vm52 = vweird.f32 %v44
  %vm53 = vweird.f32 %v46
  %vm54 = vmor %vm52, %vm53
  %v55 = vsel %vm54, %v46, %v51
  %v56 = vrsqrt.pop %v45
  %v57 = vmul.f32 %v56, %v45
  %v58 = vmul.f32 %v57, %v56
  %v59 = vmul.f32 0.5, %v58
  %v60 = vsub.f32 1.5, %v59
  %v61 = vmul.f32 %v56, %v60
  %vm62 = vweird.f32 %v45
  %vm63 = vweird.f32 %v56
  %vm64 = vmor %vm62, %vm63
  %v65 = vsel %vm64, %v56, %v61
  %v66 = vmul.f32 %v32, %v55
  %v67 = vmul.f32 %v33, %v65
  %v68 = vld [vmem:[%s1] sm:$0x1]
  %v70 = vperm.slane %v68, 0
  %v72 = vmul.f32 %v66, %v70
  %v73 = vmul.f32 %v67, %v70
  %v74 = vld [vmem:[%s2] sm:$0x1]
  %v76 = vperm.slane %v74, 0
  %v78 = vadd.f32 %v72, %v76
  %v79 = vadd.f32 %v73, %v76
  %80 = vst.msk [vmem:[%s3] sm:$0xff] %vm16, %v78
  %81 = vst.msk [vmem:[%s3 + $0x8] sm:$0xff] %vm16, %v79
  // Predicated region
  $region14: #{transformer_decoder_forward.5} parent=0 // pred_check
    _
  $region15: #{transformer_decoder_forward.5} parent=0 // pred_check_branch
    %83 = sbr.rel (0) target = $region17
  $region16: #{transformer_decoder_forward.5} parent=0 // pred_region
    _
  $region17: #{transformer_decoder_forward.5} parent=0 // pred_fallthru
    _
  // Predicated region
  $region18: #{transformer_decoder_forward.5} parent=0 // pred_check
    _
  $region19: #{transformer_decoder_forward.5} parent=0 // pred_check_branch
    %85 = sbr.rel (0) target = $region21
  $region20: #{transformer_decoder_forward.5} parent=0 // pred_region
    _
  $region21: #{transformer_decoder_forward.5} parent=0 // pred_fallthru
    _

// kernel: transformer_decoder_forward.3
$region0: #{transformer_decoder_forward.3}
  #allocation0 [shape = 'u32[]', space=smem, size = 0x4, offset = 0x4, fixed_abs, tag = 'smem constant byte address 0x4 - core index']
  #allocation1 [shape = 'u32[72,128]{1,0:T(1,128)}', space=vmem, size = 0x9000, scoped, tag = 'internal scratch']
  %s0 = inlined_call_operand.vmem [shape: f32[2,8,32], index: 0, kind: input, shape index: {}]
  %s1 = inlined_call_operand.vmem [shape: f32[2,16,32], index: 1, kind: input, shape index: {}]
  %s2 = inlined_call_operand.vmem [shape: f32[32,96], index: 2, kind: input, shape index: {}]
  %s3 = inlined_call_operand.vmem [shape: f32[1,96], index: 3, kind: input, shape index: {}]
  %s4 = inlined_call_operand.vmem [shape: f32[32,32], index: 4, kind: input, shape index: {}]
  %s5 = inlined_call_operand.vmem [shape: f32[1,32], index: 5, kind: input, shape index: {}]
  %s6 = inlined_call_operand.vmem [shape: f32[32,32], index: 6, kind: input, shape index: {}]
  %s7 = inlined_call_operand.hbm [shape: f32[1,32], index: 7, kind: input, shape index: {}]
  %s8 = inlined_call_operand.hbm [shape: f32[32,64], index: 8, kind: input, shape index: {}]
  %s9 = inlined_call_operand.hbm [shape: f32[1,64], index: 9, kind: input, shape index: {}]
  %s10 = inlined_call_operand.hbm [shape: f32[32,32], index: 10, kind: input, shape index: {}]
  %s11 = inlined_call_operand.hbm [shape: f32[1,32], index: 11, kind: input, shape index: {}]
  %s12 = inlined_call_operand.hbm [shape: f32[32,64], index: 12, kind: input, shape index: {}]
  %s13 = inlined_call_operand.hbm [shape: f32[1,64], index: 13, kind: input, shape index: {}]
  %s14 = inlined_call_operand.vmem [shape: f32[64,32], index: 14, kind: input, shape index: {}]
  %s15 = inlined_call_operand.hbm [shape: f32[1,32], index: 15, kind: input, shape index: {}]
  %s16 = inlined_call_operand.hbm [shape: f32[1,32], index: 16, kind: input, shape index: {}]
  %s17 = inlined_call_operand.hbm [shape: f32[1,32], index: 17, kind: input, shape index: {}]
  %s18 = inlined_call_operand.hbm [shape: f32[1,32], index: 18, kind: input, shape index: {}]
  %s19 = inlined_call_operand.hbm [shape: f32[1,32], index: 19, kind: input, shape index: {}]
  %s20 = inlined_call_operand.hbm [shape: f32[1,32], index: 20, kind: input, shape index: {}]
  %s21 = inlined_call_operand.hbm [shape: f32[1,32], index: 21, kind: input, shape index: {}]
  %s22 = inlined_call_operand.vmem [shape: f32[2,8,32], index: 22, kind: output, shape index: {}]
  %s23 = sld [smem:[#allocation0]]
  $region154: #{transformer_decoder_forward.3} parent=0
    _
  %s25 = ssub.s32 1, %s23
  %s26 = scalar_select 0, %s25, %s23
  $region1: #{transformer_decoder_forward.3} parent=0
    #allocation2 [shape = 'u8[512]{0}', space=vmem, size = 0x400, scoped, tag = 'input window, operand 7, single buffered']
    #allocation3 [shape = 's32[1]{0}', space=sflag, size = 0x4, scoped, tag = 'scoped memory for transformer_decoder_forward.3']
    #allocation4 [shape = 'u8[16384]{0}', space=vmem, size = 0x4000, scoped, tag = 'input window, operand 8, single buffered']
    #allocation5 [shape = 's32[1]{0}', space=sflag, size = 0x4, scoped, tag = 'scoped memory for transformer_decoder_forward.3']
    #allocation6 [shape = 'u8[512]{0}', space=vmem, size = 0x400, scoped, tag = 'input window, operand 9, single buffered']
    #allocation7 [shape = 'u8[16384]{0}', space=vmem, size = 0x4000, scoped, tag = 'input window, operand 10, single buffered']
    #allocation8 [shape = 's32[1]{0}', space=sflag, size = 0x4, scoped, tag = 'scoped memory for transformer_decoder_forward.3']
    #allocation9 [shape = 'u8[512]{0}', space=vmem, size = 0x400, scoped, tag = 'input window, operand 11, single buffered']
    #allocation10 [shape = 'u8[16384]{0}', space=vmem, size = 0x4000, scoped, tag = 'input window, operand 12, single buffered']
    #allocation11 [shape = 's32[1]{0}', space=sflag, size = 0x4, scoped, tag = 'scoped memory for transformer_decoder_forward.3']
    #allocation12 [shape = 'u8[512]{0}', space=vmem, size = 0x400, scoped, tag = 'input window, operand 13, single buffered']
    #allocation13 [shape = 'u8[512]{0}', space=vmem, size = 0x400, scoped, tag = 'input window, operand 15, single buffered']
    #allocation14 [shape = 's32[1]{0}', space=sflag, size = 0x4, scoped, tag = 'scoped memory for transformer_decoder_forward.3']
    #allocation15 [shape = 'u8[512]{0}', space=vmem, size = 0x400, scoped, tag = 'input window, operand 16, single buffered']
    #allocation16 [shape = 'u8[512]{0}', space=vmem, size = 0x400, scoped, tag = 'input window, operand 17, single buffered']
    #allocation17 [shape = 's32[1]{0}', space=sflag, size = 0x4, scoped, tag = 'scoped memory for transformer_decoder_forward.3']
    #allocation18 [shape = 'u8[512]{0}', space=vmem, size = 0x400, scoped, tag = 'input window, operand 18, single buffered']
    #allocation19 [shape = 'u8[512]{0}', space=vmem, size = 0x400, scoped, tag = 'input window, operand 19, single buffered']
    #allocation20 [shape = 's32[1]{0}', space=sflag, size = 0x4, scoped, tag = 'scoped memory for transformer_decoder_forward.3']
    #allocation21 [shape = 'u8[512]{0}', space=vmem, size = 0x400, scoped, tag = 'input window, operand 20, single buffered']
    #allocation22 [shape = 'u8[512]{0}', space=vmem, size = 0x400, scoped, tag = 'input window, operand 21, single buffered']
    #allocation23 [shape = 's32[1]{0}', space=sflag, size = 0x4, scoped, tag = 'scoped memory for transformer_decoder_forward.3']
    %27 = vsyncpa [#allocation3], 0
    %28 = vsyncpa [#allocation5], 0
    %29 = vsyncpa [#allocation8], 0
    %30 = vsyncpa [#allocation11], 0
    %31 = vsyncpa [#allocation14], 0
    %32 = vsyncpa [#allocation17], 0
    %33 = vsyncpa [#allocation20], 0
    %34 = vsyncpa [#allocation23], 0
    // Predicated region
    $region2: #{transformer_decoder_forward.3} parent=1 // pred_check
      _
    $region3: #{transformer_decoder_forward.3} parent=1 // pred_check_branch
      %36 = sbr.rel (0) target = $region5
    $region4: #{transformer_decoder_forward.3} parent=1 // pred_region
      _
    $region5: #{transformer_decoder_forward.3} parent=1 // pred_fallthru
      _
    // Predicated region
    $region6: #{transformer_decoder_forward.3} parent=1 // pred_check
      _
    $region7: #{transformer_decoder_forward.3} parent=1 // pred_check_branch
      %38 = sbr.rel (0) target = $region9
    $region8: #{transformer_decoder_forward.3} parent=1 // pred_region
      _
    $region9: #{transformer_decoder_forward.3} parent=1 // pred_fallthru
      _
    // Predicated region
    $region10: #{transformer_decoder_forward.3} parent=1 // pred_check
      _
    $region11: #{transformer_decoder_forward.3} parent=1 // pred_check_branch
      %40 = sbr.rel (0) target = $region13
    $region12: #{transformer_decoder_forward.3} parent=1 // pred_region
      _
    $region13: #{transformer_decoder_forward.3} parent=1 // pred_fallthru
      _
    // Predicated region
    $region14: #{transformer_decoder_forward.3} parent=1 // pred_check
      _
    $region15: #{transformer_decoder_forward.3} parent=1 // pred_check_branch
      %42 = sbr.rel (0) target = $region17
    $region16: #{transformer_decoder_forward.3} parent=1 // pred_region
      _
    $region17: #{transformer_decoder_forward.3} parent=1 // pred_fallthru
      _
    // Predicated region
    $region18: #{transformer_decoder_forward.3} parent=1 // pred_check
      _
    $region19: #{transformer_decoder_forward.3} parent=1 // pred_check_branch
      %44 = sbr.rel (0) target = $region21
    $region20: #{transformer_decoder_forward.3} parent=1 // pred_region
      _
    $region21: #{transformer_decoder_forward.3} parent=1 // pred_fallthru
      _
    // Predicated region
    $region22: #{transformer_decoder_forward.3} parent=1 // pred_check
      _
    $region23: #{transformer_decoder_forward.3} parent=1 // pred_check_branch
      %46 = sbr.rel (0) target = $region25
    $region24: #{transformer_decoder_forward.3} parent=1 // pred_region
      _
    $region25: #{transformer_decoder_forward.3} parent=1 // pred_fallthru
      _
    // Predicated region
    $region26: #{transformer_decoder_forward.3} parent=1 // pred_check
      _
    $region27: #{transformer_decoder_forward.3} parent=1 // pred_check_branch
      %48 = sbr.rel (0) target = $region29
    $region28: #{transformer_decoder_forward.3} parent=1 // pred_region
      _
    $region29: #{transformer_decoder_forward.3} parent=1 // pred_fallthru
      _
    // Predicated region
    $region30: #{transformer_decoder_forward.3} parent=1 // pred_check
      _
    $region31: #{transformer_decoder_forward.3} parent=1 // pred_check_branch
      %50 = sbr.rel (0) target = $region33
    $region32: #{transformer_decoder_forward.3} parent=1 // pred_region
      %52 = vsyncadd [#allocation3], 0
      %s54 = sshll.u32 %s7, 4
      %s55 = int_to_ptr.hbm [resolvable:$true] %s54
      %s56 = sshll.u32 [#allocation2], 4
      %s57 = int_to_ptr.vmem [resolvable:$true] %s56
      %59 = dma.hbm_to_vmem [thread:$0]  %s55, 16, %s57, [#allocation3]
    $region33: #{transformer_decoder_forward.3} parent=1 // pred_fallthru
      _
    // Predicated region
    $region34: #{transformer_decoder_forward.3} parent=1 // pred_check
      _
    $region35: #{transformer_decoder_forward.3} parent=1 // pred_check_branch
      %61 = sbr.rel (0) target = $region37
    $region36: #{transformer_decoder_forward.3} parent=1 // pred_region
      %63 = vsyncadd [#allocation5], 0
      %s64 = sshll.u32 %s8, 4
      %s65 = int_to_ptr.hbm [resolvable:$true] %s64
      %s66 = sshll.u32 [#allocation4], 4
      %s67 = int_to_ptr.vmem [resolvable:$true] %s66
      %72 = dma.hbm_to_vmem [thread:$0]  %s65, 512, %s67, [#allocation5], 128, 128, 8
    $region37: #{transformer_decoder_forward.3} parent=1 // pred_fallthru
      _
    // Predicated region
    $region38: #{transformer_decoder_forward.3} parent=1 // pred_check
      _
    $region39: #{transformer_decoder_forward.3} parent=1 // pred_check_branch
      %74 = sbr.rel (0) target = $region41
    $region40: #{transformer_decoder_forward.3} parent=1 // pred_region
      %76 = vsyncadd [#allocation5], 0
      %s78 = sshll.u32 %s9, 4
      %s79 = int_to_ptr.hbm [resolvable:$true] %s78
      %s80 = sshll.u32 [#allocation6], 4
      %s81 = int_to_ptr.vmem [resolvable:$true] %s80
      %83 = dma.hbm_to_vmem [thread:$0]  %s79, 16, %s81, [#allocation5]
    $region41: #{transformer_decoder_forward.3} parent=1 // pred_fallthru
      _
    // Predicated region
    $region42: #{transformer_decoder_forward.3} parent=1 // pred_check
      _
    $region43: #{transformer_decoder_forward.3} parent=1 // pred_check_branch
      %85 = sbr.rel (0) target = $region45
    $region44: #{transformer_decoder_forward.3} parent=1 // pred_region
      %87 = vsyncadd [#allocation8], 0
      %s88 = sshll.u32 %s10, 4
      %s89 = int_to_ptr.hbm [resolvable:$true] %s88
      %s90 = sshll.u32 [#allocation7], 4
      %s91 = int_to_ptr.vmem [resolvable:$true] %s90
      %96 = dma.hbm_to_vmem [thread:$0]  %s89, 512, %s91, [#allocation8], 128, 128, 8
    $region45: #{transformer_decoder_forward.3} parent=1 // pred_fallthru
      _
    // Predicated region
    $region46: #{transformer_decoder_forward.3} parent=1 // pred_check
      _
    $region47: #{transformer_decoder_forward.3} parent=1 // pred_check_branch
      %98 = sbr.rel (0) target = $region49
    $region48: #{transformer_decoder_forward.3} parent=1 // pred_region
      %100 = vsyncadd [#allocation8], 0
      %s102 = sshll.u32 %s11, 4
      %s103 = int_to_ptr.hbm [resolvable:$true] %s102
      %s104 = sshll.u32 [#allocation9], 4
      %s105 = int_to_ptr.vmem [resolvable:$true] %s104
      %107 = dma.hbm_to_vmem [thread:$0]  %s103, 16, %s105, [#allocation8]
    $region49: #{transformer_decoder_forward.3} parent=1 // pred_fallthru
      _
    // Predicated region
    $region50: #{transformer_decoder_forward.3} parent=1 // pred_check
      _
    $region51: #{transformer_decoder_forward.3} parent=1 // pred_check_branch
      %109 = sbr.rel (0) target = $region53
    $region52: #{transformer_decoder_forward.3} parent=1 // pred_region
      %111 = vsyncadd [#allocation11], 0
      %s112 = sshll.u32 %s12, 4
      %s113 = int_to_ptr.hbm [resolvable:$true] %s112
      %s114 = sshll.u32 [#allocation10], 4
      %s115 = int_to_ptr.vmem [resolvable:$true] %s114
      %120 = dma.hbm_to_vmem [thread:$0]  %s113, 512, %s115, [#allocation11], 128, 128, 8
    $region53: #{transformer_decoder_forward.3} parent=1 // pred_fallthru
      _
    // Predicated region
    $region54: #{transformer_decoder_forward.3} parent=1 // pred_check
      _
    $region55: #{transformer_decoder_forward.3} parent=1 // pred_check_branch
      %122 = sbr.rel (0) target = $region57
    $region56: #{transformer_decoder_forward.3} parent=1 // pred_region
      %124 = vsyncadd [#allocation11], 0
      %s126 = sshll.u32 %s13, 4
      %s127 = int_to_ptr.hbm [resolvable:$true] %s126
      %s128 = sshll.u32 [#allocation12], 4
      %s129 = int_to_ptr.vmem [resolvable:$true] %s128
      %131 = dma.hbm_to_vmem [thread:$0]  %s127, 16, %s129, [#allocation11]
    $region57: #{transformer_decoder_forward.3} parent=1 // pred_fallthru
      _
    // Predicated region
    $region58: #{transformer_decoder_forward.3} parent=1 // pred_check
      _
    $region59: #{transformer_decoder_forward.3} parent=1 // pred_check_branch
      %133 = sbr.rel (0) target = $region61
    $region60: #{transformer_decoder_forward.3} parent=1 // pred_region
      _
    $region61: #{transformer_decoder_forward.3} parent=1 // pred_fallthru
      _
    // Predicated region
    $region62: #{transformer_decoder_forward.3} parent=1 // pred_check
      _
    $region63: #{transformer_decoder_forward.3} parent=1 // pred_check_branch
      %135 = sbr.rel (0) target = $region65
    $region64: #{transformer_decoder_forward.3} parent=1 // pred_region
      %137 = vsyncadd [#allocation14], 0
      %s139 = sshll.u32 %s15, 4
      %s140 = int_to_ptr.hbm [resolvable:$true] %s139
      %s141 = sshll.u32 [#allocation13], 4
      %s142 = int_to_ptr.vmem [resolvable:$true] %s141
      %144 = dma.hbm_to_vmem [thread:$0]  %s140, 16, %s142, [#allocation14]
    $region65: #{transformer_decoder_forward.3} parent=1 // pred_fallthru
      _
    // Predicated region
    $region66: #{transformer_decoder_forward.3} parent=1 // pred_check
      _
    $region67: #{transformer_decoder_forward.3} parent=1 // pred_check_branch
      %146 = sbr.rel (0) target = $region69
    $region68: #{transformer_decoder_forward.3} parent=1 // pred_region
      %148 = vsyncadd [#allocation14], 0
      %s150 = sshll.u32 %s16, 4
      %s151 = int_to_ptr.hbm [resolvable:$true] %s150
      %s152 = sshll.u32 [#allocation15], 4
      %s153 = int_to_ptr.vmem [resolvable:$true] %s152
      %155 = dma.hbm_to_vmem [thread:$0]  %s151, 16, %s153, [#allocation14]
    $region69: #{transformer_decoder_forward.3} parent=1 // pred_fallthru
      _
    // Predicated region
    $region70: #{transformer_decoder_forward.3} parent=1 // pred_check
      _
    $region71: #{transformer_decoder_forward.3} parent=1 // pred_check_branch
      %157 = sbr.rel (0) target = $region73
    $region72: #{transformer_decoder_forward.3} parent=1 // pred_region
      %159 = vsyncadd [#allocation17], 0
      %s161 = sshll.u32 %s17, 4
      %s162 = int_to_ptr.hbm [resolvable:$true] %s161
      %s163 = sshll.u32 [#allocation16], 4
      %s164 = int_to_ptr.vmem [resolvable:$true] %s163
      %166 = dma.hbm_to_vmem [thread:$0]  %s162, 16, %s164, [#allocation17]
    $region73: #{transformer_decoder_forward.3} parent=1 // pred_fallthru
      _
    // Predicated region
    $region74: #{transformer_decoder_forward.3} parent=1 // pred_check
      _
    $region75: #{transformer_decoder_forward.3} parent=1 // pred_check_branch
      %168 = sbr.rel (0) target = $region77
    $region76: #{transformer_decoder_forward.3} parent=1 // pred_region
      %170 = vsyncadd [#allocation17], 0
      %s172 = sshll.u32 %s18, 4
      %s173 = int_to_ptr.hbm [resolvable:$true] %s172
      %s174 = sshll.u32 [#allocation18], 4
      %s175 = int_to_ptr.vmem [resolvable:$true] %s174
      %177 = dma.hbm_to_vmem [thread:$0]  %s173, 16, %s175, [#allocation17]
    $region77: #{transformer_decoder_forward.3} parent=1 // pred_fallthru
      _
    // Predicated region
    $region78: #{transformer_decoder_forward.3} parent=1 // pred_check
      _
    $region79: #{transformer_decoder_forward.3} parent=1 // pred_check_branch
      %179 = sbr.rel (0) target = $region81
    $region80: #{transformer_decoder_forward.3} parent=1 // pred_region
      %181 = vsyncadd [#allocation20], 0
      %s183 = sshll.u32 %s19, 4
      %s184 = int_to_ptr.hbm [resolvable:$true] %s183
      %s185 = sshll.u32 [#allocation19], 4
      %s186 = int_to_ptr.vmem [resolvable:$true] %s185
      %188 = dma.hbm_to_vmem [thread:$0]  %s184, 16, %s186, [#allocation20]
    $region81: #{transformer_decoder_forward.3} parent=1 // pred_fallthru
      _
    // Predicated region
    $region82: #{transformer_decoder_forward.3} parent=1 // pred_check
      _
    $region83: #{transformer_decoder_forward.3} parent=1 // pred_check_branch
      %190 = sbr.rel (0) target = $region85
    $region84: #{transformer_decoder_forward.3} parent=1 // pred_region
      %192 = vsyncadd [#allocation20], 0
      %s194 = sshll.u32 %s20, 4
      %s195 = int_to_ptr.hbm [resolvable:$true] %s194
      %s196 = sshll.u32 [#allocation21], 4
      %s197 = int_to_ptr.vmem [resolvable:$true] %s196
      %199 = dma.hbm_to_vmem [thread:$0]  %s195, 16, %s197, [#allocation20]
    $region85: #{transformer_decoder_forward.3} parent=1 // pred_fallthru
      _
    // Predicated region
    $region86: #{transformer_decoder_forward.3} parent=1 // pred_check
      _
    $region87: #{transformer_decoder_forward.3} parent=1 // pred_check_branch
      %201 = sbr.rel (0) target = $region89
    $region88: #{transformer_decoder_forward.3} parent=1 // pred_region
      %203 = vsyncadd [#allocation23], 0
      %s205 = sshll.u32 %s21, 4
      %s206 = int_to_ptr.hbm [resolvable:$true] %s205
      %s207 = sshll.u32 [#allocation22], 4
      %s208 = int_to_ptr.vmem [resolvable:$true] %s207
      %210 = dma.hbm_to_vmem [thread:$0]  %s206, 16, %s208, [#allocation23]
    $region89: #{transformer_decoder_forward.3} parent=1 // pred_fallthru
      _
    // Predicated region
    $region90: #{transformer_decoder_forward.3} parent=1 // pred_check
      _
    $region91: #{transformer_decoder_forward.3} parent=1 // pred_check_branch
      %212 = sbr.rel (0) target = $region93
    $region92: #{transformer_decoder_forward.3} parent=1 // pred_region
      %214 = dma.done [#allocation3], 16
    $region93: #{transformer_decoder_forward.3} parent=1 // pred_fallthru
      _
    // Predicated region
    $region94: #{transformer_decoder_forward.3} parent=1 // pred_check
      _
    $region95: #{transformer_decoder_forward.3} parent=1 // pred_check_branch
      %216 = sbr.rel (0) target = $region97
    $region96: #{transformer_decoder_forward.3} parent=1 // pred_region
      %218 = dma.done [#allocation5], 512
    $region97: #{transformer_decoder_forward.3} parent=1 // pred_fallthru
      _
    // Predicated region
    $region98: #{transformer_decoder_forward.3} parent=1 // pred_check
      _
    $region99: #{transformer_decoder_forward.3} parent=1 // pred_check_branch
      %220 = sbr.rel (0) target = $region101
    $region100: #{transformer_decoder_forward.3} parent=1 // pred_region
      %222 = dma.done [#allocation5], 16
    $region101: #{transformer_decoder_forward.3} parent=1 // pred_fallthru
      _
    // Predicated region
    $region102: #{transformer_decoder_forward.3} parent=1 // pred_check
      _
    $region103: #{transformer_decoder_forward.3} parent=1 // pred_check_branch
      %224 = sbr.rel (0) target = $region105
    $region104: #{transformer_decoder_forward.3} parent=1 // pred_region
      %226 = dma.done [#allocation8], 512
    $region105: #{transformer_decoder_forward.3} parent=1 // pred_fallthru
      _
    // Predicated region
    $region106: #{transformer_decoder_forward.3} parent=1 // pred_check
      _
    $region107: #{transformer_decoder_forward.3} parent=1 // pred_check_branch
      %228 = sbr.rel (0) target = $region109
    $region108: #{transformer_decoder_forward.3} parent=1 // pred_region
      %230 = dma.done [#allocation8], 16
    $region109: #{transformer_decoder_forward.3} parent=1 // pred_fallthru
      _
    // Predicated region
    $region110: #{transformer_decoder_forward.3} parent=1 // pred_check
      _
    $region111: #{transformer_decoder_forward.3} parent=1 // pred_check_branch
      %232 = sbr.rel (0) target = $region113
    $region112: #{transformer_decoder_forward.3} parent=1 // pred_region
      %234 = dma.done [#allocation11], 512
    $region113: #{transformer_decoder_forward.3} parent=1 // pred_fallthru
      _
    // Predicated region
    $region114: #{transformer_decoder_forward.3} parent=1 // pred_check
      _
    $region115: #{transformer_decoder_forward.3} parent=1 // pred_check_branch
      %236 = sbr.rel (0) target = $region117
    $region116: #{transformer_decoder_forward.3} parent=1 // pred_region
      %238 = dma.done [#allocation11], 16
    $region117: #{transformer_decoder_forward.3} parent=1 // pred_fallthru
      _
    // Predicated region
    $region118: #{transformer_decoder_forward.3} parent=1 // pred_check
      _
    $region119: #{transformer_decoder_forward.3} parent=1 // pred_check_branch
      %240 = sbr.rel (0) target = $region121
    $region120: #{transformer_decoder_forward.3} parent=1 // pred_region
      %242 = dma.done [#allocation14], 16
    $region121: #{transformer_decoder_forward.3} parent=1 // pred_fallthru
      _
    // Predicated region
    $region122: #{transformer_decoder_forward.3} parent=1 // pred_check
      _
    $region123: #{transformer_decoder_forward.3} parent=1 // pred_check_branch
      %244 = sbr.rel (0) target = $region125
    $region124: #{transformer_decoder_forward.3} parent=1 // pred_region
      %246 = dma.done [#allocation14], 16
    $region125: #{transformer_decoder_forward.3} parent=1 // pred_fallthru
      _
    // Predicated region
    $region126: #{transformer_decoder_forward.3} parent=1 // pred_check
      _
    $region127: #{transformer_decoder_forward.3} parent=1 // pred_check_branch
      %248 = sbr.rel (0) target = $region129
    $region128: #{transformer_decoder_forward.3} parent=1 // pred_region
      %250 = dma.done [#allocation17], 16
    $region129: #{transformer_decoder_forward.3} parent=1 // pred_fallthru
      _
    // Predicated region
    $region130: #{transformer_decoder_forward.3} parent=1 // pred_check
      _
    $region131: #{transformer_decoder_forward.3} parent=1 // pred_check_branch
      %252 = sbr.rel (0) target = $region133
    $region132: #{transformer_decoder_forward.3} parent=1 // pred_region
      %254 = dma.done [#allocation17], 16
    $region133: #{transformer_decoder_forward.3} parent=1 // pred_fallthru
      _
    // Predicated region
    $region134: #{transformer_decoder_forward.3} parent=1 // pred_check
      _
    $region135: #{transformer_decoder_forward.3} parent=1 // pred_check_branch
      %256 = sbr.rel (0) target = $region137
    $region136: #{transformer_decoder_forward.3} parent=1 // pred_region
      %258 = dma.done [#allocation20], 16
    $region137: #{transformer_decoder_forward.3} parent=1 // pred_fallthru
      _
    // Predicated region
    $region138: #{transformer_decoder_forward.3} parent=1 // pred_check
      _
    $region139: #{transformer_decoder_forward.3} parent=1 // pred_check_branch
      %260 = sbr.rel (0) target = $region141
    $region140: #{transformer_decoder_forward.3} parent=1 // pred_region
      %262 = dma.done [#allocation20], 16
    $region141: #{transformer_decoder_forward.3} parent=1 // pred_fallthru
      _
    // Predicated region
    $region142: #{transformer_decoder_forward.3} parent=1 // pred_check
      _
    $region143: #{transformer_decoder_forward.3} parent=1 // pred_check_branch
      %264 = sbr.rel (0) target = $region145
    $region144: #{transformer_decoder_forward.3} parent=1 // pred_region
      %266 = dma.done [#allocation23], 16
    $region145: #{transformer_decoder_forward.3} parent=1 // pred_fallthru
      _
    %v267 = vld [vmem:[%s0] sm:$0xff]
    %v268 = vld [vmem:[%s0 + $0x8] sm:$0xff]
    %v269 = vld [vmem:[%s1] sm:$0xff]
    %v270 = vld [vmem:[%s1 + $0x8] sm:$0xff]
    %v271 = vld [vmem:[%s1 + $0x10] sm:$0xff]
    %v272 = vld [vmem:[%s1 + $0x18] sm:$0xff]
    %v273 = vld [vmem:[%s2] sm:$0xff]
    %v274 = vld [vmem:[%s2 + $0x8] sm:$0xff]
    %v275 = vld [vmem:[%s2 + $0x10] sm:$0xff]
    %v276 = vld [vmem:[%s2 + $0x18] sm:$0xff]
    %v277 = vld [vmem:[%s3] sm:$0x1]
    %v279 = vperm.slane %v277, 0
    %vm281 = vcmask 261120
    %v283 = vsel %vm281, %v267, 0
    %v286 = vsel %vm281, %v268, 0
    %288 = vmatpush.msra.mxu0 0.0
    %289 = vmatpush.msra.mxu0 0.0
    %290 = vmatpush.msra.mxu0 0.0
    %291 = vmatpush.msra.mxu0 0.0
    %292 = vmatpush.msra.mxu0 0.0
    %293 = vmatpush.msra.mxu0 0.0
    %294 = vmatpush.msra.mxu0 0.0
    %295 = vmatpush.msra.mxu0 0.0
    %296 = vmatpush.msra.mxu0 0.0
    %297 = vmatpush.msra.mxu0 0.0
    %298 = vmatpush.msra.mxu0 0.0
    %299 = vmatpush.msra.mxu0 0.0
    %300 = vmatpush.msra.mxu0 %v276
    %301 = vmatpush.msra.mxu0 %v275
    %302 = vmatpush.msra.mxu0 %v274
    %303 = vmatpush.msra.mxu0 %v273
    %304 = vmatmul.f32.gmra.mxu0 %v283
    %v305 = vpop.f32.mrf.mxu0
    %v306 = vadd.f32 %v279, %v305
    %307 = vmatmul.f32.gmra.mxu0 %v286
    %v308 = vpop.f32.mrf.mxu0
    %v309 = vadd.f32 %v279, %v308
    %310 = vdwg.mxu0
    %312 = vrot.lane.b32.xlu0 %v306, 96
    %v313 = vpop.permute.xlu0 %312
    %vm314 = vcmask 64512
    %v315 = vsel %vm314, %v306, 0
    %v317 = vsel %vm314, %v313, 0
    %319 = vmatpush.xpose.msra.mxu0 0.0
    %320 = vmatpush.xpose.msra.mxu0 0.0
    %321 = vmatpush.xpose.msra.mxu0 0.0
    %322 = vmatpush.xpose.msra.mxu0 0.0
    %323 = vmatpush.xpose.msra.mxu0 0.0
    %324 = vmatpush.xpose.msra.mxu0 0.0
    %325 = vmatpush.xpose.msra.mxu0 0.0
    %326 = vmatpush.xpose.msra.mxu0 0.0
    %327 = vmatpush.xpose.msra.mxu0 0.0
    %328 = vmatpush.xpose.msra.mxu0 0.0
    %329 = vmatpush.xpose.msra.mxu0 0.0
    %330 = vmatpush.xpose.msra.mxu0 0.0
    %331 = vmatpush.xpose.msra.mxu0 0.0
    %332 = vmatpush.xpose.msra.mxu0 0.0
    %333 = vmatpush.xpose.msra.mxu0 0.0
    %334 = vmatpush.xpose.msra.mxu0 %v317
    %335 = vmatmul.f32.gmra.mxu0 %v315
    %v336 = vpop.f32.mrf.mxu0
    %v337 = vadd.f32 0.0, %v336
    %338 = vdwg.mxu0
    %340 = vrot.lane.b32.xlu0 %v309, 96
    %v341 = vpop.permute.xlu0 %340
    %v342 = vsel %vm314, %v309, 0
    %v344 = vsel %vm314, %v341, 0
    %346 = vmatpush.xpose.msra.mxu0 0.0
    %347 = vmatpush.xpose.msra.mxu0 0.0
    %348 = vmatpush.xpose.msra.mxu0 0.0
    %349 = vmatpush.xpose.msra.mxu0 0.0
    %350 = vmatpush.xpose.msra.mxu0 0.0
    %351 = vmatpush.xpose.msra.mxu0 0.0
    %352 = vmatpush.xpose.msra.mxu0 0.0
    %353 = vmatpush.xpose.msra.mxu0 0.0
    %354 = vmatpush.xpose.msra.mxu0 0.0
    %355 = vmatpush.xpose.msra.mxu0 0.0
    %356 = vmatpush.xpose.msra.mxu0 0.0
    %357 = vmatpush.xpose.msra.mxu0 0.0
    %358 = vmatpush.xpose.msra.mxu0 0.0
    %359 = vmatpush.xpose.msra.mxu0 0.0
    %360 = vmatpush.xpose.msra.mxu0 0.0
    %361 = vmatpush.xpose.msra.mxu0 %v344
    %362 = vmatmul.f32.gmra.mxu0 %v342
    %v363 = vpop.f32.mrf.mxu0
    %v364 = vadd.f32 0.0, %v363
    %365 = vdwg.mxu0
    %v366 = vmul.f32 %v337, 0.35355338
    %v367 = vmul.f32 %v364, 0.35355338
    %v368 = vsel %vm314, %v366, -inf
    %369 = vmax.xlane.f32.xlu0 %v368
    %v370 = vpop.xlane.xlu0 %369
    %v371 = vsel %vm314, %v367, -inf
    %372 = vmax.xlane.f32.xlu0 %v371
    %v373 = vpop.xlane.xlu0 %372
    %v374 = vsub.f32 %v366, %v370
    %v375 = vsub.f32 %v367, %v373
    %v376 = vmul.f32 %v374, 1.442695
    %v377 = vpow.pop %v376
    %v378 = vmul.f32 %v375, 1.442695
    %v379 = vpow.pop %v378
    %v380 = vsel %vm314, %v377, 0.0
    %381 = vadd.xlane.f32.xlu0 %v380
    %v382 = vpop.xlane.xlu0 %381
    %v383 = vsel %vm314, %v379, 0.0
    %384 = vadd.xlane.f32.xlu0 %v383
    %v385 = vpop.xlane.xlu0 %384
    %v386 = vrcp.pop %v382
    %v387 = vrcp.pop %v385
    %v388 = vmul.f32 %v377, %v386
    %v389 = vmul.f32 %v379, %v387
    %390 = vrot.lane.b32.xlu0 %v306, 64
    %v391 = vpop.permute.xlu0 %390
    %v394 = vsel %vm314, %v388, 0
    %396 = vmatpush.msra.mxu0 0.0
    %397 = vmatpush.msra.mxu0 0.0
    %398 = vmatpush.msra.mxu0 0.0
    %399 = vmatpush.msra.mxu0 0.0
    %400 = vmatpush.msra.mxu0 0.0
    %401 = vmatpush.msra.mxu0 0.0
    %402 = vmatpush.msra.mxu0 0.0
    %403 = vmatpush.msra.mxu0 0.0
    %404 = vmatpush.msra.mxu0 0.0
    %405 = vmatpush.msra.mxu0 0.0
    %406 = vmatpush.msra.mxu0 0.0
    %407 = vmatpush.msra.mxu0 0.0
    %408 = vmatpush.msra.mxu0 0.0
    %409 = vmatpush.msra.mxu0 0.0
    %410 = vmatpush.msra.mxu0 0.0
    %411 = vmatpush.msra.mxu0 %v391
    %412 = vmatmul.f32.gmra.mxu0 %v394
    %v413 = vpop.f32.mrf.mxu0
    %v414 = vadd.f32 0.0, %v413
    %415 = vdwg.mxu0
    %416 = vrot.lane.b32.xlu0 %v309, 64
    %v417 = vpop.permute.xlu0 %416
    %v420 = vsel %vm314, %v389, 0
    %422 = vmatpush.msra.mxu0 0.0
    %423 = vmatpush.msra.mxu0 0.0
    %424 = vmatpush.msra.mxu0 0.0
    %425 = vmatpush.msra.mxu0 0.0
    %426 = vmatpush.msra.mxu0 0.0
    %427 = vmatpush.msra.mxu0 0.0
    %428 = vmatpush.msra.mxu0 0.0
    %429 = vmatpush.msra.mxu0 0.0
    %430 = vmatpush.msra.mxu0 0.0
    %431 = vmatpush.msra.mxu0 0.0
    %432 = vmatpush.msra.mxu0 0.0
    %433 = vmatpush.msra.mxu0 0.0
    %434 = vmatpush.msra.mxu0 0.0
    %435 = vmatpush.msra.mxu0 0.0
    %436 = vmatpush.msra.mxu0 0.0
    %437 = vmatpush.msra.mxu0 %v417
    %438 = vmatmul.f32.gmra.mxu0 %v420
    %v439 = vpop.f32.mrf.mxu0
    %v440 = vadd.f32 0.0, %v439
    %441 = vdwg.mxu0
    %v442 = vld [vmem:[%s4] sm:$0xff]
    %443 = vrot.lane.b32.xlu0 %v306, 120
    %v444 = vpop.permute.xlu0 %443
    %445 = vrot.lane.b32.xlu0 %v306, 88
    %v446 = vpop.permute.xlu0 %445
    %v447 = vsel %vm314, %v444, 0
    %v449 = vsel %vm314, %v446, 0
    %451 = vmatpush.xpose.msra.mxu0 0.0
    %452 = vmatpush.xpose.msra.mxu0 0.0
    %453 = vmatpush.xpose.msra.mxu0 0.0
    %454 = vmatpush.xpose.msra.mxu0 0.0
    %455 = vmatpush.xpose.msra.mxu0 0.0
    %456 = vmatpush.xpose.msra.mxu0 0.0
    %457 = vmatpush.xpose.msra.mxu0 0.0
    %458 = vmatpush.xpose.msra.mxu0 0.0
    %459 = vmatpush.xpose.msra.mxu0 0.0
    %460 = vmatpush.xpose.msra.mxu0 0.0
    %461 = vmatpush.xpose.msra.mxu0 0.0
    %462 = vmatpush.xpose.msra.mxu0 0.0
    %463 = vmatpush.xpose.msra.mxu0 0.0
    %464 = vmatpush.xpose.msra.mxu0 0.0
    %465 = vmatpush.xpose.msra.mxu0 0.0
    %466 = vmatpush.xpose.msra.mxu0 %v449
    %467 = vmatmul.f32.gmra.mxu0 %v447
    %v468 = vpop.f32.mrf.mxu0
    %v469 = vadd.f32 0.0, %v468
    %470 = vdwg.mxu0
    %471 = vrot.lane.b32.xlu0 %v309, 120
    %v472 = vpop.permute.xlu0 %471
    %473 = vrot.lane.b32.xlu0 %v309, 88
    %v474 = vpop.permute.xlu0 %473
    %v475 = vsel %vm314, %v472, 0
    %v477 = vsel %vm314, %v474, 0
    %479 = vmatpush.xpose.msra.mxu0 0.0
    %480 = vmatpush.xpose.msra.mxu0 0.0
    %481 = vmatpush.xpose.msra.mxu0 0.0
    %482 = vmatpush.xpose.msra.mxu0 0.0
    %483 = vmatpush.xpose.msra.mxu0 0.0
    %484 = vmatpush.xpose.msra.mxu0 0.0
    %485 = vmatpush.xpose.msra.mxu0 0.0
    %486 = vmatpush.xpose.msra.mxu0 0.0
    %487 = vmatpush.xpose.msra.mxu0 0.0
    %488 = vmatpush.xpose.msra.mxu0 0.0
    %489 = vmatpush.xpose.msra.mxu0 0.0
    %490 = vmatpush.xpose.msra.mxu0 0.0
    %491 = vmatpush.xpose.msra.mxu0 0.0
    %492 = vmatpush.xpose.msra.mxu0 0.0
    %493 = vmatpush.xpose.msra.mxu0 0.0
    %494 = vmatpush.xpose.msra.mxu0 %v477
    %495 = vmatmul.f32.gmra.mxu0 %v475
    %v496 = vpop.f32.mrf.mxu0
    %v497 = vadd.f32 0.0, %v496
    %498 = vdwg.mxu0
    %v499 = vmul.f32 %v469, 0.35355338
    %v500 = vmul.f32 %v497, 0.35355338
    %v501 = vsel %vm314, %v499, -inf
    %502 = vmax.xlane.f32.xlu0 %v501
    %v503 = vpop.xlane.xlu0 %502
    %v504 = vsel %vm314, %v500, -inf
    %505 = vmax.xlane.f32.xlu0 %v504
    %v506 = vpop.xlane.xlu0 %505
    %v507 = vsub.f32 %v499, %v503
    %v508 = vsub.f32 %v500, %v506
    %v509 = vmul.f32 %v507, 1.442695
    %v510 = vpow.pop %v509
    %v511 = vmul.f32 %v508, 1.442695
    %v512 = vpow.pop %v511
    %v513 = vsel %vm314, %v510, 0.0
    %514 = vadd.xlane.f32.xlu0 %v513
    %v515 = vpop.xlane.xlu0 %514
    %v516 = vsel %vm314, %v512, 0.0
    %517 = vadd.xlane.f32.xlu0 %v516
    %v518 = vpop.xlane.xlu0 %517
    %v519 = vrcp.pop %v515
    %v520 = vrcp.pop %v518
    %v521 = vmul.f32 %v510, %v519
    %v522 = vmul.f32 %v512, %v520
    %523 = vrot.lane.b32.xlu0 %v306, 56
    %v524 = vpop.permute.xlu0 %523
    %v527 = vsel %vm314, %v521, 0
    %529 = vmatpush.msra.mxu0 0.0
    %530 = vmatpush.msra.mxu0 0.0
    %531 = vmatpush.msra.mxu0 0.0
    %532 = vmatpush.msra.mxu0 0.0
    %533 = vmatpush.msra.mxu0 0.0
    %534 = vmatpush.msra.mxu0 0.0
    %535 = vmatpush.msra.mxu0 0.0
    %536 = vmatpush.msra.mxu0 0.0
    %537 = vmatpush.msra.mxu0 0.0
    %538 = vmatpush.msra.mxu0 0.0
    %539 = vmatpush.msra.mxu0 0.0
    %540 = vmatpush.msra.mxu0 0.0
    %541 = vmatpush.msra.mxu0 0.0
    %542 = vmatpush.msra.mxu0 0.0
    %543 = vmatpush.msra.mxu0 0.0
    %544 = vmatpush.msra.mxu0 %v524
    %545 = vmatmul.f32.gmra.mxu0 %v527
    %v546 = vpop.f32.mrf.mxu0
    %v547 = vadd.f32 0.0, %v546
    %548 = vdwg.mxu0
    %549 = vrot.lane.b32.xlu0 %v309, 56
    %v550 = vpop.permute.xlu0 %549
    %v553 = vsel %vm314, %v522, 0
    %555 = vmatpush.msra.mxu0 0.0
    %556 = vmatpush.msra.mxu0 0.0
    %557 = vmatpush.msra.mxu0 0.0
    %558 = vmatpush.msra.mxu0 0.0
    %559 = vmatpush.msra.mxu0 0.0
    %560 = vmatpush.msra.mxu0 0.0
    %561 = vmatpush.msra.mxu0 0.0
    %562 = vmatpush.msra.mxu0 0.0
    %563 = vmatpush.msra.mxu0 0.0
    %564 = vmatpush.msra.mxu0 0.0
    %565 = vmatpush.msra.mxu0 0.0
    %566 = vmatpush.msra.mxu0 0.0
    %567 = vmatpush.msra.mxu0 0.0
    %568 = vmatpush.msra.mxu0 0.0
    %569 = vmatpush.msra.mxu0 0.0
    %570 = vmatpush.msra.mxu0 %v550
    %571 = vmatmul.f32.gmra.mxu0 %v553
    %v572 = vpop.f32.mrf.mxu0
    %v573 = vadd.f32 0.0, %v572
    %574 = vdwg.mxu0
    %v575 = vld [vmem:[%s4 + $0x8] sm:$0xff]
    %v577 = vsel %vm314, %v547, 0
    %v580 = vsel %vm314, %v573, 0
    %582 = vmatpush.msra.mxu0 0.0
    %583 = vmatpush.msra.mxu0 0.0
    %584 = vmatpush.msra.mxu0 0.0
    %585 = vmatpush.msra.mxu0 0.0
    %586 = vmatpush.msra.mxu0 0.0
    %587 = vmatpush.msra.mxu0 0.0
    %588 = vmatpush.msra.mxu0 0.0
    %589 = vmatpush.msra.mxu0 0.0
    %590 = vmatpush.msra.mxu0 0.0
    %591 = vmatpush.msra.mxu0 0.0
    %592 = vmatpush.msra.mxu0 0.0
    %593 = vmatpush.msra.mxu0 0.0
    %594 = vmatpush.msra.mxu0 0.0
    %595 = vmatpush.msra.mxu0 0.0
    %596 = vmatpush.msra.mxu0 0.0
    %597 = vmatpush.msra.mxu0 %v575
    %598 = vmatmul.f32.gmra.mxu0 %v577
    %v599 = vpop.f32.mrf.mxu0
    %v600 = vadd.f32 0.0, %v599
    %601 = vmatmul.f32.gmra.mxu0 %v580
    %v602 = vpop.f32.mrf.mxu0
    %v603 = vadd.f32 0.0, %v602
    %604 = vdwg.mxu0
    %v606 = vsel %vm314, %v414, 0
    %v609 = vsel %vm314, %v440, 0
    %611 = vmatpush.msra.mxu0 0.0
    %612 = vmatpush.msra.mxu0 0.0
    %613 = vmatpush.msra.mxu0 0.0
    %614 = vmatpush.msra.mxu0 0.0
    %615 = vmatpush.msra.mxu0 0.0
    %616 = vmatpush.msra.mxu0 0.0
    %617 = vmatpush.msra.mxu0 0.0
    %618 = vmatpush.msra.mxu0 0.0
    %619 = vmatpush.msra.mxu0 0.0
    %620 = vmatpush.msra.mxu0 0.0
    %621 = vmatpush.msra.mxu0 0.0
    %622 = vmatpush.msra.mxu0 0.0
    %623 = vmatpush.msra.mxu0 0.0
    %624 = vmatpush.msra.mxu0 0.0
    %625 = vmatpush.msra.mxu0 0.0
    %626 = vmatpush.msra.mxu0 %v442
    %627 = vmatmul.f32.gmra.mxu0 %v606
    %v628 = vpop.f32.mrf.mxu0
    %v629 = vadd.f32 %v600, %v628
    %630 = vmatmul.f32.gmra.mxu0 %v609
    %v631 = vpop.f32.mrf.mxu0
    %v632 = vadd.f32 %v603, %v631
    %633 = vdwg.mxu0
    %634 = vrot.lane.b32.xlu0 %v306, 112
    %v635 = vpop.permute.xlu0 %634
    %636 = vrot.lane.b32.xlu0 %v306, 80
    %v637 = vpop.permute.xlu0 %636
    %v638 = vsel %vm314, %v635, 0
    %v640 = vsel %vm314, %v637, 0
    %642 = vmatpush.xpose.msra.mxu0 0.0
    %643 = vmatpush.xpose.msra.mxu0 0.0
    %644 = vmatpush.xpose.msra.mxu0 0.0
    %645 = vmatpush.xpose.msra.mxu0 0.0
    %646 = vmatpush.xpose.msra.mxu0 0.0
    %647 = vmatpush.xpose.msra.mxu0 0.0
    %648 = vmatpush.xpose.msra.mxu0 0.0
    %649 = vmatpush.xpose.msra.mxu0 0.0
    %650 = vmatpush.xpose.msra.mxu0 0.0
    %651 = vmatpush.xpose.msra.mxu0 0.0
    %652 = vmatpush.xpose.msra.mxu0 0.0
    %653 = vmatpush.xpose.msra.mxu0 0.0
    %654 = vmatpush.xpose.msra.mxu0 0.0
    %655 = vmatpush.xpose.msra.mxu0 0.0
    %656 = vmatpush.xpose.msra.mxu0 0.0
    %657 = vmatpush.xpose.msra.mxu0 %v640
    %658 = vmatmul.f32.gmra.mxu0 %v638
    %v659 = vpop.f32.mrf.mxu0
    %v660 = vadd.f32 0.0, %v659
    %661 = vdwg.mxu0
    %662 = vrot.lane.b32.xlu0 %v309, 112
    %v663 = vpop.permute.xlu0 %662
    %664 = vrot.lane.b32.xlu0 %v309, 80
    %v665 = vpop.permute.xlu0 %664
    %v666 = vsel %vm314, %v663, 0
    %v668 = vsel %vm314, %v665, 0
    %670 = vmatpush.xpose.msra.mxu0 0.0
    %671 = vmatpush.xpose.msra.mxu0 0.0
    %672 = vmatpush.xpose.msra.mxu0 0.0
    %673 = vmatpush.xpose.msra.mxu0 0.0
    %674 = vmatpush.xpose.msra.mxu0 0.0
    %675 = vmatpush.xpose.msra.mxu0 0.0
    %676 = vmatpush.xpose.msra.mxu0 0.0
    %677 = vmatpush.xpose.msra.mxu0 0.0
    %678 = vmatpush.xpose.msra.mxu0 0.0
    %679 = vmatpush.xpose.msra.mxu0 0.0
    %680 = vmatpush.xpose.msra.mxu0 0.0
    %681 = vmatpush.xpose.msra.mxu0 0.0
    %682 = vmatpush.xpose.msra.mxu0 0.0
    %683 = vmatpush.xpose.msra.mxu0 0.0
    %684 = vmatpush.xpose.msra.mxu0 0.0
    %685 = vmatpush.xpose.msra.mxu0 %v668
    %686 = vmatmul.f32.gmra.mxu0 %v666
    %v687 = vpop.f32.mrf.mxu0
    %v688 = vadd.f32 0.0, %v687
    %689 = vdwg.mxu0
    %v690 = vmul.f32 %v660, 0.35355338
    %v691 = vmul.f32 %v688, 0.35355338
    %v692 = vsel %vm314, %v690, -inf
    %693 = vmax.xlane.f32.xlu0 %v692
    %v694 = vpop.xlane.xlu0 %693
    %v695 = vsel %vm314, %v691, -inf
    %696 = vmax.xlane.f32.xlu0 %v695
    %v697 = vpop.xlane.xlu0 %696
    %v698 = vsub.f32 %v690, %v694
    %v699 = vsub.f32 %v691, %v697
    %v700 = vmul.f32 %v698, 1.442695
    %v701 = vpow.pop %v700
    %v702 = vmul.f32 %v699, 1.442695
    %v703 = vpow.pop %v702
    %v704 = vsel %vm314, %v701, 0.0
    %705 = vadd.xlane.f32.xlu0 %v704
    %v706 = vpop.xlane.xlu0 %705
    %v707 = vsel %vm314, %v703, 0.0
    %708 = vadd.xlane.f32.xlu0 %v707
    %v709 = vpop.xlane.xlu0 %708
    %v710 = vrcp.pop %v706
    %v711 = vrcp.pop %v709
    %v712 = vmul.f32 %v701, %v710
    %v713 = vmul.f32 %v703, %v711
    %714 = vrot.lane.b32.xlu0 %v306, 48
    %v715 = vpop.permute.xlu0 %714
    %v718 = vsel %vm314, %v712, 0
    %720 = vmatpush.msra.mxu0 0.0
    %721 = vmatpush.msra.mxu0 0.0
    %722 = vmatpush.msra.mxu0 0.0
    %723 = vmatpush.msra.mxu0 0.0
    %724 = vmatpush.msra.mxu0 0.0
    %725 = vmatpush.msra.mxu0 0.0
    %726 = vmatpush.msra.mxu0 0.0
    %727 = vmatpush.msra.mxu0 0.0
    %728 = vmatpush.msra.mxu0 0.0
    %729 = vmatpush.msra.mxu0 0.0
    %730 = vmatpush.msra.mxu0 0.0
    %731 = vmatpush.msra.mxu0 0.0
    %732 = vmatpush.msra.mxu0 0.0
    %733 = vmatpush.msra.mxu0 0.0
    %734 = vmatpush.msra.mxu0 0.0
    %735 = vmatpush.msra.mxu0 %v715
    %736 = vmatmul.f32.gmra.mxu0 %v718
    %v737 = vpop.f32.mrf.mxu0
    %v738 = vadd.f32 0.0, %v737
    %739 = vdwg.mxu0
    %740 = vrot.lane.b32.xlu0 %v309, 48
    %v741 = vpop.permute.xlu0 %740
    %v744 = vsel %vm314, %v713, 0
    %746 = vmatpush.msra.mxu0 0.0
    %747 = vmatpush.msra.mxu0 0.0
    %748 = vmatpush.msra.mxu0 0.0
    %749 = vmatpush.msra.mxu0 0.0
    %750 = vmatpush.msra.mxu0 0.0
    %751 = vmatpush.msra.mxu0 0.0
    %752 = vmatpush.msra.mxu0 0.0
    %753 = vmatpush.msra.mxu0 0.0
    %754 = vmatpush.msra.mxu0 0.0
    %755 = vmatpush.msra.mxu0 0.0
    %756 = vmatpush.msra.mxu0 0.0
    %757 = vmatpush.msra.mxu0 0.0
    %758 = vmatpush.msra.mxu0 0.0
    %759 = vmatpush.msra.mxu0 0.0
    %760 = vmatpush.msra.mxu0 0.0
    %761 = vmatpush.msra.mxu0 %v741
    %762 = vmatmul.f32.gmra.mxu0 %v744
    %v763 = vpop.f32.mrf.mxu0
    %v764 = vadd.f32 0.0, %v763
    %765 = vdwg.mxu0
    %v766 = vld [vmem:[%s4 + $0x10] sm:$0xff]
    %v768 = vsel %vm314, %v738, 0
    %v771 = vsel %vm314, %v764, 0
    %773 = vmatpush.msra.mxu0 0.0
    %774 = vmatpush.msra.mxu0 0.0
    %775 = vmatpush.msra.mxu0 0.0
    %776 = vmatpush.msra.mxu0 0.0
    %777 = vmatpush.msra.mxu0 0.0
    %778 = vmatpush.msra.mxu0 0.0
    %779 = vmatpush.msra.mxu0 0.0
    %780 = vmatpush.msra.mxu0 0.0
    %781 = vmatpush.msra.mxu0 0.0
    %782 = vmatpush.msra.mxu0 0.0
    %783 = vmatpush.msra.mxu0 0.0
    %784 = vmatpush.msra.mxu0 0.0
    %785 = vmatpush.msra.mxu0 0.0
    %786 = vmatpush.msra.mxu0 0.0
    %787 = vmatpush.msra.mxu0 0.0
    %788 = vmatpush.msra.mxu0 %v766
    %789 = vmatmul.f32.gmra.mxu0 %v768
    %v790 = vpop.f32.mrf.mxu0
    %v791 = vadd.f32 0.0, %v790
    %792 = vmatmul.f32.gmra.mxu0 %v771
    %v793 = vpop.f32.mrf.mxu0
    %v794 = vadd.f32 0.0, %v793
    %795 = vdwg.mxu0
    %v796 = vadd.f32 %v629, %v791
    %v797 = vadd.f32 %v632, %v794
    %798 = vrot.lane.b32.xlu0 %v306, 104
    %v799 = vpop.permute.xlu0 %798
    %800 = vrot.lane.b32.xlu0 %v306, 72
    %v801 = vpop.permute.xlu0 %800
    %v802 = vsel %vm314, %v799, 0
    %v804 = vsel %vm314, %v801, 0
    %806 = vmatpush.xpose.msra.mxu0 0.0
    %807 = vmatpush.xpose.msra.mxu0 0.0
    %808 = vmatpush.xpose.msra.mxu0 0.0
    %809 = vmatpush.xpose.msra.mxu0 0.0
    %810 = vmatpush.xpose.msra.mxu0 0.0
    %811 = vmatpush.xpose.msra.mxu0 0.0
    %812 = vmatpush.xpose.msra.mxu0 0.0
    %813 = vmatpush.xpose.msra.mxu0 0.0
    %814 = vmatpush.xpose.msra.mxu0 0.0
    %815 = vmatpush.xpose.msra.mxu0 0.0
    %816 = vmatpush.xpose.msra.mxu0 0.0
    %817 = vmatpush.xpose.msra.mxu0 0.0
    %818 = vmatpush.xpose.msra.mxu0 0.0
    %819 = vmatpush.xpose.msra.mxu0 0.0
    %820 = vmatpush.xpose.msra.mxu0 0.0
    %821 = vmatpush.xpose.msra.mxu0 %v804
    %822 = vmatmul.f32.gmra.mxu0 %v802
    %v823 = vpop.f32.mrf.mxu0
    %v824 = vadd.f32 0.0, %v823
    %825 = vdwg.mxu0
    %826 = vrot.lane.b32.xlu0 %v309, 104
    %v827 = vpop.permute.xlu0 %826
    %828 = vrot.lane.b32.xlu0 %v309, 72
    %v829 = vpop.permute.xlu0 %828
    %v830 = vsel %vm314, %v827, 0
    %v832 = vsel %vm314, %v829, 0
    %834 = vmatpush.xpose.msra.mxu0 0.0
    %835 = vmatpush.xpose.msra.mxu0 0.0
    %836 = vmatpush.xpose.msra.mxu0 0.0
    %837 = vmatpush.xpose.msra.mxu0 0.0
    %838 = vmatpush.xpose.msra.mxu0 0.0
    %839 = vmatpush.xpose.msra.mxu0 0.0
    %840 = vmatpush.xpose.msra.mxu0 0.0
    %841 = vmatpush.xpose.msra.mxu0 0.0
    %842 = vmatpush.xpose.msra.mxu0 0.0
    %843 = vmatpush.xpose.msra.mxu0 0.0
    %844 = vmatpush.xpose.msra.mxu0 0.0
    %845 = vmatpush.xpose.msra.mxu0 0.0
    %846 = vmatpush.xpose.msra.mxu0 0.0
    %847 = vmatpush.xpose.msra.mxu0 0.0
    %848 = vmatpush.xpose.msra.mxu0 0.0
    %849 = vmatpush.xpose.msra.mxu0 %v832
    %850 = vmatmul.f32.gmra.mxu0 %v830
    %v851 = vpop.f32.mrf.mxu0
    %v852 = vadd.f32 0.0, %v851
    %853 = vdwg.mxu0
    %v854 = vmul.f32 %v824, 0.35355338
    %v855 = vmul.f32 %v852, 0.35355338
    %v856 = vsel %vm314, %v854, -inf
    %857 = vmax.xlane.f32.xlu0 %v856
    %v858 = vpop.xlane.xlu0 %857
    %v859 = vsel %vm314, %v855, -inf
    %860 = vmax.xlane.f32.xlu0 %v859
    %v861 = vpop.xlane.xlu0 %860
    %v862 = vsub.f32 %v854, %v858
    %v863 = vsub.f32 %v855, %v861
    %v864 = vmul.f32 %v862, 1.442695
    %v865 = vpow.pop %v864
    %v866 = vmul.f32 %v863, 1.442695
    %v867 = vpow.pop %v866
    %v868 = vsel %vm314, %v865, 0.0
    %869 = vadd.xlane.f32.xlu0 %v868
    %v870 = vpop.xlane.xlu0 %869
    %v871 = vsel %vm314, %v867, 0.0
    %872 = vadd.xlane.f32.xlu0 %v871
    %v873 = vpop.xlane.xlu0 %872
    %v874 = vrcp.pop %v870
    %v875 = vrcp.pop %v873
    %v876 = vmul.f32 %v865, %v874
    %v877 = vmul.f32 %v867, %v875
    %878 = vrot.lane.b32.xlu0 %v306, 40
    %v879 = vpop.permute.xlu0 %878
    %v882 = vsel %vm314, %v876, 0
    %884 = vmatpush.msra.mxu0 0.0
    %885 = vmatpush.msra.mxu0 0.0
    %886 = vmatpush.msra.mxu0 0.0
    %887 = vmatpush.msra.mxu0 0.0
    %888 = vmatpush.msra.mxu0 0.0
    %889 = vmatpush.msra.mxu0 0.0
    %890 = vmatpush.msra.mxu0 0.0
    %891 = vmatpush.msra.mxu0 0.0
    %892 = vmatpush.msra.mxu0 0.0
    %893 = vmatpush.msra.mxu0 0.0
    %894 = vmatpush.msra.mxu0 0.0
    %895 = vmatpush.msra.mxu0 0.0
    %896 = vmatpush.msra.mxu0 0.0
    %897 = vmatpush.msra.mxu0 0.0
    %898 = vmatpush.msra.mxu0 0.0
    %899 = vmatpush.msra.mxu0 %v879
    %900 = vmatmul.f32.gmra.mxu0 %v882
    %v901 = vpop.f32.mrf.mxu0
    %v902 = vadd.f32 0.0, %v901
    %903 = vdwg.mxu0
    %904 = vrot.lane.b32.xlu0 %v309, 40
    %v905 = vpop.permute.xlu0 %904
    %v908 = vsel %vm314, %v877, 0
    %910 = vmatpush.msra.mxu0 0.0
    %911 = vmatpush.msra.mxu0 0.0
    %912 = vmatpush.msra.mxu0 0.0
    %913 = vmatpush.msra.mxu0 0.0
    %914 = vmatpush.msra.mxu0 0.0
    %915 = vmatpush.msra.mxu0 0.0
    %916 = vmatpush.msra.mxu0 0.0
    %917 = vmatpush.msra.mxu0 0.0
    %918 = vmatpush.msra.mxu0 0.0
    %919 = vmatpush.msra.mxu0 0.0
    %920 = vmatpush.msra.mxu0 0.0
    %921 = vmatpush.msra.mxu0 0.0
    %922 = vmatpush.msra.mxu0 0.0
    %923 = vmatpush.msra.mxu0 0.0
    %924 = vmatpush.msra.mxu0 0.0
    %925 = vmatpush.msra.mxu0 %v905
    %926 = vmatmul.f32.gmra.mxu0 %v908
    %v927 = vpop.f32.mrf.mxu0
    %v928 = vadd.f32 0.0, %v927
    %929 = vdwg.mxu0
    %v930 = vld [vmem:[%s4 + $0x18] sm:$0xff]
    %v932 = vsel %vm314, %v902, 0
    %v935 = vsel %vm314, %v928, 0
    %937 = vmatpush.msra.mxu0 0.0
    %938 = vmatpush.msra.mxu0 0.0
    %939 = vmatpush.msra.mxu0 0.0
    %940 = vmatpush.msra.mxu0 0.0
    %941 = vmatpush.msra.mxu0 0.0
    %942 = vmatpush.msra.mxu0 0.0
    %943 = vmatpush.msra.mxu0 0.0
    %944 = vmatpush.msra.mxu0 0.0
    %945 = vmatpush.msra.mxu0 0.0
    %946 = vmatpush.msra.mxu0 0.0
    %947 = vmatpush.msra.mxu0 0.0
    %948 = vmatpush.msra.mxu0 0.0
    %949 = vmatpush.msra.mxu0 0.0
    %950 = vmatpush.msra.mxu0 0.0
    %951 = vmatpush.msra.mxu0 0.0
    %952 = vmatpush.msra.mxu0 %v930
    %953 = vmatmul.f32.gmra.mxu0 %v932
    %v954 = vpop.f32.mrf.mxu0
    %v955 = vadd.f32 0.0, %v954
    %956 = vmatmul.f32.gmra.mxu0 %v935
    %v957 = vpop.f32.mrf.mxu0
    %v958 = vadd.f32 0.0, %v957
    %959 = vdwg.mxu0
    %v960 = vadd.f32 %v796, %v955
    %v961 = vadd.f32 %v797, %v958
    %v962 = vld [vmem:[%s5] sm:$0x1]
    %v964 = vperm.slane %v962, 0
    %v966 = vadd.f32 %v960, %v964
    %v967 = vadd.f32 %v961, %v964
    %v968 = vadd.f32 %v267, %v966
    %v969 = vadd.f32 %v268, %v967
    %v970 = vsel %vm281, %v968, 0.0
    %971 = vadd.xlane.f32.xlu0 %v970
    %v972 = vpop.xlane.xlu0 %971
    %v973 = vsel %vm281, %v969, 0.0
    %974 = vadd.xlane.f32.xlu0 %v973
    %v975 = vpop.xlane.xlu0 %974
    %v976 = vrcp.pop 32.0
    %v977 = vmul.f32 32.0, %v976
    %v978 = vsub.f32 1.0, %v977
    %v979 = vmul.f32 %v976, %v978
    %v980 = vadd.f32 %v976, %v979
    %vm981 = vweird.f32 %v976
    %v982 = vsel %vm981, %v976, %v980
    %v983 = vmul.f32 %v972, %v982
    %v984 = vmul.f32 %v975, %v982
    %v985 = vsub.f32 %v968, %v983
    %v986 = vsub.f32 %v969, %v984
    %v987 = vmul.f32 %v985, %v985
    %v988 = vmul.f32 %v986, %v986
    %v989 = vsel %vm281, %v987, 0.0
    %990 = vadd.xlane.f32.xlu0 %v989
    %v991 = vpop.xlane.xlu0 %990
    %v992 = vsel %vm281, %v988, 0.0
    %993 = vadd.xlane.f32.xlu0 %v992
    %v994 = vpop.xlane.xlu0 %993
    %v995 = vmul.f32 %v991, %v982
    %v996 = vmul.f32 %v994, %v982
    %v997 = vadd.f32 %v995, 1e-05
    %v998 = vadd.f32 %v996, 1e-05
    %v999 = vrsqrt.pop %v997
    %v1000 = vmul.f32 %v999, %v997
    %v1001 = vmul.f32 %v1000, %v999
    %v1002 = vmul.f32 0.5, %v1001
    %v1003 = vsub.f32 1.5, %v1002
    %v1004 = vmul.f32 %v999, %v1003
    %vm1005 = vweird.f32 %v997
    %vm1006 = vweird.f32 %v999
    %vm1007 = vmor %vm1005, %vm1006
    %v1008 = vsel %vm1007, %v999, %v1004
    %v1009 = vrsqrt.pop %v998
    %v1010 = vmul.f32 %v1009, %v998
    %v1011 = vmul.f32 %v1010, %v1009
    %v1012 = vmul.f32 0.5, %v1011
    %v1013 = vsub.f32 1.5, %v1012
    %v1014 = vmul.f32 %v1009, %v1013
    %vm1015 = vweird.f32 %v998
    %vm1016 = vweird.f32 %v1009
    %vm1017 = vmor %vm1015, %vm1016
    %v1018 = vsel %vm1017, %v1009, %v1014
    %v1019 = vmul.f32 %v985, %v1008
    %v1020 = vmul.f32 %v986, %v1018
    %v1021 = vld [vmem:[#allocation15] sm:$0x1]
    %v1023 = vperm.slane %v1021, 0
    %v1025 = vmul.f32 %v1019, %v1023
    %v1026 = vmul.f32 %v1020, %v1023
    %v1027 = vld [vmem:[#allocation16] sm:$0x1]
    %v1029 = vperm.slane %v1027, 0
    %v1031 = vadd.f32 %v1025, %v1029
    %v1032 = vadd.f32 %v1026, %v1029
    %v1033 = vld [vmem:[%s6] sm:$0xff]
    %v1034 = vld [vmem:[%s6 + $0x8] sm:$0xff]
    %v1035 = vld [vmem:[%s6 + $0x10] sm:$0xff]
    %v1036 = vld [vmem:[%s6 + $0x18] sm:$0xff]
    %v1037 = vld [vmem:[#allocation2] sm:$0x1]
    %v1039 = vperm.slane %v1037, 0
    %v1042 = vsel %vm281, %v1031, 0
    %v1045 = vsel %vm281, %v1032, 0
    %1047 = vmatpush.msra.mxu0 0.0
    %1048 = vmatpush.msra.mxu0 0.0
    %1049 = vmatpush.msra.mxu0 0.0
    %1050 = vmatpush.msra.mxu0 0.0
    %1051 = vmatpush.msra.mxu0 0.0
    %1052 = vmatpush.msra.mxu0 0.0
    %1053 = vmatpush.msra.mxu0 0.0
    %1054 = vmatpush.msra.mxu0 0.0
    %1055 = vmatpush.msra.mxu0 0.0
    %1056 = vmatpush.msra.mxu0 0.0
    %1057 = vmatpush.msra.mxu0 0.0
    %1058 = vmatpush.msra.mxu0 0.0
    %1059 = vmatpush.msra.mxu0 %v1036
    %1060 = vmatpush.msra.mxu0 %v1035
    %1061 = vmatpush.msra.mxu0 %v1034
    %1062 = vmatpush.msra.mxu0 %v1033
    %1063 = vmatmul.f32.gmra.mxu0 %v1042
    %v1064 = vpop.f32.mrf.mxu0
    %v1065 = vadd.f32 %v1039, %v1064
    %1066 = vmatmul.f32.gmra.mxu0 %v1045
    %v1067 = vpop.f32.mrf.mxu0
    %v1068 = vadd.f32 %v1039, %v1067
    %1069 = vdwg.mxu0
    %v1070 = vld [vmem:[#allocation4] sm:$0xff]
    %v1071 = vld [vmem:[#allocation4 + $0x8] sm:$0xff]
    %v1072 = vld [vmem:[#allocation4 + $0x10] sm:$0xff]
    %v1073 = vld [vmem:[#allocation4 + $0x18] sm:$0xff]
    %v1074 = vld [vmem:[#allocation6] sm:$0x1]
    %v1076 = vperm.slane %v1074, 0
    %v1079 = vsel %vm281, %v269, 0
    %v1082 = vsel %vm281, %v270, 0
    %v1085 = vsel %vm281, %v271, 0
    %v1088 = vsel %vm281, %v272, 0
    %1090 = vmatpush.msra.mxu0 0.0
    %1091 = vmatpush.msra.mxu0 0.0
    %1092 = vmatpush.msra.mxu0 0.0
    %1093 = vmatpush.msra.mxu0 0.0
    %1094 = vmatpush.msra.mxu0 0.0
    %1095 = vmatpush.msra.mxu0 0.0
    %1096 = vmatpush.msra.mxu0 0.0
    %1097 = vmatpush.msra.mxu0 0.0
    %1098 = vmatpush.msra.mxu0 0.0
    %1099 = vmatpush.msra.mxu0 0.0
    %1100 = vmatpush.msra.mxu0 0.0
    %1101 = vmatpush.msra.mxu0 0.0
    %1102 = vmatpush.msra.mxu0 %v1073
    %1103 = vmatpush.msra.mxu0 %v1072
    %1104 = vmatpush.msra.mxu0 %v1071
    %1105 = vmatpush.msra.mxu0 %v1070
    %1106 = vmatmul.f32.gmra.mxu0 %v1079
    %v1107 = vpop.f32.mrf.mxu0
    %v1108 = vadd.f32 %v1076, %v1107
    %1109 = vmatmul.f32.gmra.mxu0 %v1082
    %v1110 = vpop.f32.mrf.mxu0
    %v1111 = vadd.f32 %v1076, %v1110
    %1112 = vmatmul.f32.gmra.mxu0 %v1085
    %v1113 = vpop.f32.mrf.mxu0
    %v1114 = vadd.f32 %v1076, %v1113
    %1115 = vmatmul.f32.gmra.mxu0 %v1088
    %v1116 = vpop.f32.mrf.mxu0
    %v1117 = vadd.f32 %v1076, %v1116
    %1118 = vdwg.mxu0
    %v1120 = vsel %vm314, %v1065, 0
    %v1123 = vsel %vm314, %v1108, 0
    %v1126 = vsel %vm314, %v1111, 0
    %1128 = vmatpush.xpose.msra.mxu0 0.0
    %1129 = vmatpush.xpose.msra.mxu0 0.0
    %1130 = vmatpush.xpose.msra.mxu0 0.0
    %1131 = vmatpush.xpose.msra.mxu0 0.0
    %1132 = vmatpush.xpose.msra.mxu0 0.0
    %1133 = vmatpush.xpose.msra.mxu0 0.0
    %1134 = vmatpush.xpose.msra.mxu0 0.0
    %1135 = vmatpush.xpose.msra.mxu0 0.0
    %1136 = vmatpush.xpose.msra.mxu0 0.0
    %1137 = vmatpush.xpose.msra.mxu0 0.0
    %1138 = vmatpush.xpose.msra.mxu0 0.0
    %1139 = vmatpush.xpose.msra.mxu0 0.0
    %1140 = vmatpush.xpose.msra.mxu0 0.0
    %1141 = vmatpush.xpose.msra.mxu0 0.0
    %1142 = vmatpush.xpose.msra.mxu0 %v1126
    %1143 = vmatpush.xpose.msra.mxu0 %v1123
    %1144 = vmatmul.f32.gmra.mxu0 %v1120
    %v1145 = vpop.f32.mrf.mxu0
    %v1146 = vadd.f32 0.0, %v1145
    %1147 = vdwg.mxu0
    %v1149 = vsel %vm314, %v1068, 0
    %v1152 = vsel %vm314, %v1114, 0
    %v1155 = vsel %vm314, %v1117, 0
    %1157 = vmatpush.xpose.msra.mxu0 0.0
    %1158 = vmatpush.xpose.msra.mxu0 0.0
    %1159 = vmatpush.xpose.msra.mxu0 0.0
    %1160 = vmatpush.xpose.msra.mxu0 0.0
    %1161 = vmatpush.xpose.msra.mxu0 0.0
    %1162 = vmatpush.xpose.msra.mxu0 0.0
    %1163 = vmatpush.xpose.msra.mxu0 0.0
    %1164 = vmatpush.xpose.msra.mxu0 0.0
    %1165 = vmatpush.xpose.msra.mxu0 0.0
    %1166 = vmatpush.xpose.msra.mxu0 0.0
    %1167 = vmatpush.xpose.msra.mxu0 0.0
    %1168 = vmatpush.xpose.msra.mxu0 0.0
    %1169 = vmatpush.xpose.msra.mxu0 0.0
    %1170 = vmatpush.xpose.msra.mxu0 0.0
    %1171 = vmatpush.xpose.msra.mxu0 %v1155
    %1172 = vmatpush.xpose.msra.mxu0 %v1152
    %1173 = vmatmul.f32.gmra.mxu0 %v1149
    %v1174 = vpop.f32.mrf.mxu0
    %v1175 = vadd.f32 0.0, %v1174
    %1176 = vdwg.mxu0
    %v1177 = vmul.f32 %v1146, 0.35355338
    %v1178 = vmul.f32 %v1175, 0.35355338
    %vm1179 = vcmask 130048
    %v1180 = vsel %vm1179, %v1177, -inf
    %1181 = vmax.xlane.f32.xlu0 %v1180
    %v1182 = vpop.xlane.xlu0 %1181
    %v1183 = vsel %vm1179, %v1178, -inf
    %1184 = vmax.xlane.f32.xlu0 %v1183
    %v1185 = vpop.xlane.xlu0 %1184
    %v1186 = vsub.f32 %v1177, %v1182
    %v1187 = vsub.f32 %v1178, %v1185
    %v1188 = vmul.f32 %v1186, 1.442695
    %v1189 = vpow.pop %v1188
    %v1190 = vmul.f32 %v1187, 1.442695
    %v1191 = vpow.pop %v1190
    %v1192 = vsel %vm1179, %v1189, 0.0
    %1193 = vadd.xlane.f32.xlu0 %v1192
    %v1194 = vpop.xlane.xlu0 %1193
    %v1195 = vsel %vm1179, %v1191, 0.0
    %1196 = vadd.xlane.f32.xlu0 %v1195
    %v1197 = vpop.xlane.xlu0 %1196
    %v1198 = vrcp.pop %v1194
    %v1199 = vrcp.pop %v1197
    %v1200 = vmul.f32 %v1189, %v1198
    %v1201 = vmul.f32 %v1191, %v1199
    %1202 = vrot.lane.b32.xlu0 %v1108, 96
    %v1203 = vpop.permute.xlu0 %1202
    %1204 = vrot.lane.b32.xlu0 %v1111, 96
    %v1205 = vpop.permute.xlu0 %1204
    %v1209 = vsel %vm1179, %v1200, 0
    %1211 = vmatpush.msra.mxu0 0.0
    %1212 = vmatpush.msra.mxu0 0.0
    %1213 = vmatpush.msra.mxu0 0.0
    %1214 = vmatpush.msra.mxu0 0.0
    %1215 = vmatpush.msra.mxu0 0.0
    %1216 = vmatpush.msra.mxu0 0.0
    %1217 = vmatpush.msra.mxu0 0.0
    %1218 = vmatpush.msra.mxu0 0.0
    %1219 = vmatpush.msra.mxu0 0.0
    %1220 = vmatpush.msra.mxu0 0.0
    %1221 = vmatpush.msra.mxu0 0.0
    %1222 = vmatpush.msra.mxu0 0.0
    %1223 = vmatpush.msra.mxu0 0.0
    %1224 = vmatpush.msra.mxu0 0.0
    %1225 = vmatpush.msra.mxu0 %v1205
    %1226 = vmatpush.msra.mxu0 %v1203
    %1227 = vmatmul.f32.gmra.mxu0 %v1209
    %v1228 = vpop.f32.mrf.mxu0
    %v1229 = vadd.f32 0.0, %v1228
    %1230 = vdwg.mxu0
    %1231 = vrot.lane.b32.xlu0 %v1114, 96
    %v1232 = vpop.permute.xlu0 %1231
    %1233 = vrot.lane.b32.xlu0 %v1117, 96
    %v1234 = vpop.permute.xlu0 %1233
    %v1238 = vsel %vm1179, %v1201, 0
    %1240 = vmatpush.msra.mxu0 0.0
    %1241 = vmatpush.msra.mxu0 0.0
    %1242 = vmatpush.msra.mxu0 0.0
    %1243 = vmatpush.msra.mxu0 0.0
    %1244 = vmatpush.msra.mxu0 0.0
    %1245 = vmatpush.msra.mxu0 0.0
    %1246 = vmatpush.msra.mxu0 0.0
    %1247 = vmatpush.msra.mxu0 0.0
    %1248 = vmatpush.msra.mxu0 0.0
    %1249 = vmatpush.msra.mxu0 0.0
    %1250 = vmatpush.msra.mxu0 0.0
    %1251 = vmatpush.msra.mxu0 0.0
    %1252 = vmatpush.msra.mxu0 0.0
    %1253 = vmatpush.msra.mxu0 0.0
    %1254 = vmatpush.msra.mxu0 %v1234
    %1255 = vmatpush.msra.mxu0 %v1232
    %1256 = vmatmul.f32.gmra.mxu0 %v1238
    %v1257 = vpop.f32.mrf.mxu0
    %v1258 = vadd.f32 0.0, %v1257
    %1259 = vdwg.mxu0
    %v1260 = vld [vmem:[#allocation7] sm:$0xff]
    %1261 = vrot.lane.b32.xlu0 %v1065, 120
    %v1262 = vpop.permute.xlu0 %1261
    %1263 = vrot.lane.b32.xlu0 %v1108, 120
    %v1264 = vpop.permute.xlu0 %1263
    %1265 = vrot.lane.b32.xlu0 %v1111, 120
    %v1266 = vpop.permute.xlu0 %1265
    %v1267 = vsel %vm314, %v1262, 0
    %v1269 = vsel %vm314, %v1264, 0
    %v1271 = vsel %vm314, %v1266, 0
    %1273 = vmatpush.xpose.msra.mxu0 0.0
    %1274 = vmatpush.xpose.msra.mxu0 0.0
    %1275 = vmatpush.xpose.msra.mxu0 0.0
    %1276 = vmatpush.xpose.msra.mxu0 0.0
    %1277 = vmatpush.xpose.msra.mxu0 0.0
    %1278 = vmatpush.xpose.msra.mxu0 0.0
    %1279 = vmatpush.xpose.msra.mxu0 0.0
    %1280 = vmatpush.xpose.msra.mxu0 0.0
    %1281 = vmatpush.xpose.msra.mxu0 0.0
    %1282 = vmatpush.xpose.msra.mxu0 0.0
    %1283 = vmatpush.xpose.msra.mxu0 0.0
    %1284 = vmatpush.xpose.msra.mxu0 0.0
    %1285 = vmatpush.xpose.msra.mxu0 0.0
    %1286 = vmatpush.xpose.msra.mxu0 0.0
    %1287 = vmatpush.xpose.msra.mxu0 %v1271
    %1288 = vmatpush.xpose.msra.mxu0 %v1269
    %1289 = vmatmul.f32.gmra.mxu0 %v1267
    %v1290 = vpop.f32.mrf.mxu0
    %v1291 = vadd.f32 0.0, %v1290
    %1292 = vdwg.mxu0
    %1293 = vrot.lane.b32.xlu0 %v1068, 120
    %v1294 = vpop.permute.xlu0 %1293
    %1295 = vrot.lane.b32.xlu0 %v1114, 120
    %v1296 = vpop.permute.xlu0 %1295
    %1297 = vrot.lane.b32.xlu0 %v1117, 120
    %v1298 = vpop.permute.xlu0 %1297
    %v1299 = vsel %vm314, %v1294, 0
    %v1301 = vsel %vm314, %v1296, 0
    %v1303 = vsel %vm314, %v1298, 0
    %1305 = vmatpush.xpose.msra.mxu0 0.0
    %1306 = vmatpush.xpose.msra.mxu0 0.0
    %1307 = vmatpush.xpose.msra.mxu0 0.0
    %1308 = vmatpush.xpose.msra.mxu0 0.0
    %1309 = vmatpush.xpose.msra.mxu0 0.0
    %1310 = vmatpush.xpose.msra.mxu0 0.0
    %1311 = vmatpush.xpose.msra.mxu0 0.0
    %1312 = vmatpush.xpose.msra.mxu0 0.0
    %1313 = vmatpush.xpose.msra.mxu0 0.0
    %1314 = vmatpush.xpose.msra.mxu0 0.0
    %1315 = vmatpush.xpose.msra.mxu0 0.0
    %1316 = vmatpush.xpose.msra.mxu0 0.0
    %1317 = vmatpush.xpose.msra.mxu0 0.0
    %1318 = vmatpush.xpose.msra.mxu0 0.0
    %1319 = vmatpush.xpose.msra.mxu0 %v1303
    %1320 = vmatpush.xpose.msra.mxu0 %v1301
    %1321 = vmatmul.f32.gmra.mxu0 %v1299
    %v1322 = vpop.f32.mrf.mxu0
    %v1323 = vadd.f32 0.0, %v1322
    %1324 = vdwg.mxu0
    %v1325 = vmul.f32 %v1291, 0.35355338
    %v1326 = vmul.f32 %v1323, 0.35355338
    %v1327 = vsel %vm1179, %v1325, -inf
    %1328 = vmax.xlane.f32.xlu0 %v1327
    %v1329 = vpop.xlane.xlu0 %1328
    %v1330 = vsel %vm1179, %v1326, -inf
    %1331 = vmax.xlane.f32.xlu0 %v1330
    %v1332 = vpop.xlane.xlu0 %1331
    %v1333 = vsub.f32 %v1325, %v1329
    %v1334 = vsub.f32 %v1326, %v1332
    %v1335 = vmul.f32 %v1333, 1.442695
    %v1336 = vpow.pop %v1335
    %v1337 = vmul.f32 %v1334, 1.442695
    %v1338 = vpow.pop %v1337
    %v1339 = vsel %vm1179, %v1336, 0.0
    %1340 = vadd.xlane.f32.xlu0 %v1339
    %v1341 = vpop.xlane.xlu0 %1340
    %v1342 = vsel %vm1179, %v1338, 0.0
    %1343 = vadd.xlane.f32.xlu0 %v1342
    %v1344 = vpop.xlane.xlu0 %1343
    %v1345 = vrcp.pop %v1341
    %v1346 = vrcp.pop %v1344
    %v1347 = vmul.f32 %v1336, %v1345
    %v1348 = vmul.f32 %v1338, %v1346
    %1349 = vrot.lane.b32.xlu0 %v1108, 88
    %v1350 = vpop.permute.xlu0 %1349
    %1351 = vrot.lane.b32.xlu0 %v1111, 88
    %v1352 = vpop.permute.xlu0 %1351
    %v1356 = vsel %vm1179, %v1347, 0
    %1358 = vmatpush.msra.mxu0 0.0
    %1359 = vmatpush.msra.mxu0 0.0
    %1360 = vmatpush.msra.mxu0 0.0
    %1361 = vmatpush.msra.mxu0 0.0
    %1362 = vmatpush.msra.mxu0 0.0
    %1363 = vmatpush.msra.mxu0 0.0
    %1364 = vmatpush.msra.mxu0 0.0
    %1365 = vmatpush.msra.mxu0 0.0
    %1366 = vmatpush.msra.mxu0 0.0
    %1367 = vmatpush.msra.mxu0 0.0
    %1368 = vmatpush.msra.mxu0 0.0
    %1369 = vmatpush.msra.mxu0 0.0
    %1370 = vmatpush.msra.mxu0 0.0
    %1371 = vmatpush.msra.mxu0 0.0
    %1372 = vmatpush.msra.mxu0 %v1352
    %1373 = vmatpush.msra.mxu0 %v1350
    %1374 = vmatmul.f32.gmra.mxu0 %v1356
    %v1375 = vpop.f32.mrf.mxu0
    %v1376 = vadd.f32 0.0, %v1375
    %1377 = vdwg.mxu0
    %1378 = vrot.lane.b32.xlu0 %v1114, 88
    %v1379 = vpop.permute.xlu0 %1378
    %1380 = vrot.lane.b32.xlu0 %v1117, 88
    %v1381 = vpop.permute.xlu0 %1380
    %v1385 = vsel %vm1179, %v1348, 0
    %1387 = vmatpush.msra.mxu0 0.0
    %1388 = vmatpush.msra.mxu0 0.0
    %1389 = vmatpush.msra.mxu0 0.0
    %1390 = vmatpush.msra.mxu0 0.0
    %1391 = vmatpush.msra.mxu0 0.0
    %1392 = vmatpush.msra.mxu0 0.0
    %1393 = vmatpush.msra.mxu0 0.0
    %1394 = vmatpush.msra.mxu0 0.0
    %1395 = vmatpush.msra.mxu0 0.0
    %1396 = vmatpush.msra.mxu0 0.0
    %1397 = vmatpush.msra.mxu0 0.0
    %1398 = vmatpush.msra.mxu0 0.0
    %1399 = vmatpush.msra.mxu0 0.0
    %1400 = vmatpush.msra.mxu0 0.0
    %1401 = vmatpush.msra.mxu0 %v1381
    %1402 = vmatpush.msra.mxu0 %v1379
    %1403 = vmatmul.f32.gmra.mxu0 %v1385
    %v1404 = vpop.f32.mrf.mxu0
    %v1405 = vadd.f32 0.0, %v1404
    %1406 = vdwg.mxu0
    %v1407 = vld [vmem:[#allocation7 + $0x8] sm:$0xff]
    %v1409 = vsel %vm314, %v1376, 0
    %v1412 = vsel %vm314, %v1405, 0
    %1414 = vmatpush.msra.mxu0 0.0
    %1415 = vmatpush.msra.mxu0 0.0
    %1416 = vmatpush.msra.mxu0 0.0
    %1417 = vmatpush.msra.mxu0 0.0
    %1418 = vmatpush.msra.mxu0 0.0
    %1419 = vmatpush.msra.mxu0 0.0
    %1420 = vmatpush.msra.mxu0 0.0
    %1421 = vmatpush.msra.mxu0 0.0
    %1422 = vmatpush.msra.mxu0 0.0
    %1423 = vmatpush.msra.mxu0 0.0
    %1424 = vmatpush.msra.mxu0 0.0
    %1425 = vmatpush.msra.mxu0 0.0
    %1426 = vmatpush.msra.mxu0 0.0
    %1427 = vmatpush.msra.mxu0 0.0
    %1428 = vmatpush.msra.mxu0 0.0
    %1429 = vmatpush.msra.mxu0 %v1407
    %1430 = vmatmul.f32.gmra.mxu0 %v1409
    %v1431 = vpop.f32.mrf.mxu0
    %v1432 = vadd.f32 0.0, %v1431
    %1433 = vmatmul.f32.gmra.mxu0 %v1412
    %v1434 = vpop.f32.mrf.mxu0
    %v1435 = vadd.f32 0.0, %v1434
    %1436 = vdwg.mxu0
    %v1438 = vsel %vm314, %v1229, 0
    %v1441 = vsel %vm314, %v1258, 0
    %1443 = vmatpush.msra.mxu0 0.0
    %1444 = vmatpush.msra.mxu0 0.0
    %1445 = vmatpush.msra.mxu0 0.0
    %1446 = vmatpush.msra.mxu0 0.0
    %1447 = vmatpush.msra.mxu0 0.0
    %1448 = vmatpush.msra.mxu0 0.0
    %1449 = vmatpush.msra.mxu0 0.0
    %1450 = vmatpush.msra.mxu0 0.0
    %1451 = vmatpush.msra.mxu0 0.0
    %1452 = vmatpush.msra.mxu0 0.0
    %1453 = vmatpush.msra.mxu0 0.0
    %1454 = vmatpush.msra.mxu0 0.0
    %1455 = vmatpush.msra.mxu0 0.0
    %1456 = vmatpush.msra.mxu0 0.0
    %1457 = vmatpush.msra.mxu0 0.0
    %1458 = vmatpush.msra.mxu0 %v1260
    %1459 = vmatmul.f32.gmra.mxu0 %v1438
    %v1460 = vpop.f32.mrf.mxu0
    %v1461 = vadd.f32 %v1432, %v1460
    %1462 = vmatmul.f32.gmra.mxu0 %v1441
    %v1463 = vpop.f32.mrf.mxu0
    %v1464 = vadd.f32 %v1435, %v1463
    %1465 = vdwg.mxu0
    %1466 = vrot.lane.b32.xlu0 %v1065, 112
    %v1467 = vpop.permute.xlu0 %1466
    %1468 = vrot.lane.b32.xlu0 %v1108, 112
    %v1469 = vpop.permute.xlu0 %1468
    %1470 = vrot.lane.b32.xlu0 %v1111, 112
    %v1471 = vpop.permute.xlu0 %1470
    %v1472 = vsel %vm314, %v1467, 0
    %v1474 = vsel %vm314, %v1469, 0
    %v1476 = vsel %vm314, %v1471, 0
    %1478 = vmatpush.xpose.msra.mxu0 0.0
    %1479 = vmatpush.xpose.msra.mxu0 0.0
    %1480 = vmatpush.xpose.msra.mxu0 0.0
    %1481 = vmatpush.xpose.msra.mxu0 0.0
    %1482 = vmatpush.xpose.msra.mxu0 0.0
    %1483 = vmatpush.xpose.msra.mxu0 0.0
    %1484 = vmatpush.xpose.msra.mxu0 0.0
    %1485 = vmatpush.xpose.msra.mxu0 0.0
    %1486 = vmatpush.xpose.msra.mxu0 0.0
    %1487 = vmatpush.xpose.msra.mxu0 0.0
    %1488 = vmatpush.xpose.msra.mxu0 0.0
    %1489 = vmatpush.xpose.msra.mxu0 0.0
    %1490 = vmatpush.xpose.msra.mxu0 0.0
    %1491 = vmatpush.xpose.msra.mxu0 0.0
    %1492 = vmatpush.xpose.msra.mxu0 %v1476
    %1493 = vmatpush.xpose.msra.mxu0 %v1474
    %1494 = vmatmul.f32.gmra.mxu0 %v1472
    %v1495 = vpop.f32.mrf.mxu0
    %v1496 = vadd.f32 0.0, %v1495
    %1497 = vdwg.mxu0
    %1498 = vrot.lane.b32.xlu0 %v1068, 112
    %v1499 = vpop.permute.xlu0 %1498
    %1500 = vrot.lane.b32.xlu0 %v1114, 112
    %v1501 = vpop.permute.xlu0 %1500
    %1502 = vrot.lane.b32.xlu0 %v1117, 112
    %v1503 = vpop.permute.xlu0 %1502
    %v1504 = vsel %vm314, %v1499, 0
    %v1506 = vsel %vm314, %v1501, 0
    %v1508 = vsel %vm314, %v1503, 0
    %1510 = vmatpush.xpose.msra.mxu0 0.0
    %1511 = vmatpush.xpose.msra.mxu0 0.0
    %1512 = vmatpush.xpose.msra.mxu0 0.0
    %1513 = vmatpush.xpose.msra.mxu0 0.0
    %1514 = vmatpush.xpose.msra.mxu0 0.0
    %1515 = vmatpush.xpose.msra.mxu0 0.0
    %1516 = vmatpush.xpose.msra.mxu0 0.0
    %1517 = vmatpush.xpose.msra.mxu0 0.0
    %1518 = vmatpush.xpose.msra.mxu0 0.0
    %1519 = vmatpush.xpose.msra.mxu0 0.0
    %1520 = vmatpush.xpose.msra.mxu0 0.0
    %1521 = vmatpush.xpose.msra.mxu0 0.0
    %1522 = vmatpush.xpose.msra.mxu0 0.0
    %1523 = vmatpush.xpose.msra.mxu0 0.0
    %1524 = vmatpush.xpose.msra.mxu0 %v1508
    %1525 = vmatpush.xpose.msra.mxu0 %v1506
    %1526 = vmatmul.f32.gmra.mxu0 %v1504
    %v1527 = vpop.f32.mrf.mxu0
    %v1528 = vadd.f32 0.0, %v1527
    %1529 = vdwg.mxu0
    %v1530 = vmul.f32 %v1496, 0.35355338
    %v1531 = vmul.f32 %v1528, 0.35355338
    %v1532 = vsel %vm1179, %v1530, -inf
    %1533 = vmax.xlane.f32.xlu0 %v1532
    %v1534 = vpop.xlane.xlu0 %1533
    %v1535 = vsel %vm1179, %v1531, -inf
    %1536 = vmax.xlane.f32.xlu0 %v1535
    %v1537 = vpop.xlane.xlu0 %1536
    %v1538 = vsub.f32 %v1530, %v1534
    %v1539 = vsub.f32 %v1531, %v1537
    %v1540 = vmul.f32 %v1538, 1.442695
    %v1541 = vpow.pop %v1540
    %v1542 = vmul.f32 %v1539, 1.442695
    %v1543 = vpow.pop %v1542
    %v1544 = vsel %vm1179, %v1541, 0.0
    %1545 = vadd.xlane.f32.xlu0 %v1544
    %v1546 = vpop.xlane.xlu0 %1545
    %v1547 = vsel %vm1179, %v1543, 0.0
    %1548 = vadd.xlane.f32.xlu0 %v1547
    %v1549 = vpop.xlane.xlu0 %1548
    %v1550 = vrcp.pop %v1546
    %v1551 = vrcp.pop %v1549
    %v1552 = vmul.f32 %v1541, %v1550
    %v1553 = vmul.f32 %v1543, %v1551
    %1554 = vrot.lane.b32.xlu0 %v1108, 80
    %v1555 = vpop.permute.xlu0 %1554
    %1556 = vrot.lane.b32.xlu0 %v1111, 80
    %v1557 = vpop.permute.xlu0 %1556
    %v1561 = vsel %vm1179, %v1552, 0
    %1563 = vmatpush.msra.mxu0 0.0
    %1564 = vmatpush.msra.mxu0 0.0
    %1565 = vmatpush.msra.mxu0 0.0
    %1566 = vmatpush.msra.mxu0 0.0
    %1567 = vmatpush.msra.mxu0 0.0
    %1568 = vmatpush.msra.mxu0 0.0
    %1569 = vmatpush.msra.mxu0 0.0
    %1570 = vmatpush.msra.mxu0 0.0
    %1571 = vmatpush.msra.mxu0 0.0
    %1572 = vmatpush.msra.mxu0 0.0
    %1573 = vmatpush.msra.mxu0 0.0
    %1574 = vmatpush.msra.mxu0 0.0
    %1575 = vmatpush.msra.mxu0 0.0
    %1576 = vmatpush.msra.mxu0 0.0
    %1577 = vmatpush.msra.mxu0 %v1557
    %1578 = vmatpush.msra.mxu0 %v1555
    %1579 = vmatmul.f32.gmra.mxu0 %v1561
    %v1580 = vpop.f32.mrf.mxu0
    %v1581 = vadd.f32 0.0, %v1580
    %1582 = vdwg.mxu0
    %1583 = vrot.lane.b32.xlu0 %v1114, 80
    %v1584 = vpop.permute.xlu0 %1583
    %1585 = vrot.lane.b32.xlu0 %v1117, 80
    %v1586 = vpop.permute.xlu0 %1585
    %v1590 = vsel %vm1179, %v1553, 0
    %1592 = vmatpush.msra.mxu0 0.0
    %1593 = vmatpush.msra.mxu0 0.0
    %1594 = vmatpush.msra.mxu0 0.0
    %1595 = vmatpush.msra.mxu0 0.0
    %1596 = vmatpush.msra.mxu0 0.0
    %1597 = vmatpush.msra.mxu0 0.0
    %1598 = vmatpush.msra.mxu0 0.0
    %1599 = vmatpush.msra.mxu0 0.0
    %1600 = vmatpush.msra.mxu0 0.0
    %1601 = vmatpush.msra.mxu0 0.0
    %1602 = vmatpush.msra.mxu0 0.0
    %1603 = vmatpush.msra.mxu0 0.0
    %1604 = vmatpush.msra.mxu0 0.0
    %1605 = vmatpush.msra.mxu0 0.0
    %1606 = vmatpush.msra.mxu0 %v1586
    %1607 = vmatpush.msra.mxu0 %v1584
    %1608 = vmatmul.f32.gmra.mxu0 %v1590
    %v1609 = vpop.f32.mrf.mxu0
    %v1610 = vadd.f32 0.0, %v1609
    %1611 = vdwg.mxu0
    %v1612 = vld [vmem:[#allocation7 + $0x10] sm:$0xff]
    %v1614 = vsel %vm314, %v1581, 0
    %v1617 = vsel %vm314, %v1610, 0
    %1619 = vmatpush.msra.mxu0 0.0
    %1620 = vmatpush.msra.mxu0 0.0
    %1621 = vmatpush.msra.mxu0 0.0
    %1622 = vmatpush.msra.mxu0 0.0
    %1623 = vmatpush.msra.mxu0 0.0
    %1624 = vmatpush.msra.mxu0 0.0
    %1625 = vmatpush.msra.mxu0 0.0
    %1626 = vmatpush.msra.mxu0 0.0
    %1627 = vmatpush.msra.mxu0 0.0
    %1628 = vmatpush.msra.mxu0 0.0
    %1629 = vmatpush.msra.mxu0 0.0
    %1630 = vmatpush.msra.mxu0 0.0
    %1631 = vmatpush.msra.mxu0 0.0
    %1632 = vmatpush.msra.mxu0 0.0
    %1633 = vmatpush.msra.mxu0 0.0
    %1634 = vmatpush.msra.mxu0 %v1612
    %1635 = vmatmul.f32.gmra.mxu0 %v1614
    %v1636 = vpop.f32.mrf.mxu0
    %v1637 = vadd.f32 0.0, %v1636
    %1638 = vmatmul.f32.gmra.mxu0 %v1617
    %v1639 = vpop.f32.mrf.mxu0
    %v1640 = vadd.f32 0.0, %v1639
    %1641 = vdwg.mxu0
    %v1642 = vadd.f32 %v1461, %v1637
    %v1643 = vadd.f32 %v1464, %v1640
    %1644 = vrot.lane.b32.xlu0 %v1065, 104
    %v1645 = vpop.permute.xlu0 %1644
    %1646 = vrot.lane.b32.xlu0 %v1108, 104
    %v1647 = vpop.permute.xlu0 %1646
    %1648 = vrot.lane.b32.xlu0 %v1111, 104
    %v1649 = vpop.permute.xlu0 %1648
    %v1650 = vsel %vm314, %v1645, 0
    %v1652 = vsel %vm314, %v1647, 0
    %v1654 = vsel %vm314, %v1649, 0
    %1656 = vmatpush.xpose.msra.mxu0 0.0
    %1657 = vmatpush.xpose.msra.mxu0 0.0
    %1658 = vmatpush.xpose.msra.mxu0 0.0
    %1659 = vmatpush.xpose.msra.mxu0 0.0
    %1660 = vmatpush.xpose.msra.mxu0 0.0
    %1661 = vmatpush.xpose.msra.mxu0 0.0
    %1662 = vmatpush.xpose.msra.mxu0 0.0
    %1663 = vmatpush.xpose.msra.mxu0 0.0
    %1664 = vmatpush.xpose.msra.mxu0 0.0
    %1665 = vmatpush.xpose.msra.mxu0 0.0
    %1666 = vmatpush.xpose.msra.mxu0 0.0
    %1667 = vmatpush.xpose.msra.mxu0 0.0
    %1668 = vmatpush.xpose.msra.mxu0 0.0
    %1669 = vmatpush.xpose.msra.mxu0 0.0
    %1670 = vmatpush.xpose.msra.mxu0 %v1654
    %1671 = vmatpush.xpose.msra.mxu0 %v1652
    %1672 = vmatmul.f32.gmra.mxu0 %v1650
    %v1673 = vpop.f32.mrf.mxu0
    %v1674 = vadd.f32 0.0, %v1673
    %1675 = vdwg.mxu0
    %1676 = vrot.lane.b32.xlu0 %v1068, 104
    %v1677 = vpop.permute.xlu0 %1676
    %1678 = vrot.lane.b32.xlu0 %v1114, 104
    %v1679 = vpop.permute.xlu0 %1678
    %1680 = vrot.lane.b32.xlu0 %v1117, 104
    %v1681 = vpop.permute.xlu0 %1680
    %v1682 = vsel %vm314, %v1677, 0
    %v1684 = vsel %vm314, %v1679, 0
    %v1686 = vsel %vm314, %v1681, 0
    %1688 = vmatpush.xpose.msra.mxu0 0.0
    %1689 = vmatpush.xpose.msra.mxu0 0.0
    %1690 = vmatpush.xpose.msra.mxu0 0.0
    %1691 = vmatpush.xpose.msra.mxu0 0.0
    %1692 = vmatpush.xpose.msra.mxu0 0.0
    %1693 = vmatpush.xpose.msra.mxu0 0.0
    %1694 = vmatpush.xpose.msra.mxu0 0.0
    %1695 = vmatpush.xpose.msra.mxu0 0.0
    %1696 = vmatpush.xpose.msra.mxu0 0.0
    %1697 = vmatpush.xpose.msra.mxu0 0.0
    %1698 = vmatpush.xpose.msra.mxu0 0.0
    %1699 = vmatpush.xpose.msra.mxu0 0.0
    %1700 = vmatpush.xpose.msra.mxu0 0.0
    %1701 = vmatpush.xpose.msra.mxu0 0.0
    %1702 = vmatpush.xpose.msra.mxu0 %v1686
    %1703 = vmatpush.xpose.msra.mxu0 %v1684
    %1704 = vmatmul.f32.gmra.mxu0 %v1682
    %v1705 = vpop.f32.mrf.mxu0
    %v1706 = vadd.f32 0.0, %v1705
    %1707 = vdwg.mxu0
    %v1708 = vmul.f32 %v1674, 0.35355338
    %v1709 = vmul.f32 %v1706, 0.35355338
    %v1710 = vsel %vm1179, %v1708, -inf
    %1711 = vmax.xlane.f32.xlu0 %v1710
    %v1712 = vpop.xlane.xlu0 %1711
    %v1713 = vsel %vm1179, %v1709, -inf
    %1714 = vmax.xlane.f32.xlu0 %v1713
    %v1715 = vpop.xlane.xlu0 %1714
    %v1716 = vsub.f32 %v1708, %v1712
    %v1717 = vsub.f32 %v1709, %v1715
    %v1718 = vmul.f32 %v1716, 1.442695
    %v1719 = vpow.pop %v1718
    %v1720 = vmul.f32 %v1717, 1.442695
    %v1721 = vpow.pop %v1720
    %v1722 = vsel %vm1179, %v1719, 0.0
    %1723 = vadd.xlane.f32.xlu0 %v1722
    %v1724 = vpop.xlane.xlu0 %1723
    %v1725 = vsel %vm1179, %v1721, 0.0
    %1726 = vadd.xlane.f32.xlu0 %v1725
    %v1727 = vpop.xlane.xlu0 %1726
    %v1728 = vrcp.pop %v1724
    %v1729 = vrcp.pop %v1727
    %v1730 = vmul.f32 %v1719, %v1728
    %v1731 = vmul.f32 %v1721, %v1729
    %1732 = vrot.lane.b32.xlu0 %v1108, 72
    %v1733 = vpop.permute.xlu0 %1732
    %1734 = vrot.lane.b32.xlu0 %v1111, 72
    %v1735 = vpop.permute.xlu0 %1734
    %v1739 = vsel %vm1179, %v1730, 0
    %1741 = vmatpush.msra.mxu0 0.0
    %1742 = vmatpush.msra.mxu0 0.0
    %1743 = vmatpush.msra.mxu0 0.0
    %1744 = vmatpush.msra.mxu0 0.0
    %1745 = vmatpush.msra.mxu0 0.0
    %1746 = vmatpush.msra.mxu0 0.0
    %1747 = vmatpush.msra.mxu0 0.0
    %1748 = vmatpush.msra.mxu0 0.0
    %1749 = vmatpush.msra.mxu0 0.0
    %1750 = vmatpush.msra.mxu0 0.0
    %1751 = vmatpush.msra.mxu0 0.0
    %1752 = vmatpush.msra.mxu0 0.0
    %1753 = vmatpush.msra.mxu0 0.0
    %1754 = vmatpush.msra.mxu0 0.0
    %1755 = vmatpush.msra.mxu0 %v1735
    %1756 = vmatpush.msra.mxu0 %v1733
    %1757 = vmatmul.f32.gmra.mxu0 %v1739
    %v1758 = vpop.f32.mrf.mxu0
    %v1759 = vadd.f32 0.0, %v1758
    %1760 = vdwg.mxu0
    %1761 = vrot.lane.b32.xlu0 %v1114, 72
    %v1762 = vpop.permute.xlu0 %1761
    %1763 = vrot.lane.b32.xlu0 %v1117, 72
    %v1764 = vpop.permute.xlu0 %1763
    %v1768 = vsel %vm1179, %v1731, 0
    %1770 = vmatpush.msra.mxu0 0.0
    %1771 = vmatpush.msra.mxu0 0.0
    %1772 = vmatpush.msra.mxu0 0.0
    %1773 = vmatpush.msra.mxu0 0.0
    %1774 = vmatpush.msra.mxu0 0.0
    %1775 = vmatpush.msra.mxu0 0.0
    %1776 = vmatpush.msra.mxu0 0.0
    %1777 = vmatpush.msra.mxu0 0.0
    %1778 = vmatpush.msra.mxu0 0.0
    %1779 = vmatpush.msra.mxu0 0.0
    %1780 = vmatpush.msra.mxu0 0.0
    %1781 = vmatpush.msra.mxu0 0.0
    %1782 = vmatpush.msra.mxu0 0.0
    %1783 = vmatpush.msra.mxu0 0.0
    %1784 = vmatpush.msra.mxu0 %v1764
    %1785 = vmatpush.msra.mxu0 %v1762
    %1786 = vmatmul.f32.gmra.mxu0 %v1768
    %v1787 = vpop.f32.mrf.mxu0
    %v1788 = vadd.f32 0.0, %v1787
    %1789 = vdwg.mxu0
    %v1790 = vld [vmem:[#allocation7 + $0x18] sm:$0xff]
    %v1792 = vsel %vm314, %v1759, 0
    %v1795 = vsel %vm314, %v1788, 0
    %1797 = vmatpush.msra.mxu0 0.0
    %1798 = vmatpush.msra.mxu0 0.0
    %1799 = vmatpush.msra.mxu0 0.0
    %1800 = vmatpush.msra.mxu0 0.0
    %1801 = vmatpush.msra.mxu0 0.0
    %1802 = vmatpush.msra.mxu0 0.0
    %1803 = vmatpush.msra.mxu0 0.0
    %1804 = vmatpush.msra.mxu0 0.0
    %1805 = vmatpush.msra.mxu0 0.0
    %1806 = vmatpush.msra.mxu0 0.0
    %1807 = vmatpush.msra.mxu0 0.0
    %1808 = vmatpush.msra.mxu0 0.0
    %1809 = vmatpush.msra.mxu0 0.0
    %1810 = vmatpush.msra.mxu0 0.0
    %1811 = vmatpush.msra.mxu0 0.0
    %1812 = vmatpush.msra.mxu0 %v1790
    %1813 = vmatmul.f32.gmra.mxu0 %v1792
    %v1814 = vpop.f32.mrf.mxu0
    %v1815 = vadd.f32 0.0, %v1814
    %1816 = vmatmul.f32.gmra.mxu0 %v1795
    %v1817 = vpop.f32.mrf.mxu0
    %v1818 = vadd.f32 0.0, %v1817
    %1819 = vdwg.mxu0
    %v1820 = vadd.f32 %v1642, %v1815
    %v1821 = vadd.f32 %v1643, %v1818
    %v1822 = vld [vmem:[#allocation9] sm:$0x1]
    %v1824 = vperm.slane %v1822, 0
    %v1826 = vadd.f32 %v1820, %v1824
    %v1827 = vadd.f32 %v1821, %v1824
    %v1828 = vadd.f32 %v1031, %v1826
    %v1829 = vadd.f32 %v1032, %v1827
    %v1830 = vsel %vm281, %v1828, 0.0
    %1831 = vadd.xlane.f32.xlu0 %v1830
    %v1832 = vpop.xlane.xlu0 %1831
    %v1833 = vsel %vm281, %v1829, 0.0
    %1834 = vadd.xlane.f32.xlu0 %v1833
    %v1835 = vpop.xlane.xlu0 %1834
    %v1836 = vmul.f32 %v1832, %v982
    %v1837 = vmul.f32 %v1835, %v982
    %v1838 = vsub.f32 %v1828, %v1836
    %v1839 = vsub.f32 %v1829, %v1837
    %v1840 = vmul.f32 %v1838, %v1838
    %v1841 = vmul.f32 %v1839, %v1839
    %v1842 = vsel %vm281, %v1840, 0.0
    %1843 = vadd.xlane.f32.xlu0 %v1842
    %v1844 = vpop.xlane.xlu0 %1843
    %v1845 = vsel %vm281, %v1841, 0.0
    %1846 = vadd.xlane.f32.xlu0 %v1845
    %v1847 = vpop.xlane.xlu0 %1846
    %v1848 = vmul.f32 %v1844, %v982
    %v1849 = vmul.f32 %v1847, %v982
    %v1850 = vadd.f32 %v1848, 1e-05
    %v1851 = vadd.f32 %v1849, 1e-05
    %v1852 = vrsqrt.pop %v1850
    %v1853 = vmul.f32 %v1852, %v1850
    %v1854 = vmul.f32 %v1853, %v1852
    %v1855 = vmul.f32 0.5, %v1854
    %v1856 = vsub.f32 1.5, %v1855
    %v1857 = vmul.f32 %v1852, %v1856
    %vm1858 = vweird.f32 %v1850
    %vm1859 = vweird.f32 %v1852
    %vm1860 = vmor %vm1858, %vm1859
    %v1861 = vsel %vm1860, %v1852, %v1857
    %v1862 = vrsqrt.pop %v1851
    %v1863 = vmul.f32 %v1862, %v1851
    %v1864 = vmul.f32 %v1863, %v1862
    %v1865 = vmul.f32 0.5, %v1864
    %v1866 = vsub.f32 1.5, %v1865
    %v1867 = vmul.f32 %v1862, %v1866
    %vm1868 = vweird.f32 %v1851
    %vm1869 = vweird.f32 %v1862
    %vm1870 = vmor %vm1868, %vm1869
    %v1871 = vsel %vm1870, %v1862, %v1867
    %v1872 = vmul.f32 %v1838, %v1861
    %v1873 = vmul.f32 %v1839, %v1871
    %v1874 = vld [vmem:[#allocation18] sm:$0x1]
    %v1876 = vperm.slane %v1874, 0
    %v1878 = vmul.f32 %v1872, %v1876
    %v1879 = vmul.f32 %v1873, %v1876
    %v1880 = vld [vmem:[#allocation19] sm:$0x1]
    %v1882 = vperm.slane %v1880, 0
    %v1884 = vadd.f32 %v1878, %v1882
    %v1885 = vadd.f32 %v1879, %v1882
    %v1886 = vld [vmem:[#allocation10] sm:$0xff]
    %v1887 = vld [vmem:[#allocation10 + $0x8] sm:$0xff]
    %v1888 = vld [vmem:[#allocation10 + $0x10] sm:$0xff]
    %v1889 = vld [vmem:[#allocation10 + $0x18] sm:$0xff]
    %v1890 = vld [vmem:[#allocation12] sm:$0x1]
    %v1892 = vperm.slane %v1890, 0
    %v1895 = vsel %vm281, %v1884, 0
    %v1898 = vsel %vm281, %v1885, 0
    %1900 = vmatpush.msra.mxu0 0.0
    %1901 = vmatpush.msra.mxu0 0.0
    %1902 = vmatpush.msra.mxu0 0.0
    %1903 = vmatpush.msra.mxu0 0.0
    %1904 = vmatpush.msra.mxu0 0.0
    %1905 = vmatpush.msra.mxu0 0.0
    %1906 = vmatpush.msra.mxu0 0.0
    %1907 = vmatpush.msra.mxu0 0.0
    %1908 = vmatpush.msra.mxu0 0.0
    %1909 = vmatpush.msra.mxu0 0.0
    %1910 = vmatpush.msra.mxu0 0.0
    %1911 = vmatpush.msra.mxu0 0.0
    %1912 = vmatpush.msra.mxu0 %v1889
    %1913 = vmatpush.msra.mxu0 %v1888
    %1914 = vmatpush.msra.mxu0 %v1887
    %1915 = vmatpush.msra.mxu0 %v1886
    %1916 = vmatmul.f32.gmra.mxu0 %v1895
    %v1917 = vpop.f32.mrf.mxu0
    %v1918 = vadd.f32 %v1892, %v1917
    %1919 = vmatmul.f32.gmra.mxu0 %v1898
    %v1920 = vpop.f32.mrf.mxu0
    %v1921 = vadd.f32 %v1892, %v1920
    %1922 = vdwg.mxu0
    %v1923 = vmax.f32 %v1918, 0.0
    %v1924 = vmax.f32 %v1921, 0.0
    %v1925 = vld [vmem:[%s14] sm:$0xff]
    %v1926 = vld [vmem:[%s14 + $0x8] sm:$0xff]
    %v1927 = vld [vmem:[%s14 + $0x10] sm:$0xff]
    %v1928 = vld [vmem:[%s14 + $0x18] sm:$0xff]
    %v1929 = vld [vmem:[%s14 + $0x20] sm:$0xff]
    %v1930 = vld [vmem:[%s14 + $0x28] sm:$0xff]
    %v1931 = vld [vmem:[%s14 + $0x30] sm:$0xff]
    %v1932 = vld [vmem:[%s14 + $0x38] sm:$0xff]
    %v1933 = vld [vmem:[#allocation13] sm:$0x1]
    %v1935 = vperm.slane %v1933, 0
    %vm1937 = vcmask 523264
    %v1939 = vsel %vm1937, %v1923, 0
    %v1942 = vsel %vm1937, %v1924, 0
    %1944 = vmatpush.msra.mxu0 0.0
    %1945 = vmatpush.msra.mxu0 0.0
    %1946 = vmatpush.msra.mxu0 0.0
    %1947 = vmatpush.msra.mxu0 0.0
    %1948 = vmatpush.msra.mxu0 0.0
    %1949 = vmatpush.msra.mxu0 0.0
    %1950 = vmatpush.msra.mxu0 0.0
    %1951 = vmatpush.msra.mxu0 0.0
    %1952 = vmatpush.msra.mxu0 %v1932
    %1953 = vmatpush.msra.mxu0 %v1931
    %1954 = vmatpush.msra.mxu0 %v1930
    %1955 = vmatpush.msra.mxu0 %v1929
    %1956 = vmatpush.msra.mxu0 %v1928
    %1957 = vmatpush.msra.mxu0 %v1927
    %1958 = vmatpush.msra.mxu0 %v1926
    %1959 = vmatpush.msra.mxu0 %v1925
    %1960 = vmatmul.f32.gmra.mxu0 %v1939
    %v1961 = vpop.f32.mrf.mxu0
    %v1962 = vadd.f32 %v1935, %v1961
    %1963 = vmatmul.f32.gmra.mxu0 %v1942
    %v1964 = vpop.f32.mrf.mxu0
    %v1965 = vadd.f32 %v1935, %v1964
    %1966 = vdwg.mxu0
    %v1967 = vadd.f32 %v1884, %v1962
    %v1968 = vadd.f32 %v1885, %v1965
    %v1969 = vsel %vm281, %v1967, 0.0
    %1970 = vadd.xlane.f32.xlu0 %v1969
    %v1971 = vpop.xlane.xlu0 %1970
    %v1972 = vsel %vm281, %v1968, 0.0
    %1973 = vadd.xlane.f32.xlu0 %v1972
    %v1974 = vpop.xlane.xlu0 %1973
    %v1975 = vmul.f32 %v1971, %v982
    %v1976 = vmul.f32 %v1974, %v982
    %v1977 = vsub.f32 %v1967, %v1975
    %v1978 = vsub.f32 %v1968, %v1976
    %v1979 = vmul.f32 %v1977, %v1977
    %v1980 = vmul.f32 %v1978, %v1978
    %v1981 = vsel %vm281, %v1979, 0.0
    %1982 = vadd.xlane.f32.xlu0 %v1981
    %v1983 = vpop.xlane.xlu0 %1982
    %v1984 = vsel %vm281, %v1980, 0.0
    %1985 = vadd.xlane.f32.xlu0 %v1984
    %v1986 = vpop.xlane.xlu0 %1985
    %v1987 = vmul.f32 %v1983, %v982
    %v1988 = vmul.f32 %v1986, %v982
    %v1989 = vadd.f32 %v1987, 1e-05
    %v1990 = vadd.f32 %v1988, 1e-05
    %v1991 = vrsqrt.pop %v1989
    %v1992 = vmul.f32 %v1991, %v1989
    %v1993 = vmul.f32 %v1992, %v1991
    %v1994 = vmul.f32 0.5, %v1993
    %v1995 = vsub.f32 1.5, %v1994
    %v1996 = vmul.f32 %v1991, %v1995
    %vm1997 = vweird.f32 %v1989
    %vm1998 = vweird.f32 %v1991
    %vm1999 = vmor %vm1997, %vm1998
    %v2000 = vsel %vm1999, %v1991, %v1996
    %v2001 = vrsqrt.pop %v1990
    %v2002 = vmul.f32 %v2001, %v1990
    %v2003 = vmul.f32 %v2002, %v2001
    %v2004 = vmul.f32 0.5, %v2003
    %v2005 = vsub.f32 1.5, %v2004
    %v2006 = vmul.f32 %v2001, %v2005
    %vm2007 = vweird.f32 %v1990
    %vm2008 = vweird.f32 %v2001
    %vm2009 = vmor %vm2007, %vm2008
    %v2010 = vsel %vm2009, %v2001, %v2006
    %v2011 = vmul.f32 %v1977, %v2000
    %v2012 = vmul.f32 %v1978, %v2010
    %v2013 = vld [vmem:[#allocation21] sm:$0x1]
    %v2015 = vperm.slane %v2013, 0
    %v2017 = vmul.f32 %v2011, %v2015
    %v2018 = vmul.f32 %v2012, %v2015
    %v2019 = vld [vmem:[#allocation22] sm:$0x1]
    %v2021 = vperm.slane %v2019, 0
    %v2023 = vadd.f32 %v2017, %v2021
    %v2024 = vadd.f32 %v2018, %v2021
    %2025 = vst.msk [vmem:[%s22] sm:$0xff] %vm281, %v2023
    %2026 = vst.msk [vmem:[%s22 + $0x8] sm:$0xff] %vm281, %v2024
    // Predicated region
    $region146: #{transformer_decoder_forward.3} parent=1 // pred_check
      _
    $region147: #{transformer_decoder_forward.3} parent=1 // pred_check_branch
      %2028 = sbr.rel (0) target = $region149
    $region148: #{transformer_decoder_forward.3} parent=1 // pred_region
      _
    $region149: #{transformer_decoder_forward.3} parent=1 // pred_fallthru
      _
    // Predicated region
    $region150: #{transformer_decoder_forward.3} parent=1 // pred_check
      _
    $region151: #{transformer_decoder_forward.3} parent=1 // pred_check_branch
      %2030 = sbr.rel (0) target = $region153
    $region152: #{transformer_decoder_forward.3} parent=1 // pred_region
      _
    $region153: #{transformer_decoder_forward.3} parent=1 // pred_fallthru
      _
    %2031 = vsyncpa [#allocation3], 1
    %2032 = vsyncpa [#allocation5], 1
    %2033 = vsyncpa [#allocation8], 1
    %2034 = vsyncpa [#allocation11], 1
    %2035 = vsyncpa [#allocation14], 1
    %2036 = vsyncpa [#allocation17], 1
    %2037 = vsyncpa [#allocation20], 1
    %2038 = vsyncpa [#allocation23], 1

// kernel: transformer_decoder_forward.4
$region0: #{transformer_decoder_forward.4}
  #allocation0 [shape = 'u32[]', space=smem, size = 0x4, offset = 0x4, fixed_abs, tag = 'smem constant byte address 0x4 - core index']
  #allocation1 [shape = 'u32[72,128]{1,0:T(1,128)}', space=vmem, size = 0x9000, scoped, tag = 'internal scratch']
  %s0 = inlined_call_operand.vmem [shape: f32[2,8,32], index: 0, kind: input, shape index: {}]
  %s1 = inlined_call_operand.vmem [shape: f32[2,16,32], index: 1, kind: input, shape index: {}]
  %s2 = inlined_call_operand.vmem [shape: f32[32,96], index: 2, kind: input, shape index: {}]
  %s3 = inlined_call_operand.hbm [shape: f32[1,96], index: 3, kind: input, shape index: {}]
  %s4 = inlined_call_operand.vmem [shape: f32[32,32], index: 4, kind: input, shape index: {}]
  %s5 = inlined_call_operand.hbm [shape: f32[1,32], index: 5, kind: input, shape index: {}]
  %s6 = inlined_call_operand.vmem [shape: f32[32,32], index: 6, kind: input, shape index: {}]
  %s7 = inlined_call_operand.hbm [shape: f32[1,32], index: 7, kind: input, shape index: {}]
  %s8 = inlined_call_operand.hbm [shape: f32[32,64], index: 8, kind: input, shape index: {}]
  %s9 = inlined_call_operand.hbm [shape: f32[1,64], index: 9, kind: input, shape index: {}]
  %s10 = inlined_call_operand.hbm [shape: f32[32,32], index: 10, kind: input, shape index: {}]
  %s11 = inlined_call_operand.hbm [shape: f32[1,32], index: 11, kind: input, shape index: {}]
  %s12 = inlined_call_operand.vmem [shape: f32[32,64], index: 12, kind: input, shape index: {}]
  %s13 = inlined_call_operand.hbm [shape: f32[1,64], index: 13, kind: input, shape index: {}]
  %s14 = inlined_call_operand.vmem [shape: f32[64,32], index: 14, kind: input, shape index: {}]
  %s15 = inlined_call_operand.hbm [shape: f32[1,32], index: 15, kind: input, shape index: {}]
  %s16 = inlined_call_operand.hbm [shape: f32[1,32], index: 16, kind: input, shape index: {}]
  %s17 = inlined_call_operand.hbm [shape: f32[1,32], index: 17, kind: input, shape index: {}]
  %s18 = inlined_call_operand.hbm [shape: f32[1,32], index: 18, kind: input, shape index: {}]
  %s19 = inlined_call_operand.hbm [shape: f32[1,32], index: 19, kind: input, shape index: {}]
  %s20 = inlined_call_operand.hbm [shape: f32[1,32], index: 20, kind: input, shape index: {}]
  %s21 = inlined_call_operand.hbm [shape: f32[1,32], index: 21, kind: input, shape index: {}]
  %s22 = inlined_call_operand.vmem [shape: f32[2,8,32], index: 22, kind: output, shape index: {}]
  %s23 = sld [smem:[#allocation0]]
  $region158: #{transformer_decoder_forward.4} parent=0
    _
  %s25 = ssub.s32 1, %s23
  %s26 = scalar_select 0, %s25, %s23
  $region1: #{transformer_decoder_forward.4} parent=0
    #allocation2 [shape = 'u8[512]{0}', space=vmem, size = 0x400, scoped, tag = 'input window, operand 3, single buffered']
    #allocation3 [shape = 's32[1]{0}', space=sflag, size = 0x4, scoped, tag = 'scoped memory for transformer_decoder_forward.4']
    #allocation4 [shape = 'u8[512]{0}', space=vmem, size = 0x400, scoped, tag = 'input window, operand 5, single buffered']
    #allocation5 [shape = 's32[1]{0}', space=sflag, size = 0x4, scoped, tag = 'scoped memory for transformer_decoder_forward.4']
    #allocation6 [shape = 'u8[512]{0}', space=vmem, size = 0x400, scoped, tag = 'input window, operand 7, single buffered']
    #allocation7 [shape = 'u8[16384]{0}', space=vmem, size = 0x4000, scoped, tag = 'input window, operand 8, single buffered']
    #allocation8 [shape = 's32[1]{0}', space=sflag, size = 0x4, scoped, tag = 'scoped memory for transformer_decoder_forward.4']
    #allocation9 [shape = 'u8[512]{0}', space=vmem, size = 0x400, scoped, tag = 'input window, operand 9, single buffered']
    #allocation10 [shape = 'u8[16384]{0}', space=vmem, size = 0x4000, scoped, tag = 'input window, operand 10, single buffered']
    #allocation11 [shape = 's32[1]{0}', space=sflag, size = 0x4, scoped, tag = 'scoped memory for transformer_decoder_forward.4']
    #allocation12 [shape = 'u8[512]{0}', space=vmem, size = 0x400, scoped, tag = 'input window, operand 11, single buffered']
    #allocation13 [shape = 'u8[512]{0}', space=vmem, size = 0x400, scoped, tag = 'input window, operand 13, single buffered']
    #allocation14 [shape = 's32[1]{0}', space=sflag, size = 0x4, scoped, tag = 'scoped memory for transformer_decoder_forward.4']
    #allocation15 [shape = 'u8[512]{0}', space=vmem, size = 0x400, scoped, tag = 'input window, operand 15, single buffered']
    #allocation16 [shape = 'u8[512]{0}', space=vmem, size = 0x400, scoped, tag = 'input window, operand 16, single buffered']
    #allocation17 [shape = 's32[1]{0}', space=sflag, size = 0x4, scoped, tag = 'scoped memory for transformer_decoder_forward.4']
    #allocation18 [shape = 'u8[512]{0}', space=vmem, size = 0x400, scoped, tag = 'input window, operand 17, single buffered']
    #allocation19 [shape = 'u8[512]{0}', space=vmem, size = 0x400, scoped, tag = 'input window, operand 18, single buffered']
    #allocation20 [shape = 's32[1]{0}', space=sflag, size = 0x4, scoped, tag = 'scoped memory for transformer_decoder_forward.4']
    #allocation21 [shape = 'u8[512]{0}', space=vmem, size = 0x400, scoped, tag = 'input window, operand 19, single buffered']
    #allocation22 [shape = 'u8[512]{0}', space=vmem, size = 0x400, scoped, tag = 'input window, operand 20, single buffered']
    #allocation23 [shape = 's32[1]{0}', space=sflag, size = 0x4, scoped, tag = 'scoped memory for transformer_decoder_forward.4']
    #allocation24 [shape = 'u8[512]{0}', space=vmem, size = 0x400, scoped, tag = 'input window, operand 21, single buffered']
    %27 = vsyncpa [#allocation3], 0
    %28 = vsyncpa [#allocation5], 0
    %29 = vsyncpa [#allocation8], 0
    %30 = vsyncpa [#allocation11], 0
    %31 = vsyncpa [#allocation14], 0
    %32 = vsyncpa [#allocation17], 0
    %33 = vsyncpa [#allocation20], 0
    %34 = vsyncpa [#allocation23], 0
    // Predicated region
    $region2: #{transformer_decoder_forward.4} parent=1 // pred_check
      _
    $region3: #{transformer_decoder_forward.4} parent=1 // pred_check_branch
      %36 = sbr.rel (0) target = $region5
    $region4: #{transformer_decoder_forward.4} parent=1 // pred_region
      _
    $region5: #{transformer_decoder_forward.4} parent=1 // pred_fallthru
      _
    // Predicated region
    $region6: #{transformer_decoder_forward.4} parent=1 // pred_check
      _
    $region7: #{transformer_decoder_forward.4} parent=1 // pred_check_branch
      %38 = sbr.rel (0) target = $region9
    $region8: #{transformer_decoder_forward.4} parent=1 // pred_region
      _
    $region9: #{transformer_decoder_forward.4} parent=1 // pred_fallthru
      _
    // Predicated region
    $region10: #{transformer_decoder_forward.4} parent=1 // pred_check
      _
    $region11: #{transformer_decoder_forward.4} parent=1 // pred_check_branch
      %40 = sbr.rel (0) target = $region13
    $region12: #{transformer_decoder_forward.4} parent=1 // pred_region
      _
    $region13: #{transformer_decoder_forward.4} parent=1 // pred_fallthru
      _
    // Predicated region
    $region14: #{transformer_decoder_forward.4} parent=1 // pred_check
      _
    $region15: #{transformer_decoder_forward.4} parent=1 // pred_check_branch
      %42 = sbr.rel (0) target = $region17
    $region16: #{transformer_decoder_forward.4} parent=1 // pred_region
      %44 = vsyncadd [#allocation3], 0
      %s46 = sshll.u32 %s3, 4
      %s47 = int_to_ptr.hbm [resolvable:$true] %s46
      %s48 = sshll.u32 [#allocation2], 4
      %s49 = int_to_ptr.vmem [resolvable:$true] %s48
      %51 = dma.hbm_to_vmem [thread:$0]  %s47, 16, %s49, [#allocation3]
    $region17: #{transformer_decoder_forward.4} parent=1 // pred_fallthru
      _
    // Predicated region
    $region18: #{transformer_decoder_forward.4} parent=1 // pred_check
      _
    $region19: #{transformer_decoder_forward.4} parent=1 // pred_check_branch
      %53 = sbr.rel (0) target = $region21
    $region20: #{transformer_decoder_forward.4} parent=1 // pred_region
      _
    $region21: #{transformer_decoder_forward.4} parent=1 // pred_fallthru
      _
    // Predicated region
    $region22: #{transformer_decoder_forward.4} parent=1 // pred_check
      _
    $region23: #{transformer_decoder_forward.4} parent=1 // pred_check_branch
      %55 = sbr.rel (0) target = $region25
    $region24: #{transformer_decoder_forward.4} parent=1 // pred_region
      %57 = vsyncadd [#allocation5], 0
      %s59 = sshll.u32 %s5, 4
      %s60 = int_to_ptr.hbm [resolvable:$true] %s59
      %s61 = sshll.u32 [#allocation4], 4
      %s62 = int_to_ptr.vmem [resolvable:$true] %s61
      %64 = dma.hbm_to_vmem [thread:$0]  %s60, 16, %s62, [#allocation5]
    $region25: #{transformer_decoder_forward.4} parent=1 // pred_fallthru
      _
    // Predicated region
    $region26: #{transformer_decoder_forward.4} parent=1 // pred_check
      _
    $region27: #{transformer_decoder_forward.4} parent=1 // pred_check_branch
      %66 = sbr.rel (0) target = $region29
    $region28: #{transformer_decoder_forward.4} parent=1 // pred_region
      _
    $region29: #{transformer_decoder_forward.4} parent=1 // pred_fallthru
      _
    // Predicated region
    $region30: #{transformer_decoder_forward.4} parent=1 // pred_check
      _
    $region31: #{transformer_decoder_forward.4} parent=1 // pred_check_branch
      %68 = sbr.rel (0) target = $region33
    $region32: #{transformer_decoder_forward.4} parent=1 // pred_region
      %70 = vsyncadd [#allocation5], 0
      %s72 = sshll.u32 %s7, 4
      %s73 = int_to_ptr.hbm [resolvable:$true] %s72
      %s74 = sshll.u32 [#allocation6], 4
      %s75 = int_to_ptr.vmem [resolvable:$true] %s74
      %77 = dma.hbm_to_vmem [thread:$0]  %s73, 16, %s75, [#allocation5]
    $region33: #{transformer_decoder_forward.4} parent=1 // pred_fallthru
      _
    // Predicated region
    $region34: #{transformer_decoder_forward.4} parent=1 // pred_check
      _
    $region35: #{transformer_decoder_forward.4} parent=1 // pred_check_branch
      %79 = sbr.rel (0) target = $region37
    $region36: #{transformer_decoder_forward.4} parent=1 // pred_region
      %81 = vsyncadd [#allocation8], 0
      %s82 = sshll.u32 %s8, 4
      %s83 = int_to_ptr.hbm [resolvable:$true] %s82
      %s84 = sshll.u32 [#allocation7], 4
      %s85 = int_to_ptr.vmem [resolvable:$true] %s84
      %90 = dma.hbm_to_vmem [thread:$0]  %s83, 512, %s85, [#allocation8], 128, 128, 8
    $region37: #{transformer_decoder_forward.4} parent=1 // pred_fallthru
      _
    // Predicated region
    $region38: #{transformer_decoder_forward.4} parent=1 // pred_check
      _
    $region39: #{transformer_decoder_forward.4} parent=1 // pred_check_branch
      %92 = sbr.rel (0) target = $region41
    $region40: #{transformer_decoder_forward.4} parent=1 // pred_region
      %94 = vsyncadd [#allocation8], 0
      %s96 = sshll.u32 %s9, 4
      %s97 = int_to_ptr.hbm [resolvable:$true] %s96
      %s98 = sshll.u32 [#allocation9], 4
      %s99 = int_to_ptr.vmem [resolvable:$true] %s98
      %101 = dma.hbm_to_vmem [thread:$0]  %s97, 16, %s99, [#allocation8]
    $region41: #{transformer_decoder_forward.4} parent=1 // pred_fallthru
      _
    // Predicated region
    $region42: #{transformer_decoder_forward.4} parent=1 // pred_check
      _
    $region43: #{transformer_decoder_forward.4} parent=1 // pred_check_branch
      %103 = sbr.rel (0) target = $region45
    $region44: #{transformer_decoder_forward.4} parent=1 // pred_region
      %105 = vsyncadd [#allocation11], 0
      %s106 = sshll.u32 %s10, 4
      %s107 = int_to_ptr.hbm [resolvable:$true] %s106
      %s108 = sshll.u32 [#allocation10], 4
      %s109 = int_to_ptr.vmem [resolvable:$true] %s108
      %114 = dma.hbm_to_vmem [thread:$0]  %s107, 512, %s109, [#allocation11], 128, 128, 8
    $region45: #{transformer_decoder_forward.4} parent=1 // pred_fallthru
      _
    // Predicated region
    $region46: #{transformer_decoder_forward.4} parent=1 // pred_check
      _
    $region47: #{transformer_decoder_forward.4} parent=1 // pred_check_branch
      %116 = sbr.rel (0) target = $region49
    $region48: #{transformer_decoder_forward.4} parent=1 // pred_region
      %118 = vsyncadd [#allocation11], 0
      %s120 = sshll.u32 %s11, 4
      %s121 = int_to_ptr.hbm [resolvable:$true] %s120
      %s122 = sshll.u32 [#allocation12], 4
      %s123 = int_to_ptr.vmem [resolvable:$true] %s122
      %125 = dma.hbm_to_vmem [thread:$0]  %s121, 16, %s123, [#allocation11]
    $region49: #{transformer_decoder_forward.4} parent=1 // pred_fallthru
      _
    // Predicated region
    $region50: #{transformer_decoder_forward.4} parent=1 // pred_check
      _
    $region51: #{transformer_decoder_forward.4} parent=1 // pred_check_branch
      %127 = sbr.rel (0) target = $region53
    $region52: #{transformer_decoder_forward.4} parent=1 // pred_region
      _
    $region53: #{transformer_decoder_forward.4} parent=1 // pred_fallthru
      _
    // Predicated region
    $region54: #{transformer_decoder_forward.4} parent=1 // pred_check
      _
    $region55: #{transformer_decoder_forward.4} parent=1 // pred_check_branch
      %129 = sbr.rel (0) target = $region57
    $region56: #{transformer_decoder_forward.4} parent=1 // pred_region
      %131 = vsyncadd [#allocation14], 0
      %s133 = sshll.u32 %s13, 4
      %s134 = int_to_ptr.hbm [resolvable:$true] %s133
      %s135 = sshll.u32 [#allocation13], 4
      %s136 = int_to_ptr.vmem [resolvable:$true] %s135
      %138 = dma.hbm_to_vmem [thread:$0]  %s134, 16, %s136, [#allocation14]
    $region57: #{transformer_decoder_forward.4} parent=1 // pred_fallthru
      _
    // Predicated region
    $region58: #{transformer_decoder_forward.4} parent=1 // pred_check
      _
    $region59: #{transformer_decoder_forward.4} parent=1 // pred_check_branch
      %140 = sbr.rel (0) target = $region61
    $region60: #{transformer_decoder_forward.4} parent=1 // pred_region
      _
    $region61: #{transformer_decoder_forward.4} parent=1 // pred_fallthru
      _
    // Predicated region
    $region62: #{transformer_decoder_forward.4} parent=1 // pred_check
      _
    $region63: #{transformer_decoder_forward.4} parent=1 // pred_check_branch
      %142 = sbr.rel (0) target = $region65
    $region64: #{transformer_decoder_forward.4} parent=1 // pred_region
      %144 = vsyncadd [#allocation14], 0
      %s146 = sshll.u32 %s15, 4
      %s147 = int_to_ptr.hbm [resolvable:$true] %s146
      %s148 = sshll.u32 [#allocation15], 4
      %s149 = int_to_ptr.vmem [resolvable:$true] %s148
      %151 = dma.hbm_to_vmem [thread:$0]  %s147, 16, %s149, [#allocation14]
    $region65: #{transformer_decoder_forward.4} parent=1 // pred_fallthru
      _
    // Predicated region
    $region66: #{transformer_decoder_forward.4} parent=1 // pred_check
      _
    $region67: #{transformer_decoder_forward.4} parent=1 // pred_check_branch
      %153 = sbr.rel (0) target = $region69
    $region68: #{transformer_decoder_forward.4} parent=1 // pred_region
      %155 = vsyncadd [#allocation17], 0
      %s157 = sshll.u32 %s16, 4
      %s158 = int_to_ptr.hbm [resolvable:$true] %s157
      %s159 = sshll.u32 [#allocation16], 4
      %s160 = int_to_ptr.vmem [resolvable:$true] %s159
      %162 = dma.hbm_to_vmem [thread:$0]  %s158, 16, %s160, [#allocation17]
    $region69: #{transformer_decoder_forward.4} parent=1 // pred_fallthru
      _
    // Predicated region
    $region70: #{transformer_decoder_forward.4} parent=1 // pred_check
      _
    $region71: #{transformer_decoder_forward.4} parent=1 // pred_check_branch
      %164 = sbr.rel (0) target = $region73
    $region72: #{transformer_decoder_forward.4} parent=1 // pred_region
      %166 = vsyncadd [#allocation17], 0
      %s168 = sshll.u32 %s17, 4
      %s169 = int_to_ptr.hbm [resolvable:$true] %s168
      %s170 = sshll.u32 [#allocation18], 4
      %s171 = int_to_ptr.vmem [resolvable:$true] %s170
      %173 = dma.hbm_to_vmem [thread:$0]  %s169, 16, %s171, [#allocation17]
    $region73: #{transformer_decoder_forward.4} parent=1 // pred_fallthru
      _
    // Predicated region
    $region74: #{transformer_decoder_forward.4} parent=1 // pred_check
      _
    $region75: #{transformer_decoder_forward.4} parent=1 // pred_check_branch
      %175 = sbr.rel (0) target = $region77
    $region76: #{transformer_decoder_forward.4} parent=1 // pred_region
      %177 = vsyncadd [#allocation20], 0
      %s179 = sshll.u32 %s18, 4
      %s180 = int_to_ptr.hbm [resolvable:$true] %s179
      %s181 = sshll.u32 [#allocation19], 4
      %s182 = int_to_ptr.vmem [resolvable:$true] %s181
      %184 = dma.hbm_to_vmem [thread:$0]  %s180, 16, %s182, [#allocation20]
    $region77: #{transformer_decoder_forward.4} parent=1 // pred_fallthru
      _
    // Predicated region
    $region78: #{transformer_decoder_forward.4} parent=1 // pred_check
      _
    $region79: #{transformer_decoder_forward.4} parent=1 // pred_check_branch
      %186 = sbr.rel (0) target = $region81
    $region80: #{transformer_decoder_forward.4} parent=1 // pred_region
      %188 = vsyncadd [#allocation20], 0
      %s190 = sshll.u32 %s19, 4
      %s191 = int_to_ptr.hbm [resolvable:$true] %s190
      %s192 = sshll.u32 [#allocation21], 4
      %s193 = int_to_ptr.vmem [resolvable:$true] %s192
      %195 = dma.hbm_to_vmem [thread:$0]  %s191, 16, %s193, [#allocation20]
    $region81: #{transformer_decoder_forward.4} parent=1 // pred_fallthru
      _
    // Predicated region
    $region82: #{transformer_decoder_forward.4} parent=1 // pred_check
      _
    $region83: #{transformer_decoder_forward.4} parent=1 // pred_check_branch
      %197 = sbr.rel (0) target = $region85
    $region84: #{transformer_decoder_forward.4} parent=1 // pred_region
      %199 = vsyncadd [#allocation23], 0
      %s201 = sshll.u32 %s20, 4
      %s202 = int_to_ptr.hbm [resolvable:$true] %s201
      %s203 = sshll.u32 [#allocation22], 4
      %s204 = int_to_ptr.vmem [resolvable:$true] %s203
      %206 = dma.hbm_to_vmem [thread:$0]  %s202, 16, %s204, [#allocation23]
    $region85: #{transformer_decoder_forward.4} parent=1 // pred_fallthru
      _
    // Predicated region
    $region86: #{transformer_decoder_forward.4} parent=1 // pred_check
      _
    $region87: #{transformer_decoder_forward.4} parent=1 // pred_check_branch
      %208 = sbr.rel (0) target = $region89
    $region88: #{transformer_decoder_forward.4} parent=1 // pred_region
      %210 = vsyncadd [#allocation23], 0
      %s212 = sshll.u32 %s21, 4
      %s213 = int_to_ptr.hbm [resolvable:$true] %s212
      %s214 = sshll.u32 [#allocation24], 4
      %s215 = int_to_ptr.vmem [resolvable:$true] %s214
      %217 = dma.hbm_to_vmem [thread:$0]  %s213, 16, %s215, [#allocation23]
    $region89: #{transformer_decoder_forward.4} parent=1 // pred_fallthru
      _
    // Predicated region
    $region90: #{transformer_decoder_forward.4} parent=1 // pred_check
      _
    $region91: #{transformer_decoder_forward.4} parent=1 // pred_check_branch
      %219 = sbr.rel (0) target = $region93
    $region92: #{transformer_decoder_forward.4} parent=1 // pred_region
      %221 = dma.done [#allocation3], 16
    $region93: #{transformer_decoder_forward.4} parent=1 // pred_fallthru
      _
    // Predicated region
    $region94: #{transformer_decoder_forward.4} parent=1 // pred_check
      _
    $region95: #{transformer_decoder_forward.4} parent=1 // pred_check_branch
      %223 = sbr.rel (0) target = $region97
    $region96: #{transformer_decoder_forward.4} parent=1 // pred_region
      %225 = dma.done [#allocation5], 16
    $region97: #{transformer_decoder_forward.4} parent=1 // pred_fallthru
      _
    // Predicated region
    $region98: #{transformer_decoder_forward.4} parent=1 // pred_check
      _
    $region99: #{transformer_decoder_forward.4} parent=1 // pred_check_branch
      %227 = sbr.rel (0) target = $region101
    $region100: #{transformer_decoder_forward.4} parent=1 // pred_region
      %229 = dma.done [#allocation5], 16
    $region101: #{transformer_decoder_forward.4} parent=1 // pred_fallthru
      _
    // Predicated region
    $region102: #{transformer_decoder_forward.4} parent=1 // pred_check
      _
    $region103: #{transformer_decoder_forward.4} parent=1 // pred_check_branch
      %231 = sbr.rel (0) target = $region105
    $region104: #{transformer_decoder_forward.4} parent=1 // pred_region
      %233 = dma.done [#allocation8], 512
    $region105: #{transformer_decoder_forward.4} parent=1 // pred_fallthru
      _
    // Predicated region
    $region106: #{transformer_decoder_forward.4} parent=1 // pred_check
      _
    $region107: #{transformer_decoder_forward.4} parent=1 // pred_check_branch
      %235 = sbr.rel (0) target = $region109
    $region108: #{transformer_decoder_forward.4} parent=1 // pred_region
      %237 = dma.done [#allocation8], 16
    $region109: #{transformer_decoder_forward.4} parent=1 // pred_fallthru
      _
    // Predicated region
    $region110: #{transformer_decoder_forward.4} parent=1 // pred_check
      _
    $region111: #{transformer_decoder_forward.4} parent=1 // pred_check_branch
      %239 = sbr.rel (0) target = $region113
    $region112: #{transformer_decoder_forward.4} parent=1 // pred_region
      %241 = dma.done [#allocation11], 512
    $region113: #{transformer_decoder_forward.4} parent=1 // pred_fallthru
      _
    // Predicated region
    $region114: #{transformer_decoder_forward.4} parent=1 // pred_check
      _
    $region115: #{transformer_decoder_forward.4} parent=1 // pred_check_branch
      %243 = sbr.rel (0) target = $region117
    $region116: #{transformer_decoder_forward.4} parent=1 // pred_region
      %245 = dma.done [#allocation11], 16
    $region117: #{transformer_decoder_forward.4} parent=1 // pred_fallthru
      _
    // Predicated region
    $region118: #{transformer_decoder_forward.4} parent=1 // pred_check
      _
    $region119: #{transformer_decoder_forward.4} parent=1 // pred_check_branch
      %247 = sbr.rel (0) target = $region121
    $region120: #{transformer_decoder_forward.4} parent=1 // pred_region
      %249 = dma.done [#allocation14], 16
    $region121: #{transformer_decoder_forward.4} parent=1 // pred_fallthru
      _
    // Predicated region
    $region122: #{transformer_decoder_forward.4} parent=1 // pred_check
      _
    $region123: #{transformer_decoder_forward.4} parent=1 // pred_check_branch
      %251 = sbr.rel (0) target = $region125
    $region124: #{transformer_decoder_forward.4} parent=1 // pred_region
      %253 = dma.done [#allocation14], 16
    $region125: #{transformer_decoder_forward.4} parent=1 // pred_fallthru
      _
    // Predicated region
    $region126: #{transformer_decoder_forward.4} parent=1 // pred_check
      _
    $region127: #{transformer_decoder_forward.4} parent=1 // pred_check_branch
      %255 = sbr.rel (0) target = $region129
    $region128: #{transformer_decoder_forward.4} parent=1 // pred_region
      %257 = dma.done [#allocation17], 16
    $region129: #{transformer_decoder_forward.4} parent=1 // pred_fallthru
      _
    // Predicated region
    $region130: #{transformer_decoder_forward.4} parent=1 // pred_check
      _
    $region131: #{transformer_decoder_forward.4} parent=1 // pred_check_branch
      %259 = sbr.rel (0) target = $region133
    $region132: #{transformer_decoder_forward.4} parent=1 // pred_region
      %261 = dma.done [#allocation17], 16
    $region133: #{transformer_decoder_forward.4} parent=1 // pred_fallthru
      _
    // Predicated region
    $region134: #{transformer_decoder_forward.4} parent=1 // pred_check
      _
    $region135: #{transformer_decoder_forward.4} parent=1 // pred_check_branch
      %263 = sbr.rel (0) target = $region137
    $region136: #{transformer_decoder_forward.4} parent=1 // pred_region
      %265 = dma.done [#allocation20], 16
    $region137: #{transformer_decoder_forward.4} parent=1 // pred_fallthru
      _
    // Predicated region
    $region138: #{transformer_decoder_forward.4} parent=1 // pred_check
      _
    $region139: #{transformer_decoder_forward.4} parent=1 // pred_check_branch
      %267 = sbr.rel (0) target = $region141
    $region140: #{transformer_decoder_forward.4} parent=1 // pred_region
      %269 = dma.done [#allocation20], 16
    $region141: #{transformer_decoder_forward.4} parent=1 // pred_fallthru
      _
    // Predicated region
    $region142: #{transformer_decoder_forward.4} parent=1 // pred_check
      _
    $region143: #{transformer_decoder_forward.4} parent=1 // pred_check_branch
      %271 = sbr.rel (0) target = $region145
    $region144: #{transformer_decoder_forward.4} parent=1 // pred_region
      %273 = dma.done [#allocation23], 16
    $region145: #{transformer_decoder_forward.4} parent=1 // pred_fallthru
      _
    // Predicated region
    $region146: #{transformer_decoder_forward.4} parent=1 // pred_check
      _
    $region147: #{transformer_decoder_forward.4} parent=1 // pred_check_branch
      %275 = sbr.rel (0) target = $region149
    $region148: #{transformer_decoder_forward.4} parent=1 // pred_region
      %277 = dma.done [#allocation23], 16
    $region149: #{transformer_decoder_forward.4} parent=1 // pred_fallthru
      _
    %v278 = vld [vmem:[%s0] sm:$0xff]
    %v279 = vld [vmem:[%s0 + $0x8] sm:$0xff]
    %v280 = vld [vmem:[%s1] sm:$0xff]
    %v281 = vld [vmem:[%s1 + $0x8] sm:$0xff]
    %v282 = vld [vmem:[%s1 + $0x10] sm:$0xff]
    %v283 = vld [vmem:[%s1 + $0x18] sm:$0xff]
    %v284 = vld [vmem:[%s2] sm:$0xff]
    %v285 = vld [vmem:[%s2 + $0x8] sm:$0xff]
    %v286 = vld [vmem:[%s2 + $0x10] sm:$0xff]
    %v287 = vld [vmem:[%s2 + $0x18] sm:$0xff]
    %v288 = vld [vmem:[#allocation2] sm:$0x1]
    %v290 = vperm.slane %v288, 0
    %vm292 = vcmask 261120
    %v294 = vsel %vm292, %v278, 0
    %v297 = vsel %vm292, %v279, 0
    %299 = vmatpush.msra.mxu0 0.0
    %300 = vmatpush.msra.mxu0 0.0
    %301 = vmatpush.msra.mxu0 0.0
    %302 = vmatpush.msra.mxu0 0.0
    %303 = vmatpush.msra.mxu0 0.0
    %304 = vmatpush.msra.mxu0 0.0
    %305 = vmatpush.msra.mxu0 0.0
    %306 = vmatpush.msra.mxu0 0.0
    %307 = vmatpush.msra.mxu0 0.0
    %308 = vmatpush.msra.mxu0 0.0
    %309 = vmatpush.msra.mxu0 0.0
    %310 = vmatpush.msra.mxu0 0.0
    %311 = vmatpush.msra.mxu0 %v287
    %312 = vmatpush.msra.mxu0 %v286
    %313 = vmatpush.msra.mxu0 %v285
    %314 = vmatpush.msra.mxu0 %v284
    %315 = vmatmul.f32.gmra.mxu0 %v294
    %v316 = vpop.f32.mrf.mxu0
    %v317 = vadd.f32 %v290, %v316
    %318 = vmatmul.f32.gmra.mxu0 %v297
    %v319 = vpop.f32.mrf.mxu0
    %v320 = vadd.f32 %v290, %v319
    %321 = vdwg.mxu0
    %323 = vrot.lane.b32.xlu0 %v317, 96
    %v324 = vpop.permute.xlu0 %323
    %vm325 = vcmask 64512
    %v326 = vsel %vm325, %v317, 0
    %v328 = vsel %vm325, %v324, 0
    %330 = vmatpush.xpose.msra.mxu0 0.0
    %331 = vmatpush.xpose.msra.mxu0 0.0
    %332 = vmatpush.xpose.msra.mxu0 0.0
    %333 = vmatpush.xpose.msra.mxu0 0.0
    %334 = vmatpush.xpose.msra.mxu0 0.0
    %335 = vmatpush.xpose.msra.mxu0 0.0
    %336 = vmatpush.xpose.msra.mxu0 0.0
    %337 = vmatpush.xpose.msra.mxu0 0.0
    %338 = vmatpush.xpose.msra.mxu0 0.0
    %339 = vmatpush.xpose.msra.mxu0 0.0
    %340 = vmatpush.xpose.msra.mxu0 0.0
    %341 = vmatpush.xpose.msra.mxu0 0.0
    %342 = vmatpush.xpose.msra.mxu0 0.0
    %343 = vmatpush.xpose.msra.mxu0 0.0
    %344 = vmatpush.xpose.msra.mxu0 0.0
    %345 = vmatpush.xpose.msra.mxu0 %v328
    %346 = vmatmul.f32.gmra.mxu0 %v326
    %v347 = vpop.f32.mrf.mxu0
    %v348 = vadd.f32 0.0, %v347
    %349 = vdwg.mxu0
    %351 = vrot.lane.b32.xlu0 %v320, 96
    %v352 = vpop.permute.xlu0 %351
    %v353 = vsel %vm325, %v320, 0
    %v355 = vsel %vm325, %v352, 0
    %357 = vmatpush.xpose.msra.mxu0 0.0
    %358 = vmatpush.xpose.msra.mxu0 0.0
    %359 = vmatpush.xpose.msra.mxu0 0.0
    %360 = vmatpush.xpose.msra.mxu0 0.0
    %361 = vmatpush.xpose.msra.mxu0 0.0
    %362 = vmatpush.xpose.msra.mxu0 0.0
    %363 = vmatpush.xpose.msra.mxu0 0.0
    %364 = vmatpush.xpose.msra.mxu0 0.0
    %365 = vmatpush.xpose.msra.mxu0 0.0
    %366 = vmatpush.xpose.msra.mxu0 0.0
    %367 = vmatpush.xpose.msra.mxu0 0.0
    %368 = vmatpush.xpose.msra.mxu0 0.0
    %369 = vmatpush.xpose.msra.mxu0 0.0
    %370 = vmatpush.xpose.msra.mxu0 0.0
    %371 = vmatpush.xpose.msra.mxu0 0.0
    %372 = vmatpush.xpose.msra.mxu0 %v355
    %373 = vmatmul.f32.gmra.mxu0 %v353
    %v374 = vpop.f32.mrf.mxu0
    %v375 = vadd.f32 0.0, %v374
    %376 = vdwg.mxu0
    %v377 = vmul.f32 %v348, 0.35355338
    %v378 = vmul.f32 %v375, 0.35355338
    %v379 = vsel %vm325, %v377, -inf
    %380 = vmax.xlane.f32.xlu0 %v379
    %v381 = vpop.xlane.xlu0 %380
    %v382 = vsel %vm325, %v378, -inf
    %383 = vmax.xlane.f32.xlu0 %v382
    %v384 = vpop.xlane.xlu0 %383
    %v385 = vsub.f32 %v377, %v381
    %v386 = vsub.f32 %v378, %v384
    %v387 = vmul.f32 %v385, 1.442695
    %v388 = vpow.pop %v387
    %v389 = vmul.f32 %v386, 1.442695
    %v390 = vpow.pop %v389
    %v391 = vsel %vm325, %v388, 0.0
    %392 = vadd.xlane.f32.xlu0 %v391
    %v393 = vpop.xlane.xlu0 %392
    %v394 = vsel %vm325, %v390, 0.0
    %395 = vadd.xlane.f32.xlu0 %v394
    %v396 = vpop.xlane.xlu0 %395
    %v397 = vrcp.pop %v393
    %v398 = vrcp.pop %v396
    %v399 = vmul.f32 %v388, %v397
    %v400 = vmul.f32 %v390, %v398
    %401 = vrot.lane.b32.xlu0 %v317, 64
    %v402 = vpop.permute.xlu0 %401
    %v405 = vsel %vm325, %v399, 0
    %407 = vmatpush.msra.mxu0 0.0
    %408 = vmatpush.msra.mxu0 0.0
    %409 = vmatpush.msra.mxu0 0.0
    %410 = vmatpush.msra.mxu0 0.0
    %411 = vmatpush.msra.mxu0 0.0
    %412 = vmatpush.msra.mxu0 0.0
    %413 = vmatpush.msra.mxu0 0.0
    %414 = vmatpush.msra.mxu0 0.0
    %415 = vmatpush.msra.mxu0 0.0
    %416 = vmatpush.msra.mxu0 0.0
    %417 = vmatpush.msra.mxu0 0.0
    %418 = vmatpush.msra.mxu0 0.0
    %419 = vmatpush.msra.mxu0 0.0
    %420 = vmatpush.msra.mxu0 0.0
    %421 = vmatpush.msra.mxu0 0.0
    %422 = vmatpush.msra.mxu0 %v402
    %423 = vmatmul.f32.gmra.mxu0 %v405
    %v424 = vpop.f32.mrf.mxu0
    %v425 = vadd.f32 0.0, %v424
    %426 = vdwg.mxu0
    %427 = vrot.lane.b32.xlu0 %v320, 64
    %v428 = vpop.permute.xlu0 %427
    %v431 = vsel %vm325, %v400, 0
    %433 = vmatpush.msra.mxu0 0.0
    %434 = vmatpush.msra.mxu0 0.0
    %435 = vmatpush.msra.mxu0 0.0
    %436 = vmatpush.msra.mxu0 0.0
    %437 = vmatpush.msra.mxu0 0.0
    %438 = vmatpush.msra.mxu0 0.0
    %439 = vmatpush.msra.mxu0 0.0
    %440 = vmatpush.msra.mxu0 0.0
    %441 = vmatpush.msra.mxu0 0.0
    %442 = vmatpush.msra.mxu0 0.0
    %443 = vmatpush.msra.mxu0 0.0
    %444 = vmatpush.msra.mxu0 0.0
    %445 = vmatpush.msra.mxu0 0.0
    %446 = vmatpush.msra.mxu0 0.0
    %447 = vmatpush.msra.mxu0 0.0
    %448 = vmatpush.msra.mxu0 %v428
    %449 = vmatmul.f32.gmra.mxu0 %v431
    %v450 = vpop.f32.mrf.mxu0
    %v451 = vadd.f32 0.0, %v450
    %452 = vdwg.mxu0
    %v453 = vld [vmem:[%s4] sm:$0xff]
    %454 = vrot.lane.b32.xlu0 %v317, 120
    %v455 = vpop.permute.xlu0 %454
    %456 = vrot.lane.b32.xlu0 %v317, 88
    %v457 = vpop.permute.xlu0 %456
    %v458 = vsel %vm325, %v455, 0
    %v460 = vsel %vm325, %v457, 0
    %462 = vmatpush.xpose.msra.mxu0 0.0
    %463 = vmatpush.xpose.msra.mxu0 0.0
    %464 = vmatpush.xpose.msra.mxu0 0.0
    %465 = vmatpush.xpose.msra.mxu0 0.0
    %466 = vmatpush.xpose.msra.mxu0 0.0
    %467 = vmatpush.xpose.msra.mxu0 0.0
    %468 = vmatpush.xpose.msra.mxu0 0.0
    %469 = vmatpush.xpose.msra.mxu0 0.0
    %470 = vmatpush.xpose.msra.mxu0 0.0
    %471 = vmatpush.xpose.msra.mxu0 0.0
    %472 = vmatpush.xpose.msra.mxu0 0.0
    %473 = vmatpush.xpose.msra.mxu0 0.0
    %474 = vmatpush.xpose.msra.mxu0 0.0
    %475 = vmatpush.xpose.msra.mxu0 0.0
    %476 = vmatpush.xpose.msra.mxu0 0.0
    %477 = vmatpush.xpose.msra.mxu0 %v460
    %478 = vmatmul.f32.gmra.mxu0 %v458
    %v479 = vpop.f32.mrf.mxu0
    %v480 = vadd.f32 0.0, %v479
    %481 = vdwg.mxu0
    %482 = vrot.lane.b32.xlu0 %v320, 120
    %v483 = vpop.permute.xlu0 %482
    %484 = vrot.lane.b32.xlu0 %v320, 88
    %v485 = vpop.permute.xlu0 %484
    %v486 = vsel %vm325, %v483, 0
    %v488 = vsel %vm325, %v485, 0
    %490 = vmatpush.xpose.msra.mxu0 0.0
    %491 = vmatpush.xpose.msra.mxu0 0.0
    %492 = vmatpush.xpose.msra.mxu0 0.0
    %493 = vmatpush.xpose.msra.mxu0 0.0
    %494 = vmatpush.xpose.msra.mxu0 0.0
    %495 = vmatpush.xpose.msra.mxu0 0.0
    %496 = vmatpush.xpose.msra.mxu0 0.0
    %497 = vmatpush.xpose.msra.mxu0 0.0
    %498 = vmatpush.xpose.msra.mxu0 0.0
    %499 = vmatpush.xpose.msra.mxu0 0.0
    %500 = vmatpush.xpose.msra.mxu0 0.0
    %501 = vmatpush.xpose.msra.mxu0 0.0
    %502 = vmatpush.xpose.msra.mxu0 0.0
    %503 = vmatpush.xpose.msra.mxu0 0.0
    %504 = vmatpush.xpose.msra.mxu0 0.0
    %505 = vmatpush.xpose.msra.mxu0 %v488
    %506 = vmatmul.f32.gmra.mxu0 %v486
    %v507 = vpop.f32.mrf.mxu0
    %v508 = vadd.f32 0.0, %v507
    %509 = vdwg.mxu0
    %v510 = vmul.f32 %v480, 0.35355338
    %v511 = vmul.f32 %v508, 0.35355338
    %v512 = vsel %vm325, %v510, -inf
    %513 = vmax.xlane.f32.xlu0 %v512
    %v514 = vpop.xlane.xlu0 %513
    %v515 = vsel %vm325, %v511, -inf
    %516 = vmax.xlane.f32.xlu0 %v515
    %v517 = vpop.xlane.xlu0 %516
    %v518 = vsub.f32 %v510, %v514
    %v519 = vsub.f32 %v511, %v517
    %v520 = vmul.f32 %v518, 1.442695
    %v521 = vpow.pop %v520
    %v522 = vmul.f32 %v519, 1.442695
    %v523 = vpow.pop %v522
    %v524 = vsel %vm325, %v521, 0.0
    %525 = vadd.xlane.f32.xlu0 %v524
    %v526 = vpop.xlane.xlu0 %525
    %v527 = vsel %vm325, %v523, 0.0
    %528 = vadd.xlane.f32.xlu0 %v527
    %v529 = vpop.xlane.xlu0 %528
    %v530 = vrcp.pop %v526
    %v531 = vrcp.pop %v529
    %v532 = vmul.f32 %v521, %v530
    %v533 = vmul.f32 %v523, %v531
    %534 = vrot.lane.b32.xlu0 %v317, 56
    %v535 = vpop.permute.xlu0 %534
    %v538 = vsel %vm325, %v532, 0
    %540 = vmatpush.msra.mxu0 0.0
    %541 = vmatpush.msra.mxu0 0.0
    %542 = vmatpush.msra.mxu0 0.0
    %543 = vmatpush.msra.mxu0 0.0
    %544 = vmatpush.msra.mxu0 0.0
    %545 = vmatpush.msra.mxu0 0.0
    %546 = vmatpush.msra.mxu0 0.0
    %547 = vmatpush.msra.mxu0 0.0
    %548 = vmatpush.msra.mxu0 0.0
    %549 = vmatpush.msra.mxu0 0.0
    %550 = vmatpush.msra.mxu0 0.0
    %551 = vmatpush.msra.mxu0 0.0
    %552 = vmatpush.msra.mxu0 0.0
    %553 = vmatpush.msra.mxu0 0.0
    %554 = vmatpush.msra.mxu0 0.0
    %555 = vmatpush.msra.mxu0 %v535
    %556 = vmatmul.f32.gmra.mxu0 %v538
    %v557 = vpop.f32.mrf.mxu0
    %v558 = vadd.f32 0.0, %v557
    %559 = vdwg.mxu0
    %560 = vrot.lane.b32.xlu0 %v320, 56
    %v561 = vpop.permute.xlu0 %560
    %v564 = vsel %vm325, %v533, 0
    %566 = vmatpush.msra.mxu0 0.0
    %567 = vmatpush.msra.mxu0 0.0
    %568 = vmatpush.msra.mxu0 0.0
    %569 = vmatpush.msra.mxu0 0.0
    %570 = vmatpush.msra.mxu0 0.0
    %571 = vmatpush.msra.mxu0 0.0
    %572 = vmatpush.msra.mxu0 0.0
    %573 = vmatpush.msra.mxu0 0.0
    %574 = vmatpush.msra.mxu0 0.0
    %575 = vmatpush.msra.mxu0 0.0
    %576 = vmatpush.msra.mxu0 0.0
    %577 = vmatpush.msra.mxu0 0.0
    %578 = vmatpush.msra.mxu0 0.0
    %579 = vmatpush.msra.mxu0 0.0
    %580 = vmatpush.msra.mxu0 0.0
    %581 = vmatpush.msra.mxu0 %v561
    %582 = vmatmul.f32.gmra.mxu0 %v564
    %v583 = vpop.f32.mrf.mxu0
    %v584 = vadd.f32 0.0, %v583
    %585 = vdwg.mxu0
    %v586 = vld [vmem:[%s4 + $0x8] sm:$0xff]
    %v588 = vsel %vm325, %v558, 0
    %v591 = vsel %vm325, %v584, 0
    %593 = vmatpush.msra.mxu0 0.0
    %594 = vmatpush.msra.mxu0 0.0
    %595 = vmatpush.msra.mxu0 0.0
    %596 = vmatpush.msra.mxu0 0.0
    %597 = vmatpush.msra.mxu0 0.0
    %598 = vmatpush.msra.mxu0 0.0
    %599 = vmatpush.msra.mxu0 0.0
    %600 = vmatpush.msra.mxu0 0.0
    %601 = vmatpush.msra.mxu0 0.0
    %602 = vmatpush.msra.mxu0 0.0
    %603 = vmatpush.msra.mxu0 0.0
    %604 = vmatpush.msra.mxu0 0.0
    %605 = vmatpush.msra.mxu0 0.0
    %606 = vmatpush.msra.mxu0 0.0
    %607 = vmatpush.msra.mxu0 0.0
    %608 = vmatpush.msra.mxu0 %v586
    %609 = vmatmul.f32.gmra.mxu0 %v588
    %v610 = vpop.f32.mrf.mxu0
    %v611 = vadd.f32 0.0, %v610
    %612 = vmatmul.f32.gmra.mxu0 %v591
    %v613 = vpop.f32.mrf.mxu0
    %v614 = vadd.f32 0.0, %v613
    %615 = vdwg.mxu0
    %v617 = vsel %vm325, %v425, 0
    %v620 = vsel %vm325, %v451, 0
    %622 = vmatpush.msra.mxu0 0.0
    %623 = vmatpush.msra.mxu0 0.0
    %624 = vmatpush.msra.mxu0 0.0
    %625 = vmatpush.msra.mxu0 0.0
    %626 = vmatpush.msra.mxu0 0.0
    %627 = vmatpush.msra.mxu0 0.0
    %628 = vmatpush.msra.mxu0 0.0
    %629 = vmatpush.msra.mxu0 0.0
    %630 = vmatpush.msra.mxu0 0.0
    %631 = vmatpush.msra.mxu0 0.0
    %632 = vmatpush.msra.mxu0 0.0
    %633 = vmatpush.msra.mxu0 0.0
    %634 = vmatpush.msra.mxu0 0.0
    %635 = vmatpush.msra.mxu0 0.0
    %636 = vmatpush.msra.mxu0 0.0
    %637 = vmatpush.msra.mxu0 %v453
    %638 = vmatmul.f32.gmra.mxu0 %v617
    %v639 = vpop.f32.mrf.mxu0
    %v640 = vadd.f32 %v611, %v639
    %641 = vmatmul.f32.gmra.mxu0 %v620
    %v642 = vpop.f32.mrf.mxu0
    %v643 = vadd.f32 %v614, %v642
    %644 = vdwg.mxu0
    %645 = vrot.lane.b32.xlu0 %v317, 112
    %v646 = vpop.permute.xlu0 %645
    %647 = vrot.lane.b32.xlu0 %v317, 80
    %v648 = vpop.permute.xlu0 %647
    %v649 = vsel %vm325, %v646, 0
    %v651 = vsel %vm325, %v648, 0
    %653 = vmatpush.xpose.msra.mxu0 0.0
    %654 = vmatpush.xpose.msra.mxu0 0.0
    %655 = vmatpush.xpose.msra.mxu0 0.0
    %656 = vmatpush.xpose.msra.mxu0 0.0
    %657 = vmatpush.xpose.msra.mxu0 0.0
    %658 = vmatpush.xpose.msra.mxu0 0.0
    %659 = vmatpush.xpose.msra.mxu0 0.0
    %660 = vmatpush.xpose.msra.mxu0 0.0
    %661 = vmatpush.xpose.msra.mxu0 0.0
    %662 = vmatpush.xpose.msra.mxu0 0.0
    %663 = vmatpush.xpose.msra.mxu0 0.0
    %664 = vmatpush.xpose.msra.mxu0 0.0
    %665 = vmatpush.xpose.msra.mxu0 0.0
    %666 = vmatpush.xpose.msra.mxu0 0.0
    %667 = vmatpush.xpose.msra.mxu0 0.0
    %668 = vmatpush.xpose.msra.mxu0 %v651
    %669 = vmatmul.f32.gmra.mxu0 %v649
    %v670 = vpop.f32.mrf.mxu0
    %v671 = vadd.f32 0.0, %v670
    %672 = vdwg.mxu0
    %673 = vrot.lane.b32.xlu0 %v320, 112
    %v674 = vpop.permute.xlu0 %673
    %675 = vrot.lane.b32.xlu0 %v320, 80
    %v676 = vpop.permute.xlu0 %675
    %v677 = vsel %vm325, %v674, 0
    %v679 = vsel %vm325, %v676, 0
    %681 = vmatpush.xpose.msra.mxu0 0.0
    %682 = vmatpush.xpose.msra.mxu0 0.0
    %683 = vmatpush.xpose.msra.mxu0 0.0
    %684 = vmatpush.xpose.msra.mxu0 0.0
    %685 = vmatpush.xpose.msra.mxu0 0.0
    %686 = vmatpush.xpose.msra.mxu0 0.0
    %687 = vmatpush.xpose.msra.mxu0 0.0
    %688 = vmatpush.xpose.msra.mxu0 0.0
    %689 = vmatpush.xpose.msra.mxu0 0.0
    %690 = vmatpush.xpose.msra.mxu0 0.0
    %691 = vmatpush.xpose.msra.mxu0 0.0
    %692 = vmatpush.xpose.msra.mxu0 0.0
    %693 = vmatpush.xpose.msra.mxu0 0.0
    %694 = vmatpush.xpose.msra.mxu0 0.0
    %695 = vmatpush.xpose.msra.mxu0 0.0
    %696 = vmatpush.xpose.msra.mxu0 %v679
    %697 = vmatmul.f32.gmra.mxu0 %v677
    %v698 = vpop.f32.mrf.mxu0
    %v699 = vadd.f32 0.0, %v698
    %700 = vdwg.mxu0
    %v701 = vmul.f32 %v671, 0.35355338
    %v702 = vmul.f32 %v699, 0.35355338
    %v703 = vsel %vm325, %v701, -inf
    %704 = vmax.xlane.f32.xlu0 %v703
    %v705 = vpop.xlane.xlu0 %704
    %v706 = vsel %vm325, %v702, -inf
    %707 = vmax.xlane.f32.xlu0 %v706
    %v708 = vpop.xlane.xlu0 %707
    %v709 = vsub.f32 %v701, %v705
    %v710 = vsub.f32 %v702, %v708
    %v711 = vmul.f32 %v709, 1.442695
    %v712 = vpow.pop %v711
    %v713 = vmul.f32 %v710, 1.442695
    %v714 = vpow.pop %v713
    %v715 = vsel %vm325, %v712, 0.0
    %716 = vadd.xlane.f32.xlu0 %v715
    %v717 = vpop.xlane.xlu0 %716
    %v718 = vsel %vm325, %v714, 0.0
    %719 = vadd.xlane.f32.xlu0 %v718
    %v720 = vpop.xlane.xlu0 %719
    %v721 = vrcp.pop %v717
    %v722 = vrcp.pop %v720
    %v723 = vmul.f32 %v712, %v721
    %v724 = vmul.f32 %v714, %v722
    %725 = vrot.lane.b32.xlu0 %v317, 48
    %v726 = vpop.permute.xlu0 %725
    %v729 = vsel %vm325, %v723, 0
    %731 = vmatpush.msra.mxu0 0.0
    %732 = vmatpush.msra.mxu0 0.0
    %733 = vmatpush.msra.mxu0 0.0
    %734 = vmatpush.msra.mxu0 0.0
    %735 = vmatpush.msra.mxu0 0.0
    %736 = vmatpush.msra.mxu0 0.0
    %737 = vmatpush.msra.mxu0 0.0
    %738 = vmatpush.msra.mxu0 0.0
    %739 = vmatpush.msra.mxu0 0.0
    %740 = vmatpush.msra.mxu0 0.0
    %741 = vmatpush.msra.mxu0 0.0
    %742 = vmatpush.msra.mxu0 0.0
    %743 = vmatpush.msra.mxu0 0.0
    %744 = vmatpush.msra.mxu0 0.0
    %745 = vmatpush.msra.mxu0 0.0
    %746 = vmatpush.msra.mxu0 %v726
    %747 = vmatmul.f32.gmra.mxu0 %v729
    %v748 = vpop.f32.mrf.mxu0
    %v749 = vadd.f32 0.0, %v748
    %750 = vdwg.mxu0
    %751 = vrot.lane.b32.xlu0 %v320, 48
    %v752 = vpop.permute.xlu0 %751
    %v755 = vsel %vm325, %v724, 0
    %757 = vmatpush.msra.mxu0 0.0
    %758 = vmatpush.msra.mxu0 0.0
    %759 = vmatpush.msra.mxu0 0.0
    %760 = vmatpush.msra.mxu0 0.0
    %761 = vmatpush.msra.mxu0 0.0
    %762 = vmatpush.msra.mxu0 0.0
    %763 = vmatpush.msra.mxu0 0.0
    %764 = vmatpush.msra.mxu0 0.0
    %765 = vmatpush.msra.mxu0 0.0
    %766 = vmatpush.msra.mxu0 0.0
    %767 = vmatpush.msra.mxu0 0.0
    %768 = vmatpush.msra.mxu0 0.0
    %769 = vmatpush.msra.mxu0 0.0
    %770 = vmatpush.msra.mxu0 0.0
    %771 = vmatpush.msra.mxu0 0.0
    %772 = vmatpush.msra.mxu0 %v752
    %773 = vmatmul.f32.gmra.mxu0 %v755
    %v774 = vpop.f32.mrf.mxu0
    %v775 = vadd.f32 0.0, %v774
    %776 = vdwg.mxu0
    %v777 = vld [vmem:[%s4 + $0x10] sm:$0xff]
    %v779 = vsel %vm325, %v749, 0
    %v782 = vsel %vm325, %v775, 0
    %784 = vmatpush.msra.mxu0 0.0
    %785 = vmatpush.msra.mxu0 0.0
    %786 = vmatpush.msra.mxu0 0.0
    %787 = vmatpush.msra.mxu0 0.0
    %788 = vmatpush.msra.mxu0 0.0
    %789 = vmatpush.msra.mxu0 0.0
    %790 = vmatpush.msra.mxu0 0.0
    %791 = vmatpush.msra.mxu0 0.0
    %792 = vmatpush.msra.mxu0 0.0
    %793 = vmatpush.msra.mxu0 0.0
    %794 = vmatpush.msra.mxu0 0.0
    %795 = vmatpush.msra.mxu0 0.0
    %796 = vmatpush.msra.mxu0 0.0
    %797 = vmatpush.msra.mxu0 0.0
    %798 = vmatpush.msra.mxu0 0.0
    %799 = vmatpush.msra.mxu0 %v777
    %800 = vmatmul.f32.gmra.mxu0 %v779
    %v801 = vpop.f32.mrf.mxu0
    %v802 = vadd.f32 0.0, %v801
    %803 = vmatmul.f32.gmra.mxu0 %v782
    %v804 = vpop.f32.mrf.mxu0
    %v805 = vadd.f32 0.0, %v804
    %806 = vdwg.mxu0
    %v807 = vadd.f32 %v640, %v802
    %v808 = vadd.f32 %v643, %v805
    %809 = vrot.lane.b32.xlu0 %v317, 104
    %v810 = vpop.permute.xlu0 %809
    %811 = vrot.lane.b32.xlu0 %v317, 72
    %v812 = vpop.permute.xlu0 %811
    %v813 = vsel %vm325, %v810, 0
    %v815 = vsel %vm325, %v812, 0
    %817 = vmatpush.xpose.msra.mxu0 0.0
    %818 = vmatpush.xpose.msra.mxu0 0.0
    %819 = vmatpush.xpose.msra.mxu0 0.0
    %820 = vmatpush.xpose.msra.mxu0 0.0
    %821 = vmatpush.xpose.msra.mxu0 0.0
    %822 = vmatpush.xpose.msra.mxu0 0.0
    %823 = vmatpush.xpose.msra.mxu0 0.0
    %824 = vmatpush.xpose.msra.mxu0 0.0
    %825 = vmatpush.xpose.msra.mxu0 0.0
    %826 = vmatpush.xpose.msra.mxu0 0.0
    %827 = vmatpush.xpose.msra.mxu0 0.0
    %828 = vmatpush.xpose.msra.mxu0 0.0
    %829 = vmatpush.xpose.msra.mxu0 0.0
    %830 = vmatpush.xpose.msra.mxu0 0.0
    %831 = vmatpush.xpose.msra.mxu0 0.0
    %832 = vmatpush.xpose.msra.mxu0 %v815
    %833 = vmatmul.f32.gmra.mxu0 %v813
    %v834 = vpop.f32.mrf.mxu0
    %v835 = vadd.f32 0.0, %v834
    %836 = vdwg.mxu0
    %837 = vrot.lane.b32.xlu0 %v320, 104
    %v838 = vpop.permute.xlu0 %837
    %839 = vrot.lane.b32.xlu0 %v320, 72
    %v840 = vpop.permute.xlu0 %839
    %v841 = vsel %vm325, %v838, 0
    %v843 = vsel %vm325, %v840, 0
    %845 = vmatpush.xpose.msra.mxu0 0.0
    %846 = vmatpush.xpose.msra.mxu0 0.0
    %847 = vmatpush.xpose.msra.mxu0 0.0
    %848 = vmatpush.xpose.msra.mxu0 0.0
    %849 = vmatpush.xpose.msra.mxu0 0.0
    %850 = vmatpush.xpose.msra.mxu0 0.0
    %851 = vmatpush.xpose.msra.mxu0 0.0
    %852 = vmatpush.xpose.msra.mxu0 0.0
    %853 = vmatpush.xpose.msra.mxu0 0.0
    %854 = vmatpush.xpose.msra.mxu0 0.0
    %855 = vmatpush.xpose.msra.mxu0 0.0
    %856 = vmatpush.xpose.msra.mxu0 0.0
    %857 = vmatpush.xpose.msra.mxu0 0.0
    %858 = vmatpush.xpose.msra.mxu0 0.0
    %859 = vmatpush.xpose.msra.mxu0 0.0
    %860 = vmatpush.xpose.msra.mxu0 %v843
    %861 = vmatmul.f32.gmra.mxu0 %v841
    %v862 = vpop.f32.mrf.mxu0
    %v863 = vadd.f32 0.0, %v862
    %864 = vdwg.mxu0
    %v865 = vmul.f32 %v835, 0.35355338
    %v866 = vmul.f32 %v863, 0.35355338
    %v867 = vsel %vm325, %v865, -inf
    %868 = vmax.xlane.f32.xlu0 %v867
    %v869 = vpop.xlane.xlu0 %868
    %v870 = vsel %vm325, %v866, -inf
    %871 = vmax.xlane.f32.xlu0 %v870
    %v872 = vpop.xlane.xlu0 %871
    %v873 = vsub.f32 %v865, %v869
    %v874 = vsub.f32 %v866, %v872
    %v875 = vmul.f32 %v873, 1.442695
    %v876 = vpow.pop %v875
    %v877 = vmul.f32 %v874, 1.442695
    %v878 = vpow.pop %v877
    %v879 = vsel %vm325, %v876, 0.0
    %880 = vadd.xlane.f32.xlu0 %v879
    %v881 = vpop.xlane.xlu0 %880
    %v882 = vsel %vm325, %v878, 0.0
    %883 = vadd.xlane.f32.xlu0 %v882
    %v884 = vpop.xlane.xlu0 %883
    %v885 = vrcp.pop %v881
    %v886 = vrcp.pop %v884
    %v887 = vmul.f32 %v876, %v885
    %v888 = vmul.f32 %v878, %v886
    %889 = vrot.lane.b32.xlu0 %v317, 40
    %v890 = vpop.permute.xlu0 %889
    %v893 = vsel %vm325, %v887, 0
    %895 = vmatpush.msra.mxu0 0.0
    %896 = vmatpush.msra.mxu0 0.0
    %897 = vmatpush.msra.mxu0 0.0
    %898 = vmatpush.msra.mxu0 0.0
    %899 = vmatpush.msra.mxu0 0.0
    %900 = vmatpush.msra.mxu0 0.0
    %901 = vmatpush.msra.mxu0 0.0
    %902 = vmatpush.msra.mxu0 0.0
    %903 = vmatpush.msra.mxu0 0.0
    %904 = vmatpush.msra.mxu0 0.0
    %905 = vmatpush.msra.mxu0 0.0
    %906 = vmatpush.msra.mxu0 0.0
    %907 = vmatpush.msra.mxu0 0.0
    %908 = vmatpush.msra.mxu0 0.0
    %909 = vmatpush.msra.mxu0 0.0
    %910 = vmatpush.msra.mxu0 %v890
    %911 = vmatmul.f32.gmra.mxu0 %v893
    %v912 = vpop.f32.mrf.mxu0
    %v913 = vadd.f32 0.0, %v912
    %914 = vdwg.mxu0
    %915 = vrot.lane.b32.xlu0 %v320, 40
    %v916 = vpop.permute.xlu0 %915
    %v919 = vsel %vm325, %v888, 0
    %921 = vmatpush.msra.mxu0 0.0
    %922 = vmatpush.msra.mxu0 0.0
    %923 = vmatpush.msra.mxu0 0.0
    %924 = vmatpush.msra.mxu0 0.0
    %925 = vmatpush.msra.mxu0 0.0
    %926 = vmatpush.msra.mxu0 0.0
    %927 = vmatpush.msra.mxu0 0.0
    %928 = vmatpush.msra.mxu0 0.0
    %929 = vmatpush.msra.mxu0 0.0
    %930 = vmatpush.msra.mxu0 0.0
    %931 = vmatpush.msra.mxu0 0.0
    %932 = vmatpush.msra.mxu0 0.0
    %933 = vmatpush.msra.mxu0 0.0
    %934 = vmatpush.msra.mxu0 0.0
    %935 = vmatpush.msra.mxu0 0.0
    %936 = vmatpush.msra.mxu0 %v916
    %937 = vmatmul.f32.gmra.mxu0 %v919
    %v938 = vpop.f32.mrf.mxu0
    %v939 = vadd.f32 0.0, %v938
    %940 = vdwg.mxu0
    %v941 = vld [vmem:[%s4 + $0x18] sm:$0xff]
    %v943 = vsel %vm325, %v913, 0
    %v946 = vsel %vm325, %v939, 0
    %948 = vmatpush.msra.mxu0 0.0
    %949 = vmatpush.msra.mxu0 0.0
    %950 = vmatpush.msra.mxu0 0.0
    %951 = vmatpush.msra.mxu0 0.0
    %952 = vmatpush.msra.mxu0 0.0
    %953 = vmatpush.msra.mxu0 0.0
    %954 = vmatpush.msra.mxu0 0.0
    %955 = vmatpush.msra.mxu0 0.0
    %956 = vmatpush.msra.mxu0 0.0
    %957 = vmatpush.msra.mxu0 0.0
    %958 = vmatpush.msra.mxu0 0.0
    %959 = vmatpush.msra.mxu0 0.0
    %960 = vmatpush.msra.mxu0 0.0
    %961 = vmatpush.msra.mxu0 0.0
    %962 = vmatpush.msra.mxu0 0.0
    %963 = vmatpush.msra.mxu0 %v941
    %964 = vmatmul.f32.gmra.mxu0 %v943
    %v965 = vpop.f32.mrf.mxu0
    %v966 = vadd.f32 0.0, %v965
    %967 = vmatmul.f32.gmra.mxu0 %v946
    %v968 = vpop.f32.mrf.mxu0
    %v969 = vadd.f32 0.0, %v968
    %970 = vdwg.mxu0
    %v971 = vadd.f32 %v807, %v966
    %v972 = vadd.f32 %v808, %v969
    %v973 = vld [vmem:[#allocation4] sm:$0x1]
    %v975 = vperm.slane %v973, 0
    %v977 = vadd.f32 %v971, %v975
    %v978 = vadd.f32 %v972, %v975
    %v979 = vadd.f32 %v278, %v977
    %v980 = vadd.f32 %v279, %v978
    %v981 = vsel %vm292, %v979, 0.0
    %982 = vadd.xlane.f32.xlu0 %v981
    %v983 = vpop.xlane.xlu0 %982
    %v984 = vsel %vm292, %v980, 0.0
    %985 = vadd.xlane.f32.xlu0 %v984
    %v986 = vpop.xlane.xlu0 %985
    %v987 = vrcp.pop 32.0
    %v988 = vmul.f32 32.0, %v987
    %v989 = vsub.f32 1.0, %v988
    %v990 = vmul.f32 %v987, %v989
    %v991 = vadd.f32 %v987, %v990
    %vm992 = vweird.f32 %v987
    %v993 = vsel %vm992, %v987, %v991
    %v994 = vmul.f32 %v983, %v993
    %v995 = vmul.f32 %v986, %v993
    %v996 = vsub.f32 %v979, %v994
    %v997 = vsub.f32 %v980, %v995
    %v998 = vmul.f32 %v996, %v996
    %v999 = vmul.f32 %v997, %v997
    %v1000 = vsel %vm292, %v998, 0.0
    %1001 = vadd.xlane.f32.xlu0 %v1000
    %v1002 = vpop.xlane.xlu0 %1001
    %v1003 = vsel %vm292, %v999, 0.0
    %1004 = vadd.xlane.f32.xlu0 %v1003
    %v1005 = vpop.xlane.xlu0 %1004
    %v1006 = vmul.f32 %v1002, %v993
    %v1007 = vmul.f32 %v1005, %v993
    %v1008 = vadd.f32 %v1006, 1e-05
    %v1009 = vadd.f32 %v1007, 1e-05
    %v1010 = vrsqrt.pop %v1008
    %v1011 = vmul.f32 %v1010, %v1008
    %v1012 = vmul.f32 %v1011, %v1010
    %v1013 = vmul.f32 0.5, %v1012
    %v1014 = vsub.f32 1.5, %v1013
    %v1015 = vmul.f32 %v1010, %v1014
    %vm1016 = vweird.f32 %v1008
    %vm1017 = vweird.f32 %v1010
    %vm1018 = vmor %vm1016, %vm1017
    %v1019 = vsel %vm1018, %v1010, %v1015
    %v1020 = vrsqrt.pop %v1009
    %v1021 = vmul.f32 %v1020, %v1009
    %v1022 = vmul.f32 %v1021, %v1020
    %v1023 = vmul.f32 0.5, %v1022
    %v1024 = vsub.f32 1.5, %v1023
    %v1025 = vmul.f32 %v1020, %v1024
    %vm1026 = vweird.f32 %v1009
    %vm1027 = vweird.f32 %v1020
    %vm1028 = vmor %vm1026, %vm1027
    %v1029 = vsel %vm1028, %v1020, %v1025
    %v1030 = vmul.f32 %v996, %v1019
    %v1031 = vmul.f32 %v997, %v1029
    %v1032 = vld [vmem:[#allocation16] sm:$0x1]
    %v1034 = vperm.slane %v1032, 0
    %v1036 = vmul.f32 %v1030, %v1034
    %v1037 = vmul.f32 %v1031, %v1034
    %v1038 = vld [vmem:[#allocation18] sm:$0x1]
    %v1040 = vperm.slane %v1038, 0
    %v1042 = vadd.f32 %v1036, %v1040
    %v1043 = vadd.f32 %v1037, %v1040
    %v1044 = vld [vmem:[%s6] sm:$0xff]
    %v1045 = vld [vmem:[%s6 + $0x8] sm:$0xff]
    %v1046 = vld [vmem:[%s6 + $0x10] sm:$0xff]
    %v1047 = vld [vmem:[%s6 + $0x18] sm:$0xff]
    %v1048 = vld [vmem:[#allocation6] sm:$0x1]
    %v1050 = vperm.slane %v1048, 0
    %v1053 = vsel %vm292, %v1042, 0
    %v1056 = vsel %vm292, %v1043, 0
    %1058 = vmatpush.msra.mxu0 0.0
    %1059 = vmatpush.msra.mxu0 0.0
    %1060 = vmatpush.msra.mxu0 0.0
    %1061 = vmatpush.msra.mxu0 0.0
    %1062 = vmatpush.msra.mxu0 0.0
    %1063 = vmatpush.msra.mxu0 0.0
    %1064 = vmatpush.msra.mxu0 0.0
    %1065 = vmatpush.msra.mxu0 0.0
    %1066 = vmatpush.msra.mxu0 0.0
    %1067 = vmatpush.msra.mxu0 0.0
    %1068 = vmatpush.msra.mxu0 0.0
    %1069 = vmatpush.msra.mxu0 0.0
    %1070 = vmatpush.msra.mxu0 %v1047
    %1071 = vmatpush.msra.mxu0 %v1046
    %1072 = vmatpush.msra.mxu0 %v1045
    %1073 = vmatpush.msra.mxu0 %v1044
    %1074 = vmatmul.f32.gmra.mxu0 %v1053
    %v1075 = vpop.f32.mrf.mxu0
    %v1076 = vadd.f32 %v1050, %v1075
    %1077 = vmatmul.f32.gmra.mxu0 %v1056
    %v1078 = vpop.f32.mrf.mxu0
    %v1079 = vadd.f32 %v1050, %v1078
    %1080 = vdwg.mxu0
    %v1081 = vld [vmem:[#allocation7] sm:$0xff]
    %v1082 = vld [vmem:[#allocation7 + $0x8] sm:$0xff]
    %v1083 = vld [vmem:[#allocation7 + $0x10] sm:$0xff]
    %v1084 = vld [vmem:[#allocation7 + $0x18] sm:$0xff]
    %v1085 = vld [vmem:[#allocation9] sm:$0x1]
    %v1087 = vperm.slane %v1085, 0
    %v1090 = vsel %vm292, %v280, 0
    %v1093 = vsel %vm292, %v281, 0
    %v1096 = vsel %vm292, %v282, 0
    %v1099 = vsel %vm292, %v283, 0
    %1101 = vmatpush.msra.mxu0 0.0
    %1102 = vmatpush.msra.mxu0 0.0
    %1103 = vmatpush.msra.mxu0 0.0
    %1104 = vmatpush.msra.mxu0 0.0
    %1105 = vmatpush.msra.mxu0 0.0
    %1106 = vmatpush.msra.mxu0 0.0
    %1107 = vmatpush.msra.mxu0 0.0
    %1108 = vmatpush.msra.mxu0 0.0
    %1109 = vmatpush.msra.mxu0 0.0
    %1110 = vmatpush.msra.mxu0 0.0
    %1111 = vmatpush.msra.mxu0 0.0
    %1112 = vmatpush.msra.mxu0 0.0
    %1113 = vmatpush.msra.mxu0 %v1084
    %1114 = vmatpush.msra.mxu0 %v1083
    %1115 = vmatpush.msra.mxu0 %v1082
    %1116 = vmatpush.msra.mxu0 %v1081
    %1117 = vmatmul.f32.gmra.mxu0 %v1090
    %v1118 = vpop.f32.mrf.mxu0
    %v1119 = vadd.f32 %v1087, %v1118
    %1120 = vmatmul.f32.gmra.mxu0 %v1093
    %v1121 = vpop.f32.mrf.mxu0
    %v1122 = vadd.f32 %v1087, %v1121
    %1123 = vmatmul.f32.gmra.mxu0 %v1096
    %v1124 = vpop.f32.mrf.mxu0
    %v1125 = vadd.f32 %v1087, %v1124
    %1126 = vmatmul.f32.gmra.mxu0 %v1099
    %v1127 = vpop.f32.mrf.mxu0
    %v1128 = vadd.f32 %v1087, %v1127
    %1129 = vdwg.mxu0
    %v1131 = vsel %vm325, %v1076, 0
    %v1134 = vsel %vm325, %v1119, 0
    %v1137 = vsel %vm325, %v1122, 0
    %1139 = vmatpush.xpose.msra.mxu0 0.0
    %1140 = vmatpush.xpose.msra.mxu0 0.0
    %1141 = vmatpush.xpose.msra.mxu0 0.0
    %1142 = vmatpush.xpose.msra.mxu0 0.0
    %1143 = vmatpush.xpose.msra.mxu0 0.0
    %1144 = vmatpush.xpose.msra.mxu0 0.0
    %1145 = vmatpush.xpose.msra.mxu0 0.0
    %1146 = vmatpush.xpose.msra.mxu0 0.0
    %1147 = vmatpush.xpose.msra.mxu0 0.0
    %1148 = vmatpush.xpose.msra.mxu0 0.0
    %1149 = vmatpush.xpose.msra.mxu0 0.0
    %1150 = vmatpush.xpose.msra.mxu0 0.0
    %1151 = vmatpush.xpose.msra.mxu0 0.0
    %1152 = vmatpush.xpose.msra.mxu0 0.0
    %1153 = vmatpush.xpose.msra.mxu0 %v1137
    %1154 = vmatpush.xpose.msra.mxu0 %v1134
    %1155 = vmatmul.f32.gmra.mxu0 %v1131
    %v1156 = vpop.f32.mrf.mxu0
    %v1157 = vadd.f32 0.0, %v1156
    %1158 = vdwg.mxu0
    %v1160 = vsel %vm325, %v1079, 0
    %v1163 = vsel %vm325, %v1125, 0
    %v1166 = vsel %vm325, %v1128, 0
    %1168 = vmatpush.xpose.msra.mxu0 0.0
    %1169 = vmatpush.xpose.msra.mxu0 0.0
    %1170 = vmatpush.xpose.msra.mxu0 0.0
    %1171 = vmatpush.xpose.msra.mxu0 0.0
    %1172 = vmatpush.xpose.msra.mxu0 0.0
    %1173 = vmatpush.xpose.msra.mxu0 0.0
    %1174 = vmatpush.xpose.msra.mxu0 0.0
    %1175 = vmatpush.xpose.msra.mxu0 0.0
    %1176 = vmatpush.xpose.msra.mxu0 0.0
    %1177 = vmatpush.xpose.msra.mxu0 0.0
    %1178 = vmatpush.xpose.msra.mxu0 0.0
    %1179 = vmatpush.xpose.msra.mxu0 0.0
    %1180 = vmatpush.xpose.msra.mxu0 0.0
    %1181 = vmatpush.xpose.msra.mxu0 0.0
    %1182 = vmatpush.xpose.msra.mxu0 %v1166
    %1183 = vmatpush.xpose.msra.mxu0 %v1163
    %1184 = vmatmul.f32.gmra.mxu0 %v1160
    %v1185 = vpop.f32.mrf.mxu0
    %v1186 = vadd.f32 0.0, %v1185
    %1187 = vdwg.mxu0
    %v1188 = vmul.f32 %v1157, 0.35355338
    %v1189 = vmul.f32 %v1186, 0.35355338
    %vm1190 = vcmask 130048
    %v1191 = vsel %vm1190, %v1188, -inf
    %1192 = vmax.xlane.f32.xlu0 %v1191
    %v1193 = vpop.xlane.xlu0 %1192
    %v1194 = vsel %vm1190, %v1189, -inf
    %1195 = vmax.xlane.f32.xlu0 %v1194
    %v1196 = vpop.xlane.xlu0 %1195
    %v1197 = vsub.f32 %v1188, %v1193
    %v1198 = vsub.f32 %v1189, %v1196
    %v1199 = vmul.f32 %v1197, 1.442695
    %v1200 = vpow.pop %v1199
    %v1201 = vmul.f32 %v1198, 1.442695
    %v1202 = vpow.pop %v1201
    %v1203 = vsel %vm1190, %v1200, 0.0
    %1204 = vadd.xlane.f32.xlu0 %v1203
    %v1205 = vpop.xlane.xlu0 %1204
    %v1206 = vsel %vm1190, %v1202, 0.0
    %1207 = vadd.xlane.f32.xlu0 %v1206
    %v1208 = vpop.xlane.xlu0 %1207
    %v1209 = vrcp.pop %v1205
    %v1210 = vrcp.pop %v1208
    %v1211 = vmul.f32 %v1200, %v1209
    %v1212 = vmul.f32 %v1202, %v1210
    %1213 = vrot.lane.b32.xlu0 %v1119, 96
    %v1214 = vpop.permute.xlu0 %1213
    %1215 = vrot.lane.b32.xlu0 %v1122, 96
    %v1216 = vpop.permute.xlu0 %1215
    %v1220 = vsel %vm1190, %v1211, 0
    %1222 = vmatpush.msra.mxu0 0.0
    %1223 = vmatpush.msra.mxu0 0.0
    %1224 = vmatpush.msra.mxu0 0.0
    %1225 = vmatpush.msra.mxu0 0.0
    %1226 = vmatpush.msra.mxu0 0.0
    %1227 = vmatpush.msra.mxu0 0.0
    %1228 = vmatpush.msra.mxu0 0.0
    %1229 = vmatpush.msra.mxu0 0.0
    %1230 = vmatpush.msra.mxu0 0.0
    %1231 = vmatpush.msra.mxu0 0.0
    %1232 = vmatpush.msra.mxu0 0.0
    %1233 = vmatpush.msra.mxu0 0.0
    %1234 = vmatpush.msra.mxu0 0.0
    %1235 = vmatpush.msra.mxu0 0.0
    %1236 = vmatpush.msra.mxu0 %v1216
    %1237 = vmatpush.msra.mxu0 %v1214
    %1238 = vmatmul.f32.gmra.mxu0 %v1220
    %v1239 = vpop.f32.mrf.mxu0
    %v1240 = vadd.f32 0.0, %v1239
    %1241 = vdwg.mxu0
    %1242 = vrot.lane.b32.xlu0 %v1125, 96
    %v1243 = vpop.permute.xlu0 %1242
    %1244 = vrot.lane.b32.xlu0 %v1128, 96
    %v1245 = vpop.permute.xlu0 %1244
    %v1249 = vsel %vm1190, %v1212, 0
    %1251 = vmatpush.msra.mxu0 0.0
    %1252 = vmatpush.msra.mxu0 0.0
    %1253 = vmatpush.msra.mxu0 0.0
    %1254 = vmatpush.msra.mxu0 0.0
    %1255 = vmatpush.msra.mxu0 0.0
    %1256 = vmatpush.msra.mxu0 0.0
    %1257 = vmatpush.msra.mxu0 0.0
    %1258 = vmatpush.msra.mxu0 0.0
    %1259 = vmatpush.msra.mxu0 0.0
    %1260 = vmatpush.msra.mxu0 0.0
    %1261 = vmatpush.msra.mxu0 0.0
    %1262 = vmatpush.msra.mxu0 0.0
    %1263 = vmatpush.msra.mxu0 0.0
    %1264 = vmatpush.msra.mxu0 0.0
    %1265 = vmatpush.msra.mxu0 %v1245
    %1266 = vmatpush.msra.mxu0 %v1243
    %1267 = vmatmul.f32.gmra.mxu0 %v1249
    %v1268 = vpop.f32.mrf.mxu0
    %v1269 = vadd.f32 0.0, %v1268
    %1270 = vdwg.mxu0
    %v1271 = vld [vmem:[#allocation10] sm:$0xff]
    %1272 = vrot.lane.b32.xlu0 %v1076, 120
    %v1273 = vpop.permute.xlu0 %1272
    %1274 = vrot.lane.b32.xlu0 %v1119, 120
    %v1275 = vpop.permute.xlu0 %1274
    %1276 = vrot.lane.b32.xlu0 %v1122, 120
    %v1277 = vpop.permute.xlu0 %1276
    %v1278 = vsel %vm325, %v1273, 0
    %v1280 = vsel %vm325, %v1275, 0
    %v1282 = vsel %vm325, %v1277, 0
    %1284 = vmatpush.xpose.msra.mxu0 0.0
    %1285 = vmatpush.xpose.msra.mxu0 0.0
    %1286 = vmatpush.xpose.msra.mxu0 0.0
    %1287 = vmatpush.xpose.msra.mxu0 0.0
    %1288 = vmatpush.xpose.msra.mxu0 0.0
    %1289 = vmatpush.xpose.msra.mxu0 0.0
    %1290 = vmatpush.xpose.msra.mxu0 0.0
    %1291 = vmatpush.xpose.msra.mxu0 0.0
    %1292 = vmatpush.xpose.msra.mxu0 0.0
    %1293 = vmatpush.xpose.msra.mxu0 0.0
    %1294 = vmatpush.xpose.msra.mxu0 0.0
    %1295 = vmatpush.xpose.msra.mxu0 0.0
    %1296 = vmatpush.xpose.msra.mxu0 0.0
    %1297 = vmatpush.xpose.msra.mxu0 0.0
    %1298 = vmatpush.xpose.msra.mxu0 %v1282
    %1299 = vmatpush.xpose.msra.mxu0 %v1280
    %1300 = vmatmul.f32.gmra.mxu0 %v1278
    %v1301 = vpop.f32.mrf.mxu0
    %v1302 = vadd.f32 0.0, %v1301
    %1303 = vdwg.mxu0
    %1304 = vrot.lane.b32.xlu0 %v1079, 120
    %v1305 = vpop.permute.xlu0 %1304
    %1306 = vrot.lane.b32.xlu0 %v1125, 120
    %v1307 = vpop.permute.xlu0 %1306
    %1308 = vrot.lane.b32.xlu0 %v1128, 120
    %v1309 = vpop.permute.xlu0 %1308
    %v1310 = vsel %vm325, %v1305, 0
    %v1312 = vsel %vm325, %v1307, 0
    %v1314 = vsel %vm325, %v1309, 0
    %1316 = vmatpush.xpose.msra.mxu0 0.0
    %1317 = vmatpush.xpose.msra.mxu0 0.0
    %1318 = vmatpush.xpose.msra.mxu0 0.0
    %1319 = vmatpush.xpose.msra.mxu0 0.0
    %1320 = vmatpush.xpose.msra.mxu0 0.0
    %1321 = vmatpush.xpose.msra.mxu0 0.0
    %1322 = vmatpush.xpose.msra.mxu0 0.0
    %1323 = vmatpush.xpose.msra.mxu0 0.0
    %1324 = vmatpush.xpose.msra.mxu0 0.0
    %1325 = vmatpush.xpose.msra.mxu0 0.0
    %1326 = vmatpush.xpose.msra.mxu0 0.0
    %1327 = vmatpush.xpose.msra.mxu0 0.0
    %1328 = vmatpush.xpose.msra.mxu0 0.0
    %1329 = vmatpush.xpose.msra.mxu0 0.0
    %1330 = vmatpush.xpose.msra.mxu0 %v1314
    %1331 = vmatpush.xpose.msra.mxu0 %v1312
    %1332 = vmatmul.f32.gmra.mxu0 %v1310
    %v1333 = vpop.f32.mrf.mxu0
    %v1334 = vadd.f32 0.0, %v1333
    %1335 = vdwg.mxu0
    %v1336 = vmul.f32 %v1302, 0.35355338
    %v1337 = vmul.f32 %v1334, 0.35355338
    %v1338 = vsel %vm1190, %v1336, -inf
    %1339 = vmax.xlane.f32.xlu0 %v1338
    %v1340 = vpop.xlane.xlu0 %1339
    %v1341 = vsel %vm1190, %v1337, -inf
    %1342 = vmax.xlane.f32.xlu0 %v1341
    %v1343 = vpop.xlane.xlu0 %1342
    %v1344 = vsub.f32 %v1336, %v1340
    %v1345 = vsub.f32 %v1337, %v1343
    %v1346 = vmul.f32 %v1344, 1.442695
    %v1347 = vpow.pop %v1346
    %v1348 = vmul.f32 %v1345, 1.442695
    %v1349 = vpow.pop %v1348
    %v1350 = vsel %vm1190, %v1347, 0.0
    %1351 = vadd.xlane.f32.xlu0 %v1350
    %v1352 = vpop.xlane.xlu0 %1351
    %v1353 = vsel %vm1190, %v1349, 0.0
    %1354 = vadd.xlane.f32.xlu0 %v1353
    %v1355 = vpop.xlane.xlu0 %1354
    %v1356 = vrcp.pop %v1352
    %v1357 = vrcp.pop %v1355
    %v1358 = vmul.f32 %v1347, %v1356
    %v1359 = vmul.f32 %v1349, %v1357
    %1360 = vrot.lane.b32.xlu0 %v1119, 88
    %v1361 = vpop.permute.xlu0 %1360
    %1362 = vrot.lane.b32.xlu0 %v1122, 88
    %v1363 = vpop.permute.xlu0 %1362
    %v1367 = vsel %vm1190, %v1358, 0
    %1369 = vmatpush.msra.mxu0 0.0
    %1370 = vmatpush.msra.mxu0 0.0
    %1371 = vmatpush.msra.mxu0 0.0
    %1372 = vmatpush.msra.mxu0 0.0
    %1373 = vmatpush.msra.mxu0 0.0
    %1374 = vmatpush.msra.mxu0 0.0
    %1375 = vmatpush.msra.mxu0 0.0
    %1376 = vmatpush.msra.mxu0 0.0
    %1377 = vmatpush.msra.mxu0 0.0
    %1378 = vmatpush.msra.mxu0 0.0
    %1379 = vmatpush.msra.mxu0 0.0
    %1380 = vmatpush.msra.mxu0 0.0
    %1381 = vmatpush.msra.mxu0 0.0
    %1382 = vmatpush.msra.mxu0 0.0
    %1383 = vmatpush.msra.mxu0 %v1363
    %1384 = vmatpush.msra.mxu0 %v1361
    %1385 = vmatmul.f32.gmra.mxu0 %v1367
    %v1386 = vpop.f32.mrf.mxu0
    %v1387 = vadd.f32 0.0, %v1386
    %1388 = vdwg.mxu0
    %1389 = vrot.lane.b32.xlu0 %v1125, 88
    %v1390 = vpop.permute.xlu0 %1389
    %1391 = vrot.lane.b32.xlu0 %v1128, 88
    %v1392 = vpop.permute.xlu0 %1391
    %v1396 = vsel %vm1190, %v1359, 0
    %1398 = vmatpush.msra.mxu0 0.0
    %1399 = vmatpush.msra.mxu0 0.0
    %1400 = vmatpush.msra.mxu0 0.0
    %1401 = vmatpush.msra.mxu0 0.0
    %1402 = vmatpush.msra.mxu0 0.0
    %1403 = vmatpush.msra.mxu0 0.0
    %1404 = vmatpush.msra.mxu0 0.0
    %1405 = vmatpush.msra.mxu0 0.0
    %1406 = vmatpush.msra.mxu0 0.0
    %1407 = vmatpush.msra.mxu0 0.0
    %1408 = vmatpush.msra.mxu0 0.0
    %1409 = vmatpush.msra.mxu0 0.0
    %1410 = vmatpush.msra.mxu0 0.0
    %1411 = vmatpush.msra.mxu0 0.0
    %1412 = vmatpush.msra.mxu0 %v1392
    %1413 = vmatpush.msra.mxu0 %v1390
    %1414 = vmatmul.f32.gmra.mxu0 %v1396
    %v1415 = vpop.f32.mrf.mxu0
    %v1416 = vadd.f32 0.0, %v1415
    %1417 = vdwg.mxu0
    %v1418 = vld [vmem:[#allocation10 + $0x8] sm:$0xff]
    %v1420 = vsel %vm325, %v1387, 0
    %v1423 = vsel %vm325, %v1416, 0
    %1425 = vmatpush.msra.mxu0 0.0
    %1426 = vmatpush.msra.mxu0 0.0
    %1427 = vmatpush.msra.mxu0 0.0
    %1428 = vmatpush.msra.mxu0 0.0
    %1429 = vmatpush.msra.mxu0 0.0
    %1430 = vmatpush.msra.mxu0 0.0
    %1431 = vmatpush.msra.mxu0 0.0
    %1432 = vmatpush.msra.mxu0 0.0
    %1433 = vmatpush.msra.mxu0 0.0
    %1434 = vmatpush.msra.mxu0 0.0
    %1435 = vmatpush.msra.mxu0 0.0
    %1436 = vmatpush.msra.mxu0 0.0
    %1437 = vmatpush.msra.mxu0 0.0
    %1438 = vmatpush.msra.mxu0 0.0
    %1439 = vmatpush.msra.mxu0 0.0
    %1440 = vmatpush.msra.mxu0 %v1418
    %1441 = vmatmul.f32.gmra.mxu0 %v1420
    %v1442 = vpop.f32.mrf.mxu0
    %v1443 = vadd.f32 0.0, %v1442
    %1444 = vmatmul.f32.gmra.mxu0 %v1423
    %v1445 = vpop.f32.mrf.mxu0
    %v1446 = vadd.f32 0.0, %v1445
    %1447 = vdwg.mxu0
    %v1449 = vsel %vm325, %v1240, 0
    %v1452 = vsel %vm325, %v1269, 0
    %1454 = vmatpush.msra.mxu0 0.0
    %1455 = vmatpush.msra.mxu0 0.0
    %1456 = vmatpush.msra.mxu0 0.0
    %1457 = vmatpush.msra.mxu0 0.0
    %1458 = vmatpush.msra.mxu0 0.0
    %1459 = vmatpush.msra.mxu0 0.0
    %1460 = vmatpush.msra.mxu0 0.0
    %1461 = vmatpush.msra.mxu0 0.0
    %1462 = vmatpush.msra.mxu0 0.0
    %1463 = vmatpush.msra.mxu0 0.0
    %1464 = vmatpush.msra.mxu0 0.0
    %1465 = vmatpush.msra.mxu0 0.0
    %1466 = vmatpush.msra.mxu0 0.0
    %1467 = vmatpush.msra.mxu0 0.0
    %1468 = vmatpush.msra.mxu0 0.0
    %1469 = vmatpush.msra.mxu0 %v1271
    %1470 = vmatmul.f32.gmra.mxu0 %v1449
    %v1471 = vpop.f32.mrf.mxu0
    %v1472 = vadd.f32 %v1443, %v1471
    %1473 = vmatmul.f32.gmra.mxu0 %v1452
    %v1474 = vpop.f32.mrf.mxu0
    %v1475 = vadd.f32 %v1446, %v1474
    %1476 = vdwg.mxu0
    %1477 = vrot.lane.b32.xlu0 %v1076, 112
    %v1478 = vpop.permute.xlu0 %1477
    %1479 = vrot.lane.b32.xlu0 %v1119, 112
    %v1480 = vpop.permute.xlu0 %1479
    %1481 = vrot.lane.b32.xlu0 %v1122, 112
    %v1482 = vpop.permute.xlu0 %1481
    %v1483 = vsel %vm325, %v1478, 0
    %v1485 = vsel %vm325, %v1480, 0
    %v1487 = vsel %vm325, %v1482, 0
    %1489 = vmatpush.xpose.msra.mxu0 0.0
    %1490 = vmatpush.xpose.msra.mxu0 0.0
    %1491 = vmatpush.xpose.msra.mxu0 0.0
    %1492 = vmatpush.xpose.msra.mxu0 0.0
    %1493 = vmatpush.xpose.msra.mxu0 0.0
    %1494 = vmatpush.xpose.msra.mxu0 0.0
    %1495 = vmatpush.xpose.msra.mxu0 0.0
    %1496 = vmatpush.xpose.msra.mxu0 0.0
    %1497 = vmatpush.xpose.msra.mxu0 0.0
    %1498 = vmatpush.xpose.msra.mxu0 0.0
    %1499 = vmatpush.xpose.msra.mxu0 0.0
    %1500 = vmatpush.xpose.msra.mxu0 0.0
    %1501 = vmatpush.xpose.msra.mxu0 0.0
    %1502 = vmatpush.xpose.msra.mxu0 0.0
    %1503 = vmatpush.xpose.msra.mxu0 %v1487
    %1504 = vmatpush.xpose.msra.mxu0 %v1485
    %1505 = vmatmul.f32.gmra.mxu0 %v1483
    %v1506 = vpop.f32.mrf.mxu0
    %v1507 = vadd.f32 0.0, %v1506
    %1508 = vdwg.mxu0
    %1509 = vrot.lane.b32.xlu0 %v1079, 112
    %v1510 = vpop.permute.xlu0 %1509
    %1511 = vrot.lane.b32.xlu0 %v1125, 112
    %v1512 = vpop.permute.xlu0 %1511
    %1513 = vrot.lane.b32.xlu0 %v1128, 112
    %v1514 = vpop.permute.xlu0 %1513
    %v1515 = vsel %vm325, %v1510, 0
    %v1517 = vsel %vm325, %v1512, 0
    %v1519 = vsel %vm325, %v1514, 0
    %1521 = vmatpush.xpose.msra.mxu0 0.0
    %1522 = vmatpush.xpose.msra.mxu0 0.0
    %1523 = vmatpush.xpose.msra.mxu0 0.0
    %1524 = vmatpush.xpose.msra.mxu0 0.0
    %1525 = vmatpush.xpose.msra.mxu0 0.0
    %1526 = vmatpush.xpose.msra.mxu0 0.0
    %1527 = vmatpush.xpose.msra.mxu0 0.0
    %1528 = vmatpush.xpose.msra.mxu0 0.0
    %1529 = vmatpush.xpose.msra.mxu0 0.0
    %1530 = vmatpush.xpose.msra.mxu0 0.0
    %1531 = vmatpush.xpose.msra.mxu0 0.0
    %1532 = vmatpush.xpose.msra.mxu0 0.0
    %1533 = vmatpush.xpose.msra.mxu0 0.0
    %1534 = vmatpush.xpose.msra.mxu0 0.0
    %1535 = vmatpush.xpose.msra.mxu0 %v1519
    %1536 = vmatpush.xpose.msra.mxu0 %v1517
    %1537 = vmatmul.f32.gmra.mxu0 %v1515
    %v1538 = vpop.f32.mrf.mxu0
    %v1539 = vadd.f32 0.0, %v1538
    %1540 = vdwg.mxu0
    %v1541 = vmul.f32 %v1507, 0.35355338
    %v1542 = vmul.f32 %v1539, 0.35355338
    %v1543 = vsel %vm1190, %v1541, -inf
    %1544 = vmax.xlane.f32.xlu0 %v1543
    %v1545 = vpop.xlane.xlu0 %1544
    %v1546 = vsel %vm1190, %v1542, -inf
    %1547 = vmax.xlane.f32.xlu0 %v1546
    %v1548 = vpop.xlane.xlu0 %1547
    %v1549 = vsub.f32 %v1541, %v1545
    %v1550 = vsub.f32 %v1542, %v1548
    %v1551 = vmul.f32 %v1549, 1.442695
    %v1552 = vpow.pop %v1551
    %v1553 = vmul.f32 %v1550, 1.442695
    %v1554 = vpow.pop %v1553
    %v1555 = vsel %vm1190, %v1552, 0.0
    %1556 = vadd.xlane.f32.xlu0 %v1555
    %v1557 = vpop.xlane.xlu0 %1556
    %v1558 = vsel %vm1190, %v1554, 0.0
    %1559 = vadd.xlane.f32.xlu0 %v1558
    %v1560 = vpop.xlane.xlu0 %1559
    %v1561 = vrcp.pop %v1557
    %v1562 = vrcp.pop %v1560
    %v1563 = vmul.f32 %v1552, %v1561
    %v1564 = vmul.f32 %v1554, %v1562
    %1565 = vrot.lane.b32.xlu0 %v1119, 80
    %v1566 = vpop.permute.xlu0 %1565
    %1567 = vrot.lane.b32.xlu0 %v1122, 80
    %v1568 = vpop.permute.xlu0 %1567
    %v1572 = vsel %vm1190, %v1563, 0
    %1574 = vmatpush.msra.mxu0 0.0
    %1575 = vmatpush.msra.mxu0 0.0
    %1576 = vmatpush.msra.mxu0 0.0
    %1577 = vmatpush.msra.mxu0 0.0
    %1578 = vmatpush.msra.mxu0 0.0
    %1579 = vmatpush.msra.mxu0 0.0
    %1580 = vmatpush.msra.mxu0 0.0
    %1581 = vmatpush.msra.mxu0 0.0
    %1582 = vmatpush.msra.mxu0 0.0
    %1583 = vmatpush.msra.mxu0 0.0
    %1584 = vmatpush.msra.mxu0 0.0
    %1585 = vmatpush.msra.mxu0 0.0
    %1586 = vmatpush.msra.mxu0 0.0
    %1587 = vmatpush.msra.mxu0 0.0
    %1588 = vmatpush.msra.mxu0 %v1568
    %1589 = vmatpush.msra.mxu0 %v1566
    %1590 = vmatmul.f32.gmra.mxu0 %v1572
    %v1591 = vpop.f32.mrf.mxu0
    %v1592 = vadd.f32 0.0, %v1591
    %1593 = vdwg.mxu0
    %1594 = vrot.lane.b32.xlu0 %v1125, 80
    %v1595 = vpop.permute.xlu0 %1594
    %1596 = vrot.lane.b32.xlu0 %v1128, 80
    %v1597 = vpop.permute.xlu0 %1596
    %v1601 = vsel %vm1190, %v1564, 0
    %1603 = vmatpush.msra.mxu0 0.0
    %1604 = vmatpush.msra.mxu0 0.0
    %1605 = vmatpush.msra.mxu0 0.0
    %1606 = vmatpush.msra.mxu0 0.0
    %1607 = vmatpush.msra.mxu0 0.0
    %1608 = vmatpush.msra.mxu0 0.0
    %1609 = vmatpush.msra.mxu0 0.0
    %1610 = vmatpush.msra.mxu0 0.0
    %1611 = vmatpush.msra.mxu0 0.0
    %1612 = vmatpush.msra.mxu0 0.0
    %1613 = vmatpush.msra.mxu0 0.0
    %1614 = vmatpush.msra.mxu0 0.0
    %1615 = vmatpush.msra.mxu0 0.0
    %1616 = vmatpush.msra.mxu0 0.0
    %1617 = vmatpush.msra.mxu0 %v1597
    %1618 = vmatpush.msra.mxu0 %v1595
    %1619 = vmatmul.f32.gmra.mxu0 %v1601
    %v1620 = vpop.f32.mrf.mxu0
    %v1621 = vadd.f32 0.0, %v1620
    %1622 = vdwg.mxu0
    %v1623 = vld [vmem:[#allocation10 + $0x10] sm:$0xff]
    %v1625 = vsel %vm325, %v1592, 0
    %v1628 = vsel %vm325, %v1621, 0
    %1630 = vmatpush.msra.mxu0 0.0
    %1631 = vmatpush.msra.mxu0 0.0
    %1632 = vmatpush.msra.mxu0 0.0
    %1633 = vmatpush.msra.mxu0 0.0
    %1634 = vmatpush.msra.mxu0 0.0
    %1635 = vmatpush.msra.mxu0 0.0
    %1636 = vmatpush.msra.mxu0 0.0
    %1637 = vmatpush.msra.mxu0 0.0
    %1638 = vmatpush.msra.mxu0 0.0
    %1639 = vmatpush.msra.mxu0 0.0
    %1640 = vmatpush.msra.mxu0 0.0
    %1641 = vmatpush.msra.mxu0 0.0
    %1642 = vmatpush.msra.mxu0 0.0
    %1643 = vmatpush.msra.mxu0 0.0
    %1644 = vmatpush.msra.mxu0 0.0
    %1645 = vmatpush.msra.mxu0 %v1623
    %1646 = vmatmul.f32.gmra.mxu0 %v1625
    %v1647 = vpop.f32.mrf.mxu0
    %v1648 = vadd.f32 0.0, %v1647
    %1649 = vmatmul.f32.gmra.mxu0 %v1628
    %v1650 = vpop.f32.mrf.mxu0
    %v1651 = vadd.f32 0.0, %v1650
    %1652 = vdwg.mxu0
    %v1653 = vadd.f32 %v1472, %v1648
    %v1654 = vadd.f32 %v1475, %v1651
    %1655 = vrot.lane.b32.xlu0 %v1076, 104
    %v1656 = vpop.permute.xlu0 %1655
    %1657 = vrot.lane.b32.xlu0 %v1119, 104
    %v1658 = vpop.permute.xlu0 %1657
    %1659 = vrot.lane.b32.xlu0 %v1122, 104
    %v1660 = vpop.permute.xlu0 %1659
    %v1661 = vsel %vm325, %v1656, 0
    %v1663 = vsel %vm325, %v1658, 0
    %v1665 = vsel %vm325, %v1660, 0
    %1667 = vmatpush.xpose.msra.mxu0 0.0
    %1668 = vmatpush.xpose.msra.mxu0 0.0
    %1669 = vmatpush.xpose.msra.mxu0 0.0
    %1670 = vmatpush.xpose.msra.mxu0 0.0
    %1671 = vmatpush.xpose.msra.mxu0 0.0
    %1672 = vmatpush.xpose.msra.mxu0 0.0
    %1673 = vmatpush.xpose.msra.mxu0 0.0
    %1674 = vmatpush.xpose.msra.mxu0 0.0
    %1675 = vmatpush.xpose.msra.mxu0 0.0
    %1676 = vmatpush.xpose.msra.mxu0 0.0
    %1677 = vmatpush.xpose.msra.mxu0 0.0
    %1678 = vmatpush.xpose.msra.mxu0 0.0
    %1679 = vmatpush.xpose.msra.mxu0 0.0
    %1680 = vmatpush.xpose.msra.mxu0 0.0
    %1681 = vmatpush.xpose.msra.mxu0 %v1665
    %1682 = vmatpush.xpose.msra.mxu0 %v1663
    %1683 = vmatmul.f32.gmra.mxu0 %v1661
    %v1684 = vpop.f32.mrf.mxu0
    %v1685 = vadd.f32 0.0, %v1684
    %1686 = vdwg.mxu0
    %1687 = vrot.lane.b32.xlu0 %v1079, 104
    %v1688 = vpop.permute.xlu0 %1687
    %1689 = vrot.lane.b32.xlu0 %v1125, 104
    %v1690 = vpop.permute.xlu0 %1689
    %1691 = vrot.lane.b32.xlu0 %v1128, 104
    %v1692 = vpop.permute.xlu0 %1691
    %v1693 = vsel %vm325, %v1688, 0
    %v1695 = vsel %vm325, %v1690, 0
    %v1697 = vsel %vm325, %v1692, 0
    %1699 = vmatpush.xpose.msra.mxu0 0.0
    %1700 = vmatpush.xpose.msra.mxu0 0.0
    %1701 = vmatpush.xpose.msra.mxu0 0.0
    %1702 = vmatpush.xpose.msra.mxu0 0.0
    %1703 = vmatpush.xpose.msra.mxu0 0.0
    %1704 = vmatpush.xpose.msra.mxu0 0.0
    %1705 = vmatpush.xpose.msra.mxu0 0.0
    %1706 = vmatpush.xpose.msra.mxu0 0.0
    %1707 = vmatpush.xpose.msra.mxu0 0.0
    %1708 = vmatpush.xpose.msra.mxu0 0.0
    %1709 = vmatpush.xpose.msra.mxu0 0.0
    %1710 = vmatpush.xpose.msra.mxu0 0.0
    %1711 = vmatpush.xpose.msra.mxu0 0.0
    %1712 = vmatpush.xpose.msra.mxu0 0.0
    %1713 = vmatpush.xpose.msra.mxu0 %v1697
    %1714 = vmatpush.xpose.msra.mxu0 %v1695
    %1715 = vmatmul.f32.gmra.mxu0 %v1693
    %v1716 = vpop.f32.mrf.mxu0
    %v1717 = vadd.f32 0.0, %v1716
    %1718 = vdwg.mxu0
    %v1719 = vmul.f32 %v1685, 0.35355338
    %v1720 = vmul.f32 %v1717, 0.35355338
    %v1721 = vsel %vm1190, %v1719, -inf
    %1722 = vmax.xlane.f32.xlu0 %v1721
    %v1723 = vpop.xlane.xlu0 %1722
    %v1724 = vsel %vm1190, %v1720, -inf
    %1725 = vmax.xlane.f32.xlu0 %v1724
    %v1726 = vpop.xlane.xlu0 %1725
    %v1727 = vsub.f32 %v1719, %v1723
    %v1728 = vsub.f32 %v1720, %v1726
    %v1729 = vmul.f32 %v1727, 1.442695
    %v1730 = vpow.pop %v1729
    %v1731 = vmul.f32 %v1728, 1.442695
    %v1732 = vpow.pop %v1731
    %v1733 = vsel %vm1190, %v1730, 0.0
    %1734 = vadd.xlane.f32.xlu0 %v1733
    %v1735 = vpop.xlane.xlu0 %1734
    %v1736 = vsel %vm1190, %v1732, 0.0
    %1737 = vadd.xlane.f32.xlu0 %v1736
    %v1738 = vpop.xlane.xlu0 %1737
    %v1739 = vrcp.pop %v1735
    %v1740 = vrcp.pop %v1738
    %v1741 = vmul.f32 %v1730, %v1739
    %v1742 = vmul.f32 %v1732, %v1740
    %1743 = vrot.lane.b32.xlu0 %v1119, 72
    %v1744 = vpop.permute.xlu0 %1743
    %1745 = vrot.lane.b32.xlu0 %v1122, 72
    %v1746 = vpop.permute.xlu0 %1745
    %v1750 = vsel %vm1190, %v1741, 0
    %1752 = vmatpush.msra.mxu0 0.0
    %1753 = vmatpush.msra.mxu0 0.0
    %1754 = vmatpush.msra.mxu0 0.0
    %1755 = vmatpush.msra.mxu0 0.0
    %1756 = vmatpush.msra.mxu0 0.0
    %1757 = vmatpush.msra.mxu0 0.0
    %1758 = vmatpush.msra.mxu0 0.0
    %1759 = vmatpush.msra.mxu0 0.0
    %1760 = vmatpush.msra.mxu0 0.0
    %1761 = vmatpush.msra.mxu0 0.0
    %1762 = vmatpush.msra.mxu0 0.0
    %1763 = vmatpush.msra.mxu0 0.0
    %1764 = vmatpush.msra.mxu0 0.0
    %1765 = vmatpush.msra.mxu0 0.0
    %1766 = vmatpush.msra.mxu0 %v1746
    %1767 = vmatpush.msra.mxu0 %v1744
    %1768 = vmatmul.f32.gmra.mxu0 %v1750
    %v1769 = vpop.f32.mrf.mxu0
    %v1770 = vadd.f32 0.0, %v1769
    %1771 = vdwg.mxu0
    %1772 = vrot.lane.b32.xlu0 %v1125, 72
    %v1773 = vpop.permute.xlu0 %1772
    %1774 = vrot.lane.b32.xlu0 %v1128, 72
    %v1775 = vpop.permute.xlu0 %1774
    %v1779 = vsel %vm1190, %v1742, 0
    %1781 = vmatpush.msra.mxu0 0.0
    %1782 = vmatpush.msra.mxu0 0.0
    %1783 = vmatpush.msra.mxu0 0.0
    %1784 = vmatpush.msra.mxu0 0.0
    %1785 = vmatpush.msra.mxu0 0.0
    %1786 = vmatpush.msra.mxu0 0.0
    %1787 = vmatpush.msra.mxu0 0.0
    %1788 = vmatpush.msra.mxu0 0.0
    %1789 = vmatpush.msra.mxu0 0.0
    %1790 = vmatpush.msra.mxu0 0.0
    %1791 = vmatpush.msra.mxu0 0.0
    %1792 = vmatpush.msra.mxu0 0.0
    %1793 = vmatpush.msra.mxu0 0.0
    %1794 = vmatpush.msra.mxu0 0.0
    %1795 = vmatpush.msra.mxu0 %v1775
    %1796 = vmatpush.msra.mxu0 %v1773
    %1797 = vmatmul.f32.gmra.mxu0 %v1779
    %v1798 = vpop.f32.mrf.mxu0
    %v1799 = vadd.f32 0.0, %v1798
    %1800 = vdwg.mxu0
    %v1801 = vld [vmem:[#allocation10 + $0x18] sm:$0xff]
    %v1803 = vsel %vm325, %v1770, 0
    %v1806 = vsel %vm325, %v1799, 0
    %1808 = vmatpush.msra.mxu0 0.0
    %1809 = vmatpush.msra.mxu0 0.0
    %1810 = vmatpush.msra.mxu0 0.0
    %1811 = vmatpush.msra.mxu0 0.0
    %1812 = vmatpush.msra.mxu0 0.0
    %1813 = vmatpush.msra.mxu0 0.0
    %1814 = vmatpush.msra.mxu0 0.0
    %1815 = vmatpush.msra.mxu0 0.0
    %1816 = vmatpush.msra.mxu0 0.0
    %1817 = vmatpush.msra.mxu0 0.0
    %1818 = vmatpush.msra.mxu0 0.0
    %1819 = vmatpush.msra.mxu0 0.0
    %1820 = vmatpush.msra.mxu0 0.0
    %1821 = vmatpush.msra.mxu0 0.0
    %1822 = vmatpush.msra.mxu0 0.0
    %1823 = vmatpush.msra.mxu0 %v1801
    %1824 = vmatmul.f32.gmra.mxu0 %v1803
    %v1825 = vpop.f32.mrf.mxu0
    %v1826 = vadd.f32 0.0, %v1825
    %1827 = vmatmul.f32.gmra.mxu0 %v1806
    %v1828 = vpop.f32.mrf.mxu0
    %v1829 = vadd.f32 0.0, %v1828
    %1830 = vdwg.mxu0
    %v1831 = vadd.f32 %v1653, %v1826
    %v1832 = vadd.f32 %v1654, %v1829
    %v1833 = vld [vmem:[#allocation12] sm:$0x1]
    %v1835 = vperm.slane %v1833, 0
    %v1837 = vadd.f32 %v1831, %v1835
    %v1838 = vadd.f32 %v1832, %v1835
    %v1839 = vadd.f32 %v1042, %v1837
    %v1840 = vadd.f32 %v1043, %v1838
    %v1841 = vsel %vm292, %v1839, 0.0
    %1842 = vadd.xlane.f32.xlu0 %v1841
    %v1843 = vpop.xlane.xlu0 %1842
    %v1844 = vsel %vm292, %v1840, 0.0
    %1845 = vadd.xlane.f32.xlu0 %v1844
    %v1846 = vpop.xlane.xlu0 %1845
    %v1847 = vmul.f32 %v1843, %v993
    %v1848 = vmul.f32 %v1846, %v993
    %v1849 = vsub.f32 %v1839, %v1847
    %v1850 = vsub.f32 %v1840, %v1848
    %v1851 = vmul.f32 %v1849, %v1849
    %v1852 = vmul.f32 %v1850, %v1850
    %v1853 = vsel %vm292, %v1851, 0.0
    %1854 = vadd.xlane.f32.xlu0 %v1853
    %v1855 = vpop.xlane.xlu0 %1854
    %v1856 = vsel %vm292, %v1852, 0.0
    %1857 = vadd.xlane.f32.xlu0 %v1856
    %v1858 = vpop.xlane.xlu0 %1857
    %v1859 = vmul.f32 %v1855, %v993
    %v1860 = vmul.f32 %v1858, %v993
    %v1861 = vadd.f32 %v1859, 1e-05
    %v1862 = vadd.f32 %v1860, 1e-05
    %v1863 = vrsqrt.pop %v1861
    %v1864 = vmul.f32 %v1863, %v1861
    %v1865 = vmul.f32 %v1864, %v1863
    %v1866 = vmul.f32 0.5, %v1865
    %v1867 = vsub.f32 1.5, %v1866
    %v1868 = vmul.f32 %v1863, %v1867
    %vm1869 = vweird.f32 %v1861
    %vm1870 = vweird.f32 %v1863
    %vm1871 = vmor %vm1869, %vm1870
    %v1872 = vsel %vm1871, %v1863, %v1868
    %v1873 = vrsqrt.pop %v1862
    %v1874 = vmul.f32 %v1873, %v1862
    %v1875 = vmul.f32 %v1874, %v1873
    %v1876 = vmul.f32 0.5, %v1875
    %v1877 = vsub.f32 1.5, %v1876
    %v1878 = vmul.f32 %v1873, %v1877
    %vm1879 = vweird.f32 %v1862
    %vm1880 = vweird.f32 %v1873
    %vm1881 = vmor %vm1879, %vm1880
    %v1882 = vsel %vm1881, %v1873, %v1878
    %v1883 = vmul.f32 %v1849, %v1872
    %v1884 = vmul.f32 %v1850, %v1882
    %v1885 = vld [vmem:[#allocation19] sm:$0x1]
    %v1887 = vperm.slane %v1885, 0
    %v1889 = vmul.f32 %v1883, %v1887
    %v1890 = vmul.f32 %v1884, %v1887
    %v1891 = vld [vmem:[#allocation21] sm:$0x1]
    %v1893 = vperm.slane %v1891, 0
    %v1895 = vadd.f32 %v1889, %v1893
    %v1896 = vadd.f32 %v1890, %v1893
    %v1897 = vld [vmem:[%s12] sm:$0xff]
    %v1898 = vld [vmem:[%s12 + $0x8] sm:$0xff]
    %v1899 = vld [vmem:[%s12 + $0x10] sm:$0xff]
    %v1900 = vld [vmem:[%s12 + $0x18] sm:$0xff]
    %v1901 = vld [vmem:[#allocation13] sm:$0x1]
    %v1903 = vperm.slane %v1901, 0
    %v1906 = vsel %vm292, %v1895, 0
    %v1909 = vsel %vm292, %v1896, 0
    %1911 = vmatpush.msra.mxu0 0.0
    %1912 = vmatpush.msra.mxu0 0.0
    %1913 = vmatpush.msra.mxu0 0.0
    %1914 = vmatpush.msra.mxu0 0.0
    %1915 = vmatpush.msra.mxu0 0.0
    %1916 = vmatpush.msra.mxu0 0.0
    %1917 = vmatpush.msra.mxu0 0.0
    %1918 = vmatpush.msra.mxu0 0.0
    %1919 = vmatpush.msra.mxu0 0.0
    %1920 = vmatpush.msra.mxu0 0.0
    %1921 = vmatpush.msra.mxu0 0.0
    %1922 = vmatpush.msra.mxu0 0.0
    %1923 = vmatpush.msra.mxu0 %v1900
    %1924 = vmatpush.msra.mxu0 %v1899
    %1925 = vmatpush.msra.mxu0 %v1898
    %1926 = vmatpush.msra.mxu0 %v1897
    %1927 = vmatmul.f32.gmra.mxu0 %v1906
    %v1928 = vpop.f32.mrf.mxu0
    %v1929 = vadd.f32 %v1903, %v1928
    %1930 = vmatmul.f32.gmra.mxu0 %v1909
    %v1931 = vpop.f32.mrf.mxu0
    %v1932 = vadd.f32 %v1903, %v1931
    %1933 = vdwg.mxu0
    %v1934 = vmax.f32 %v1929, 0.0
    %v1935 = vmax.f32 %v1932, 0.0
    %v1936 = vld [vmem:[%s14] sm:$0xff]
    %v1937 = vld [vmem:[%s14 + $0x8] sm:$0xff]
    %v1938 = vld [vmem:[%s14 + $0x10] sm:$0xff]
    %v1939 = vld [vmem:[%s14 + $0x18] sm:$0xff]
    %v1940 = vld [vmem:[%s14 + $0x20] sm:$0xff]
    %v1941 = vld [vmem:[%s14 + $0x28] sm:$0xff]
    %v1942 = vld [vmem:[%s14 + $0x30] sm:$0xff]
    %v1943 = vld [vmem:[%s14 + $0x38] sm:$0xff]
    %v1944 = vld [vmem:[#allocation15] sm:$0x1]
    %v1946 = vperm.slane %v1944, 0
    %vm1948 = vcmask 523264
    %v1950 = vsel %vm1948, %v1934, 0
    %v1953 = vsel %vm1948, %v1935, 0
    %1955 = vmatpush.msra.mxu0 0.0
    %1956 = vmatpush.msra.mxu0 0.0
    %1957 = vmatpush.msra.mxu0 0.0
    %1958 = vmatpush.msra.mxu0 0.0
    %1959 = vmatpush.msra.mxu0 0.0
    %1960 = vmatpush.msra.mxu0 0.0
    %1961 = vmatpush.msra.mxu0 0.0
    %1962 = vmatpush.msra.mxu0 0.0
    %1963 = vmatpush.msra.mxu0 %v1943
    %1964 = vmatpush.msra.mxu0 %v1942
    %1965 = vmatpush.msra.mxu0 %v1941
    %1966 = vmatpush.msra.mxu0 %v1940
    %1967 = vmatpush.msra.mxu0 %v1939
    %1968 = vmatpush.msra.mxu0 %v1938
    %1969 = vmatpush.msra.mxu0 %v1937
    %1970 = vmatpush.msra.mxu0 %v1936
    %1971 = vmatmul.f32.gmra.mxu0 %v1950
    %v1972 = vpop.f32.mrf.mxu0
    %v1973 = vadd.f32 %v1946, %v1972
    %1974 = vmatmul.f32.gmra.mxu0 %v1953
    %v1975 = vpop.f32.mrf.mxu0
    %v1976 = vadd.f32 %v1946, %v1975
    %1977 = vdwg.mxu0
    %v1978 = vadd.f32 %v1895, %v1973
    %v1979 = vadd.f32 %v1896, %v1976
    %v1980 = vsel %vm292, %v1978, 0.0
    %1981 = vadd.xlane.f32.xlu0 %v1980
    %v1982 = vpop.xlane.xlu0 %1981
    %v1983 = vsel %vm292, %v1979, 0.0
    %1984 = vadd.xlane.f32.xlu0 %v1983
    %v1985 = vpop.xlane.xlu0 %1984
    %v1986 = vmul.f32 %v1982, %v993
    %v1987 = vmul.f32 %v1985, %v993
    %v1988 = vsub.f32 %v1978, %v1986
    %v1989 = vsub.f32 %v1979, %v1987
    %v1990 = vmul.f32 %v1988, %v1988
    %v1991 = vmul.f32 %v1989, %v1989
    %v1992 = vsel %vm292, %v1990, 0.0
    %1993 = vadd.xlane.f32.xlu0 %v1992
    %v1994 = vpop.xlane.xlu0 %1993
    %v1995 = vsel %vm292, %v1991, 0.0
    %1996 = vadd.xlane.f32.xlu0 %v1995
    %v1997 = vpop.xlane.xlu0 %1996
    %v1998 = vmul.f32 %v1994, %v993
    %v1999 = vmul.f32 %v1997, %v993
    %v2000 = vadd.f32 %v1998, 1e-05
    %v2001 = vadd.f32 %v1999, 1e-05
    %v2002 = vrsqrt.pop %v2000
    %v2003 = vmul.f32 %v2002, %v2000
    %v2004 = vmul.f32 %v2003, %v2002
    %v2005 = vmul.f32 0.5, %v2004
    %v2006 = vsub.f32 1.5, %v2005
    %v2007 = vmul.f32 %v2002, %v2006
    %vm2008 = vweird.f32 %v2000
    %vm2009 = vweird.f32 %v2002
    %vm2010 = vmor %vm2008, %vm2009
    %v2011 = vsel %vm2010, %v2002, %v2007
    %v2012 = vrsqrt.pop %v2001
    %v2013 = vmul.f32 %v2012, %v2001
    %v2014 = vmul.f32 %v2013, %v2012
    %v2015 = vmul.f32 0.5, %v2014
    %v2016 = vsub.f32 1.5, %v2015
    %v2017 = vmul.f32 %v2012, %v2016
    %vm2018 = vweird.f32 %v2001
    %vm2019 = vweird.f32 %v2012
    %vm2020 = vmor %vm2018, %vm2019
    %v2021 = vsel %vm2020, %v2012, %v2017
    %v2022 = vmul.f32 %v1988, %v2011
    %v2023 = vmul.f32 %v1989, %v2021
    %v2024 = vld [vmem:[#allocation22] sm:$0x1]
    %v2026 = vperm.slane %v2024, 0
    %v2028 = vmul.f32 %v2022, %v2026
    %v2029 = vmul.f32 %v2023, %v2026
    %v2030 = vld [vmem:[#allocation24] sm:$0x1]
    %v2032 = vperm.slane %v2030, 0
    %v2034 = vadd.f32 %v2028, %v2032
    %v2035 = vadd.f32 %v2029, %v2032
    %2036 = vst.msk [vmem:[%s22] sm:$0xff] %vm292, %v2034
    %2037 = vst.msk [vmem:[%s22 + $0x8] sm:$0xff] %vm292, %v2035
    // Predicated region
    $region150: #{transformer_decoder_forward.4} parent=1 // pred_check
      _
    $region151: #{transformer_decoder_forward.4} parent=1 // pred_check_branch
      %2039 = sbr.rel (0) target = $region153
    $region152: #{transformer_decoder_forward.4} parent=1 // pred_region
      _
    $region153: #{transformer_decoder_forward.4} parent=1 // pred_fallthru
      _
    // Predicated region
    $region154: #{transformer_decoder_forward.4} parent=1 // pred_check
      _
    $region155: #{transformer_decoder_forward.4} parent=1 // pred_check_branch
      %2041 = sbr.rel (0) target = $region157
    $region156: #{transformer_decoder_forward.4} parent=1 // pred_region
      _
    $region157: #{transformer_decoder_forward.4} parent=1 // pred_fallthru
      _
    %2042 = vsyncpa [#allocation3], 1
    %2043 = vsyncpa [#allocation5], 1
    %2044 = vsyncpa [#allocation8], 1
    %2045 = vsyncpa [#allocation11], 1
    %2046 = vsyncpa [#allocation14], 1
    %2047 = vsyncpa [#allocation17], 1
    %2048 = vsyncpa [#allocation20], 1
    %2049 = vsyncpa [#allocation23], 1

</llo_original>
